<compile_context>
chip_gen: v5e
topology: v5e:2x2
jax: 0.10.0
libtpu: 0.0.40
codegen_flags: <defaults>
</compile_context>

<pallas_src>
import functools

import numpy as np
import jax
import jax.numpy as jnp
from jax.experimental import pallas as pl
from jax.experimental.pallas import tpu as pltpu


# Images per grid step.  Multiple of 8 (sublane tile) so the (B*32, 96) input
# block and (B, 128) output block satisfy the TPU (8,128) block-shape rule.
BATCH_BLOCK = 8


# ---------------------------------------------------------------------------
# The fused Pallas kernel: one batch block (B images) per grid step.
# Activation layout: rows = b*rows_per_image + h (images stacked along sublanes),
#                    lanes = w*C + c (width-major, channel-minor).
# ---------------------------------------------------------------------------
def _lenet5_kernel(
    x_ref,                       # (B*32, 96)  f32   stacked images, (h, w*3+c)
    w1_ref, b1_ref,              # (5, 96, 168) bf16, (1, 168) f32   conv1 bands
    r1e_ref, r1o_ref,            # (B*14, B*32-4) bf16               pool1 row sel
    c1e_ref, c1o_ref,            # (168, 84) bf16                    pool1 col sel
    w2_ref, b2_ref,              # (5, 84, 160) bf16, (1, 160) f32   conv2 bands
    r2e_ref, r2o_ref,            # (B*5, B*14-4) bf16                pool2 row sel
    c2e_ref, c2o_ref,            # (160, 80) bf16                    pool2 col sel
    sel_ref,                     # (5*B, 5*B) bf16                   fc1 row gather
    wf1_ref, bf1_ref,            # (5, 80, 120) bf16, (1, 120) f32   fc1 slabs
    wf2_ref, bf2_ref,            # (120, 84) bf16, (1, 84) f32       fc2
    wf3_ref, bf3_ref,            # (84, 128) bf16, (1, 128) f32      fc3 (lane-pad)
    out_ref,                     # (B, 128) f32
):
    f32, bf16 = jnp.float32, jnp.bfloat16
    B = out_ref.shape[0]
    R1 = B * 32 - 4              # conv1 output rows (incl. image-boundary garbage)
    R2 = B * 14 - 4              # conv2 output rows (incl. image-boundary garbage)

    x = x_ref[...]                                           # (B*32, 96) f32

    # conv1 + bias + ReLU: 5 banded matmuls, batch stacked into M = B*32-4.
    acc = jnp.broadcast_to(b1_ref[...], (R1, 168))
    for kh in range(5):
        acc = acc + jnp.dot(x[kh:kh + R1, :].astype(bf16), w1_ref[kh],
                            preferred_element_type=f32)
    y = jnp.maximum(acc, 0.0).astype(bf16)                   # (R1, 168)

    # pool1: exact 0/1 selection matmuls (row selectors skip garbage rows).
    rmax = jnp.maximum(
        jnp.dot(r1e_ref[...], y, preferred_element_type=f32),
        jnp.dot(r1o_ref[...], y, preferred_element_type=f32)).astype(bf16)
    p = jnp.maximum(
        jnp.dot(rmax, c1e_ref[...], preferred_element_type=f32),
        jnp.dot(rmax, c1o_ref[...], preferred_element_type=f32))    # (B*14, 84)

    # conv2 + bias + ReLU (M = B*14-4).
    acc = jnp.broadcast_to(b2_ref[...], (R2, 160))
    for kh in range(5):
        acc = acc + jnp.dot(p[kh:kh + R2, :].astype(bf16), w2_ref[kh],
                            preferred_element_type=f32)
    y = jnp.maximum(acc, 0.0).astype(bf16)                   # (R2, 160)

    # pool2.
    rmax = jnp.maximum(
        jnp.dot(r2e_ref[...], y, preferred_element_type=f32),
        jnp.dot(r2o_ref[...], y, preferred_element_type=f32)).astype(bf16)
    p = jnp.maximum(
        jnp.dot(rmax, c2e_ref[...], preferred_element_type=f32),
        jnp.dot(rmax, c2o_ref[...], preferred_element_type=f32))    # (B*5, 80)

    # fc1: gather per-h row groups (exact 0/1 matmul) then 5 slab matmuls with
    # the batch in M (torch (c,h,w) flatten order folded into wf1 at prep time).
    xh = jnp.dot(sel_ref[...], p.astype(bf16), preferred_element_type=f32)
    acc = jnp.broadcast_to(bf1_ref[...], (B, 120))
    for h in range(5):
        acc = acc + jnp.dot(xh[h * B:(h + 1) * B, :].astype(bf16), wf1_ref[h],
                            preferred_element_type=f32)
    h1 = jnp.maximum(acc, 0.0).astype(bf16)                  # (B, 120)

    # fc2 + fc3 (fc3 zero-padded to 128 output lanes -> lane-dense HBM store).
    h2 = jnp.maximum(
        jnp.dot(h1, wf2_ref[...], preferred_element_type=f32) + bf2_ref[...],
        0.0).astype(bf16)                                    # (B, 84)
    out_ref[...] = (jnp.dot(h2, wf3_ref[...], preferred_element_type=f32)
                    + bf3_ref[...])                          # (B, 128)


# ---------------------------------------------------------------------------
# Host-side (outside jit) weight preparation.
# ---------------------------------------------------------------------------
def _conv_band(w, in_w):
    """torch conv weight (OC, IC, KH, KW) -> (KH, in_w*IC, out_w*OC) band mats."""
    oc, ic, kh_n, kw_n = w.shape
    out_w = in_w - kw_n + 1
    band = np.zeros((kh_n, in_w * ic, out_w * oc), np.float32)
    wt = np.asarray(w, np.float32)
    for kh in range(kh_n):
        for kw in range(kw_n):
            blk = wt[:, :, kh, kw].T                         # (IC, OC)
            for ow in range(out_w):
                r0 = (ow + kw) * ic
                band[kh, r0:r0 + ic, ow * oc:(ow + 1) * oc] = blk
    return band


def _pool_row_selectors(block, in_rows, out_rows):
    """Even/odd row-pick matrices for the image-stacked-rows layout."""
    cols = block * in_rows - 4                               # = conv output rows
    even = np.zeros((block * out_rows, cols), np.float32)
    odd = np.zeros_like(even)
    for b in range(block):
        for i in range(out_rows):
            even[b * out_rows + i, b * in_rows + 2 * i] = 1.0
            odd[b * out_rows + i, b * in_rows + 2 * i + 1] = 1.0
    return even, odd


def _pool_col_selectors(out_w, c):
    """Even/odd column-group pick matrices (channel-interleaved layout)."""
    ce = np.zeros((2 * out_w * c, out_w * c), np.float32)
    co = np.zeros_like(ce)
    eye = np.eye(c, dtype=np.float32)
    for j in range(out_w):
        ce[2 * j * c:(2 * j + 1) * c, j * c:(j + 1) * c] = eye
        co[(2 * j + 1) * c:(2 * j + 2) * c, j * c:(j + 1) * c] = eye
    return ce, co


def _fc1_gather(block):
    """sel[h*B + b, b*5 + h] = 1: regroups pool2 rows by spatial row h."""
    sel = np.zeros((5 * block, 5 * block), np.float32)
    for h in range(5):
        for b in range(block):
            sel[h * block + b, b * 5 + h] = 1.0
    return sel


def init_params(key):
    """Torch-layout LeNet-5 parameters (same init scheme as nn.Conv2d/Linear)."""
    ks = jax.random.split(key, 10)

    def u(k, shape, fan_in):
        bound = 1.0 / jnp.sqrt(fan_in)
        return jax.random.uniform(k, shape, jnp.float32, -bound, bound)

    return {
        "conv1_w": u(ks[0], (6, 3, 5, 5), 3 * 5 * 5),
        "conv1_b": u(ks[1], (6,), 3 * 5 * 5),
        "conv2_w": u(ks[2], (16, 6, 5, 5), 6 * 5 * 5),
        "conv2_b": u(ks[3], (16,), 6 * 5 * 5),
        "fc1_w": u(ks[4], (120, 400), 400),    # torch Linear: (out, in)
        "fc1_b": u(ks[5], (120,), 400),
        "fc2_w": u(ks[6], (84, 120), 120),
        "fc2_b": u(ks[7], (84,), 120),
        "fc3_w": u(ks[8], (10, 84), 84),
        "fc3_b": u(ks[9], (10,), 84),
    }


def prepare_params(params, block=BATCH_BLOCK):
    """One-time reorder/transpose/pad of torch-layout weights (outside jit).

    Matmul operands are stored in bf16 (f32 accumulation happens in-kernel);
    biases stay f32 since they only feed the f32 accumulators.
    """
    p = {k: np.asarray(v, np.float32) for k, v in params.items()}

    w1 = _conv_band(p["conv1_w"], 32)                        # (5, 96, 168)
    b1 = np.tile(p["conv1_b"], 28)[None, :]                  # (1, 168)
    r1e, r1o = _pool_row_selectors(block, 32, 14)
    c1e, c1o = _pool_col_selectors(14, 6)

    w2 = _conv_band(p["conv2_w"], 14)                        # (5, 84, 160)
    b2 = np.tile(p["conv2_b"], 10)[None, :]                  # (1, 160)
    r2e, r2o = _pool_row_selectors(block, 14, 5)
    c2e, c2o = _pool_col_selectors(5, 16)

    sel = _fc1_gather(block)

    # torch flatten order is (c, h, w); kernel activation layout is (h, w*16+c).
    wf1 = (p["fc1_w"].reshape(120, 16, 5, 5)
           .transpose(2, 3, 1, 0).reshape(5, 80, 120))       # (5, 80, 120)
    bf1 = p["fc1_b"][None, :]                                # (1, 120)
    wf2 = np.ascontiguousarray(p["fc2_w"].T)                 # (120, 84)
    bf2 = p["fc2_b"][None, :]                                # (1, 84)
    wf3 = np.zeros((84, 128), np.float32)                    # lane-pad fc3 to 128
    wf3[:, :10] = p["fc3_w"].T
    bf3 = np.zeros((1, 128), np.float32)
    bf3[0, :10] = p["fc3_b"]

    mm = lambda a: jnp.asarray(a, jnp.bfloat16)              # matmul operands
    fb = lambda a: jnp.asarray(a, jnp.float32)               # biases
    return (mm(w1), fb(b1), mm(r1e), mm(r1o), mm(c1e), mm(c1o),
            mm(w2), fb(b2), mm(r2e), mm(r2o), mm(c2e), mm(c2o),
            mm(sel),
            mm(wf1), fb(bf1), mm(wf2), fb(bf2), mm(wf3), fb(bf3))


def prepare_inputs(x_nchw):
    """One-time dataset pre-layout (outside the hot forward): torch NCHW ->
    row-stacked (N*32, W*C) so the per-step input DMA is a single dense 2-D tile
    and the kernel never needs an in-flight transpose."""
    n = x_nchw.shape[0]
    x = jnp.transpose(x_nchw.astype(jnp.float32), (0, 2, 3, 1))   # (n, 32, 32, 3)
    return x.reshape(n * 32, 96)


# ---------------------------------------------------------------------------
# Forward pass: one pallas_call, grid over batch blocks.
# ---------------------------------------------------------------------------
@functools.partial(jax.jit, static_argnames=("block",))
def lenet5_forward(x_rows, kernel_params, block=BATCH_BLOCK):
    assert block % 8 == 0, "batch block must be a multiple of 8 (sublane tile)"
    n = x_rows.shape[0] // 32
    # The stacked-row selectors were built for this block size.
    assert kernel_params[2].shape == (14 * block, 32 * block - 4), \
        "prepare_params() was built with a different batch block"

    n_pad = ((n + block - 1) // block) * block
    if n_pad != n:
        x_rows = jnp.pad(x_rows, ((0, (n_pad - n) * 32), (0, 0)))
    grid = (n_pad // block,)

    # NOTE: constants keep the default double buffering; pl.Buffered(1) would
    # save ~0.7 MB VMEM but headroom is ample at this block size.
    def const_spec(a):
        nd = a.ndim
        return pl.BlockSpec(a.shape, lambda i, _nd=nd: (0,) * _nd)

    in_specs = [pl.BlockSpec((block * 32, 96), lambda i: (i, 0))]
    in_specs += [const_spec(a) for a in kernel_params]

    out = pl.pallas_call(
        _lenet5_kernel,
        grid=grid,
        in_specs=in_specs,
        out_specs=pl.BlockSpec((block, 128), lambda i: (i, 0)),
        out_shape=jax.ShapeDtypeStruct((n_pad, 128), jnp.float32),
        compiler_params=pltpu.CompilerParams(
            dimension_semantics=("parallel",)),
    )(x_rows, *kernel_params)
    return out[:n, :10]


# ---------------------------------------------------------------------------
# Pure-JAX reference (for the in-script correctness check).
# ---------------------------------------------------------------------------
def lenet5_reference(x_nchw, params):
    def conv(x, w, b):
        y = jax.lax.conv_general_dilated(
            x, w, window_strides=(1, 1), padding="VALID",
            dimension_numbers=("NCHW", "OIHW", "NCHW"))
        return jax.nn.relu(y + b[None, :, None, None])

    def pool(x):
        return jax.lax.reduce_window(x, -jnp.inf, jax.lax.max,
                                     (1, 1, 2, 2), (1, 1, 2, 2), "VALID")

    x = pool(conv(x_nchw, params["conv1_w"], params["conv1_b"]))
    x = pool(conv(x, params["conv2_w"], params["conv2_b"]))
    x = x.reshape(x.shape[0], -1)                            # (N, 400), (C,H,W)
    x = jax.nn.relu(x @ params["fc1_w"].T + params["fc1_b"])
    x = jax.nn.relu(x @ params["fc2_w"].T + params["fc2_b"])
    return x @ params["fc3_w"].T + params["fc3_b"]


if __name__ == "__main__":
    key = jax.random.PRNGKey(0)
    k_params, k_input = jax.random.split(key)

    params = init_params(k_params)
    kernel_params = prepare_params(params, block=BATCH_BLOCK)

    # 16 images -> 2 grid steps of 8: exercises the batch-blocked pipeline and
    # keeps the grid >= 2 steps (v7x megacore sharding).
    n = 16
    x = jax.random.normal(k_input, (n, 3, 32, 32), dtype=jnp.float32)

    x_rows = prepare_inputs(x)                # one-time dataset pre-layout
    out = lenet5_forward(x_rows, kernel_params, block=BATCH_BLOCK)
    out = jax.block_until_ready(out)
    assert out.shape == (n, 10), out.shape
    assert out.dtype == jnp.float32

    with jax.default_matmul_precision("float32"):
        ref = lenet5_reference(x, params)
    # Kernel uses bf16 matmul operands with f32 accumulation; tolerance is sized
    # for bf16 operand rounding vs. the f32 reference (observed error << 1e-2).
    np.testing.assert_allclose(np.asarray(out), np.asarray(ref),
                               atol=5e-2, rtol=5e-2)

    print("KERNEL_OK")
</pallas_src>

<mosaic_0001>
module attributes {stable_mosaic.version = 11 : i64} {
  func.func @_lenet5_kernel(%arg0: i32, %arg1: memref<256x96xf32, #tpu.memory_space<vmem>>, %arg2: memref<5x96x168xbf16, #tpu.memory_space<vmem>>, %arg3: memref<1x168xf32, #tpu.memory_space<vmem>>, %arg4: memref<112x252xbf16, #tpu.memory_space<vmem>>, %arg5: memref<112x252xbf16, #tpu.memory_space<vmem>>, %arg6: memref<168x84xbf16, #tpu.memory_space<vmem>>, %arg7: memref<168x84xbf16, #tpu.memory_space<vmem>>, %arg8: memref<5x84x160xbf16, #tpu.memory_space<vmem>>, %arg9: memref<1x160xf32, #tpu.memory_space<vmem>>, %arg10: memref<40x108xbf16, #tpu.memory_space<vmem>>, %arg11: memref<40x108xbf16, #tpu.memory_space<vmem>>, %arg12: memref<160x80xbf16, #tpu.memory_space<vmem>>, %arg13: memref<160x80xbf16, #tpu.memory_space<vmem>>, %arg14: memref<40x40xbf16, #tpu.memory_space<vmem>>, %arg15: memref<5x80x120xbf16, #tpu.memory_space<vmem>>, %arg16: memref<1x120xf32, #tpu.memory_space<vmem>>, %arg17: memref<120x84xbf16, #tpu.memory_space<vmem>>, %arg18: memref<1x84xf32, #tpu.memory_space<vmem>>, %arg19: memref<84x128xbf16, #tpu.memory_space<vmem>>, %arg20: memref<1x128xf32, #tpu.memory_space<vmem>>, %arg21: memref<8x128xf32, #tpu.memory_space<vmem>>) attributes {dimension_semantics = [#tpu.dimension_semantics<parallel>], iteration_bounds = array<i64: 2>, scalar_prefetch = 0 : i64, scratch_operands = 0 : i64, tpu.core_type = #tpu.core_type<tc>, window_params = [{transform_indices = @transform_0, window_bounds = array<i64: 256, 96>}, {pipeline_mode = #tpu.pipeline_mode<synchronous>, transform_indices = @transform_1, window_bounds = array<i64: 5, 96, 168>}, {pipeline_mode = #tpu.pipeline_mode<synchronous>, transform_indices = @transform_2, window_bounds = array<i64: 1, 168>}, {pipeline_mode = #tpu.pipeline_mode<synchronous>, transform_indices = @transform_3, window_bounds = array<i64: 112, 252>}, {pipeline_mode = #tpu.pipeline_mode<synchronous>, transform_indices = @transform_4, window_bounds = array<i64: 112, 252>}, {pipeline_mode = #tpu.pipeline_mode<synchronous>, transform_indices = @transform_5, window_bounds = array<i64: 168, 84>}, {pipeline_mode = #tpu.pipeline_mode<synchronous>, transform_indices = @transform_6, window_bounds = array<i64: 168, 84>}, {pipeline_mode = #tpu.pipeline_mode<synchronous>, transform_indices = @transform_7, window_bounds = array<i64: 5, 84, 160>}, {pipeline_mode = #tpu.pipeline_mode<synchronous>, transform_indices = @transform_8, window_bounds = array<i64: 1, 160>}, {pipeline_mode = #tpu.pipeline_mode<synchronous>, transform_indices = @transform_9, window_bounds = array<i64: 40, 108>}, {pipeline_mode = #tpu.pipeline_mode<synchronous>, transform_indices = @transform_10, window_bounds = array<i64: 40, 108>}, {pipeline_mode = #tpu.pipeline_mode<synchronous>, transform_indices = @transform_11, window_bounds = array<i64: 160, 80>}, {pipeline_mode = #tpu.pipeline_mode<synchronous>, transform_indices = @transform_12, window_bounds = array<i64: 160, 80>}, {pipeline_mode = #tpu.pipeline_mode<synchronous>, transform_indices = @transform_13, window_bounds = array<i64: 40, 40>}, {pipeline_mode = #tpu.pipeline_mode<synchronous>, transform_indices = @transform_14, window_bounds = array<i64: 5, 80, 120>}, {pipeline_mode = #tpu.pipeline_mode<synchronous>, transform_indices = @transform_15, window_bounds = array<i64: 1, 120>}, {pipeline_mode = #tpu.pipeline_mode<synchronous>, transform_indices = @transform_16, window_bounds = array<i64: 120, 84>}, {pipeline_mode = #tpu.pipeline_mode<synchronous>, transform_indices = @transform_17, window_bounds = array<i64: 1, 84>}, {pipeline_mode = #tpu.pipeline_mode<synchronous>, transform_indices = @transform_18, window_bounds = array<i64: 84, 128>}, {pipeline_mode = #tpu.pipeline_mode<synchronous>, transform_indices = @transform_19, window_bounds = array<i64: 1, 128>}, {transform_indices = @transform_20, window_bounds = array<i64: 8, 128>}]} {
    %c0 = arith.constant 0 : index
    %c0_0 = arith.constant 0 : index
    %0 = vector.load %arg1[%c0, %c0_0] : memref<256x96xf32, #tpu.memory_space<vmem>>, vector<256x96xf32>
    %c0_1 = arith.constant 0 : index
    %c0_2 = arith.constant 0 : index
    %1 = vector.load %arg3[%c0_1, %c0_2] : memref<1x168xf32, #tpu.memory_space<vmem>>, vector<1x168xf32>
    %2 = vector.shape_cast %1 : vector<1x168xf32> to vector<1x168xf32>
    %3 = vector.broadcast %2 : vector<1x168xf32> to vector<252x168xf32>
    %4 = vector.extract_strided_slice %0 {offsets = [0, 0], sizes = [252, 96], strides = [1, 1]} : vector<256x96xf32> to vector<252x96xf32>
    %5 = arith.truncf %4 : vector<252x96xf32> to vector<252x96xbf16>
    %c0_3 = arith.constant 0 : index
    %c0_4 = arith.constant 0 : index
    %c0_5 = arith.constant 0 : index
    %6 = vector.load %arg2[%c0_3, %c0_4, %c0_5] : memref<5x96x168xbf16, #tpu.memory_space<vmem>>, vector<1x96x168xbf16>
    %7 = vector.shape_cast %6 : vector<1x96x168xbf16> to vector<96x168xbf16>
    %cst = arith.constant dense<0.000000e+00> : vector<252x168xf32>
    %8 = tpu.matmul %5, %7, %cst {dimension_numbers = #tpu.dot_dimension_numbers<[1], [0], [0], [1], [0, 0, 1, 1], [], []>} : vector<252x96xbf16>, vector<96x168xbf16>, vector<252x168xf32> -> vector<252x168xf32>
    %9 = arith.addf %3, %8 : vector<252x168xf32>
    %10 = vector.extract_strided_slice %0 {offsets = [1, 0], sizes = [252, 96], strides = [1, 1]} : vector<256x96xf32> to vector<252x96xf32>
    %11 = arith.truncf %10 : vector<252x96xf32> to vector<252x96xbf16>
    %c1 = arith.constant 1 : index
    %c0_6 = arith.constant 0 : index
    %c0_7 = arith.constant 0 : index
    %12 = vector.load %arg2[%c1, %c0_6, %c0_7] : memref<5x96x168xbf16, #tpu.memory_space<vmem>>, vector<1x96x168xbf16>
    %13 = vector.shape_cast %12 : vector<1x96x168xbf16> to vector<96x168xbf16>
    %cst_8 = arith.constant dense<0.000000e+00> : vector<252x168xf32>
    %14 = tpu.matmul %11, %13, %cst_8 {dimension_numbers = #tpu.dot_dimension_numbers<[1], [0], [0], [1], [0, 0, 1, 1], [], []>} : vector<252x96xbf16>, vector<96x168xbf16>, vector<252x168xf32> -> vector<252x168xf32>
    %15 = arith.addf %9, %14 : vector<252x168xf32>
    %16 = vector.extract_strided_slice %0 {offsets = [2, 0], sizes = [252, 96], strides = [1, 1]} : vector<256x96xf32> to vector<252x96xf32>
    %17 = arith.truncf %16 : vector<252x96xf32> to vector<252x96xbf16>
    %c2 = arith.constant 2 : index
    %c0_9 = arith.constant 0 : index
    %c0_10 = arith.constant 0 : index
    %18 = vector.load %arg2[%c2, %c0_9, %c0_10] : memref<5x96x168xbf16, #tpu.memory_space<vmem>>, vector<1x96x168xbf16>
    %19 = vector.shape_cast %18 : vector<1x96x168xbf16> to vector<96x168xbf16>
    %cst_11 = arith.constant dense<0.000000e+00> : vector<252x168xf32>
    %20 = tpu.matmul %17, %19, %cst_11 {dimension_numbers = #tpu.dot_dimension_numbers<[1], [0], [0], [1], [0, 0, 1, 1], [], []>} : vector<252x96xbf16>, vector<96x168xbf16>, vector<252x168xf32> -> vector<252x168xf32>
    %21 = arith.addf %15, %20 : vector<252x168xf32>
    %22 = vector.extract_strided_slice %0 {offsets = [3, 0], sizes = [252, 96], strides = [1, 1]} : vector<256x96xf32> to vector<252x96xf32>
    %23 = arith.truncf %22 : vector<252x96xf32> to vector<252x96xbf16>
    %c3 = arith.constant 3 : index
    %c0_12 = arith.constant 0 : index
    %c0_13 = arith.constant 0 : index
    %24 = vector.load %arg2[%c3, %c0_12, %c0_13] : memref<5x96x168xbf16, #tpu.memory_space<vmem>>, vector<1x96x168xbf16>
    %25 = vector.shape_cast %24 : vector<1x96x168xbf16> to vector<96x168xbf16>
    %cst_14 = arith.constant dense<0.000000e+00> : vector<252x168xf32>
    %26 = tpu.matmul %23, %25, %cst_14 {dimension_numbers = #tpu.dot_dimension_numbers<[1], [0], [0], [1], [0, 0, 1, 1], [], []>} : vector<252x96xbf16>, vector<96x168xbf16>, vector<252x168xf32> -> vector<252x168xf32>
    %27 = arith.addf %21, %26 : vector<252x168xf32>
    %28 = vector.extract_strided_slice %0 {offsets = [4, 0], sizes = [252, 96], strides = [1, 1]} : vector<256x96xf32> to vector<252x96xf32>
    %29 = arith.truncf %28 : vector<252x96xf32> to vector<252x96xbf16>
    %c4 = arith.constant 4 : index
    %c0_15 = arith.constant 0 : index
    %c0_16 = arith.constant 0 : index
    %30 = vector.load %arg2[%c4, %c0_15, %c0_16] : memref<5x96x168xbf16, #tpu.memory_space<vmem>>, vector<1x96x168xbf16>
    %31 = vector.shape_cast %30 : vector<1x96x168xbf16> to vector<96x168xbf16>
    %cst_17 = arith.constant dense<0.000000e+00> : vector<252x168xf32>
    %32 = tpu.matmul %29, %31, %cst_17 {dimension_numbers = #tpu.dot_dimension_numbers<[1], [0], [0], [1], [0, 0, 1, 1], [], []>} : vector<252x96xbf16>, vector<96x168xbf16>, vector<252x168xf32> -> vector<252x168xf32>
    %33 = arith.addf %27, %32 : vector<252x168xf32>
    %cst_18 = arith.constant 0.000000e+00 : f32
    %34 = vector.broadcast %cst_18 : f32 to vector<252x168xf32>
    %35 = arith.maximumf %33, %34 : vector<252x168xf32>
    %36 = arith.truncf %35 : vector<252x168xf32> to vector<252x168xbf16>
    %c0_19 = arith.constant 0 : index
    %c0_20 = arith.constant 0 : index
    %37 = vector.load %arg4[%c0_19, %c0_20] : memref<112x252xbf16, #tpu.memory_space<vmem>>, vector<112x252xbf16>
    %cst_21 = arith.constant dense<0.000000e+00> : vector<112x168xf32>
    %38 = tpu.matmul %37, %36, %cst_21 {dimension_numbers = #tpu.dot_dimension_numbers<[1], [0], [0], [1], [0, 0, 1, 1], [], []>} : vector<112x252xbf16>, vector<252x168xbf16>, vector<112x168xf32> -> vector<112x168xf32>
    %c0_22 = arith.constant 0 : index
    %c0_23 = arith.constant 0 : index
    %39 = vector.load %arg5[%c0_22, %c0_23] : memref<112x252xbf16, #tpu.memory_space<vmem>>, vector<112x252xbf16>
    %cst_24 = arith.constant dense<0.000000e+00> : vector<112x168xf32>
    %40 = tpu.matmul %39, %36, %cst_24 {dimension_numbers = #tpu.dot_dimension_numbers<[1], [0], [0], [1], [0, 0, 1, 1], [], []>} : vector<112x252xbf16>, vector<252x168xbf16>, vector<112x168xf32> -> vector<112x168xf32>
    %41 = arith.maximumf %38, %40 : vector<112x168xf32>
    %42 = arith.truncf %41 : vector<112x168xf32> to vector<112x168xbf16>
    %c0_25 = arith.constant 0 : index
    %c0_26 = arith.constant 0 : index
    %43 = vector.load %arg6[%c0_25, %c0_26] : memref<168x84xbf16, #tpu.memory_space<vmem>>, vector<168x84xbf16>
    %cst_27 = arith.constant dense<0.000000e+00> : vector<112x84xf32>
    %44 = tpu.matmul %42, %43, %cst_27 {dimension_numbers = #tpu.dot_dimension_numbers<[1], [0], [0], [1], [0, 0, 1, 1], [], []>} : vector<112x168xbf16>, vector<168x84xbf16>, vector<112x84xf32> -> vector<112x84xf32>
    %c0_28 = arith.constant 0 : index
    %c0_29 = arith.constant 0 : index
    %45 = vector.load %arg7[%c0_28, %c0_29] : memref<168x84xbf16, #tpu.memory_space<vmem>>, vector<168x84xbf16>
    %cst_30 = arith.constant dense<0.000000e+00> : vector<112x84xf32>
    %46 = tpu.matmul %42, %45, %cst_30 {dimension_numbers = #tpu.dot_dimension_numbers<[1], [0], [0], [1], [0, 0, 1, 1], [], []>} : vector<112x168xbf16>, vector<168x84xbf16>, vector<112x84xf32> -> vector<112x84xf32>
    %47 = arith.maximumf %44, %46 : vector<112x84xf32>
    %c0_31 = arith.constant 0 : index
    %c0_32 = arith.constant 0 : index
    %48 = vector.load %arg9[%c0_31, %c0_32] : memref<1x160xf32, #tpu.memory_space<vmem>>, vector<1x160xf32>
    %49 = vector.shape_cast %48 : vector<1x160xf32> to vector<1x160xf32>
    %50 = vector.broadcast %49 : vector<1x160xf32> to vector<108x160xf32>
    %51 = vector.extract_strided_slice %47 {offsets = [0, 0], sizes = [108, 84], strides = [1, 1]} : vector<112x84xf32> to vector<108x84xf32>
    %52 = arith.truncf %51 : vector<108x84xf32> to vector<108x84xbf16>
    %c0_33 = arith.constant 0 : index
    %c0_34 = arith.constant 0 : index
    %c0_35 = arith.constant 0 : index
    %53 = vector.load %arg8[%c0_33, %c0_34, %c0_35] : memref<5x84x160xbf16, #tpu.memory_space<vmem>>, vector<1x84x160xbf16>
    %54 = vector.shape_cast %53 : vector<1x84x160xbf16> to vector<84x160xbf16>
    %cst_36 = arith.constant dense<0.000000e+00> : vector<108x160xf32>
    %55 = tpu.matmul %52, %54, %cst_36 {dimension_numbers = #tpu.dot_dimension_numbers<[1], [0], [0], [1], [0, 0, 1, 1], [], []>} : vector<108x84xbf16>, vector<84x160xbf16>, vector<108x160xf32> -> vector<108x160xf32>
    %56 = arith.addf %50, %55 : vector<108x160xf32>
    %57 = vector.extract_strided_slice %47 {offsets = [1, 0], sizes = [108, 84], strides = [1, 1]} : vector<112x84xf32> to vector<108x84xf32>
    %58 = arith.truncf %57 : vector<108x84xf32> to vector<108x84xbf16>
    %c1_37 = arith.constant 1 : index
    %c0_38 = arith.constant 0 : index
    %c0_39 = arith.constant 0 : index
    %59 = vector.load %arg8[%c1_37, %c0_38, %c0_39] : memref<5x84x160xbf16, #tpu.memory_space<vmem>>, vector<1x84x160xbf16>
    %60 = vector.shape_cast %59 : vector<1x84x160xbf16> to vector<84x160xbf16>
    %cst_40 = arith.constant dense<0.000000e+00> : vector<108x160xf32>
    %61 = tpu.matmul %58, %60, %cst_40 {dimension_numbers = #tpu.dot_dimension_numbers<[1], [0], [0], [1], [0, 0, 1, 1], [], []>} : vector<108x84xbf16>, vector<84x160xbf16>, vector<108x160xf32> -> vector<108x160xf32>
    %62 = arith.addf %56, %61 : vector<108x160xf32>
    %63 = vector.extract_strided_slice %47 {offsets = [2, 0], sizes = [108, 84], strides = [1, 1]} : vector<112x84xf32> to vector<108x84xf32>
    %64 = arith.truncf %63 : vector<108x84xf32> to vector<108x84xbf16>
    %c2_41 = arith.constant 2 : index
    %c0_42 = arith.constant 0 : index
    %c0_43 = arith.constant 0 : index
    %65 = vector.load %arg8[%c2_41, %c0_42, %c0_43] : memref<5x84x160xbf16, #tpu.memory_space<vmem>>, vector<1x84x160xbf16>
    %66 = vector.shape_cast %65 : vector<1x84x160xbf16> to vector<84x160xbf16>
    %cst_44 = arith.constant dense<0.000000e+00> : vector<108x160xf32>
    %67 = tpu.matmul %64, %66, %cst_44 {dimension_numbers = #tpu.dot_dimension_numbers<[1], [0], [0], [1], [0, 0, 1, 1], [], []>} : vector<108x84xbf16>, vector<84x160xbf16>, vector<108x160xf32> -> vector<108x160xf32>
    %68 = arith.addf %62, %67 : vector<108x160xf32>
    %69 = vector.extract_strided_slice %47 {offsets = [3, 0], sizes = [108, 84], strides = [1, 1]} : vector<112x84xf32> to vector<108x84xf32>
    %70 = arith.truncf %69 : vector<108x84xf32> to vector<108x84xbf16>
    %c3_45 = arith.constant 3 : index
    %c0_46 = arith.constant 0 : index
    %c0_47 = arith.constant 0 : index
    %71 = vector.load %arg8[%c3_45, %c0_46, %c0_47] : memref<5x84x160xbf16, #tpu.memory_space<vmem>>, vector<1x84x160xbf16>
    %72 = vector.shape_cast %71 : vector<1x84x160xbf16> to vector<84x160xbf16>
    %cst_48 = arith.constant dense<0.000000e+00> : vector<108x160xf32>
    %73 = tpu.matmul %70, %72, %cst_48 {dimension_numbers = #tpu.dot_dimension_numbers<[1], [0], [0], [1], [0, 0, 1, 1], [], []>} : vector<108x84xbf16>, vector<84x160xbf16>, vector<108x160xf32> -> vector<108x160xf32>
    %74 = arith.addf %68, %73 : vector<108x160xf32>
    %75 = vector.extract_strided_slice %47 {offsets = [4, 0], sizes = [108, 84], strides = [1, 1]} : vector<112x84xf32> to vector<108x84xf32>
    %76 = arith.truncf %75 : vector<108x84xf32> to vector<108x84xbf16>
    %c4_49 = arith.constant 4 : index
    %c0_50 = arith.constant 0 : index
    %c0_51 = arith.constant 0 : index
    %77 = vector.load %arg8[%c4_49, %c0_50, %c0_51] : memref<5x84x160xbf16, #tpu.memory_space<vmem>>, vector<1x84x160xbf16>
    %78 = vector.shape_cast %77 : vector<1x84x160xbf16> to vector<84x160xbf16>
    %cst_52 = arith.constant dense<0.000000e+00> : vector<108x160xf32>
    %79 = tpu.matmul %76, %78, %cst_52 {dimension_numbers = #tpu.dot_dimension_numbers<[1], [0], [0], [1], [0, 0, 1, 1], [], []>} : vector<108x84xbf16>, vector<84x160xbf16>, vector<108x160xf32> -> vector<108x160xf32>
    %80 = arith.addf %74, %79 : vector<108x160xf32>
    %cst_53 = arith.constant 0.000000e+00 : f32
    %81 = vector.broadcast %cst_53 : f32 to vector<108x160xf32>
    %82 = arith.maximumf %80, %81 : vector<108x160xf32>
    %83 = arith.truncf %82 : vector<108x160xf32> to vector<108x160xbf16>
    %c0_54 = arith.constant 0 : index
    %c0_55 = arith.constant 0 : index
    %84 = vector.load %arg10[%c0_54, %c0_55] : memref<40x108xbf16, #tpu.memory_space<vmem>>, vector<40x108xbf16>
    %cst_56 = arith.constant dense<0.000000e+00> : vector<40x160xf32>
    %85 = tpu.matmul %84, %83, %cst_56 {dimension_numbers = #tpu.dot_dimension_numbers<[1], [0], [0], [1], [0, 0, 1, 1], [], []>} : vector<40x108xbf16>, vector<108x160xbf16>, vector<40x160xf32> -> vector<40x160xf32>
    %c0_57 = arith.constant 0 : index
    %c0_58 = arith.constant 0 : index
    %86 = vector.load %arg11[%c0_57, %c0_58] : memref<40x108xbf16, #tpu.memory_space<vmem>>, vector<40x108xbf16>
    %cst_59 = arith.constant dense<0.000000e+00> : vector<40x160xf32>
    %87 = tpu.matmul %86, %83, %cst_59 {dimension_numbers = #tpu.dot_dimension_numbers<[1], [0], [0], [1], [0, 0, 1, 1], [], []>} : vector<40x108xbf16>, vector<108x160xbf16>, vector<40x160xf32> -> vector<40x160xf32>
    %88 = arith.maximumf %85, %87 : vector<40x160xf32>
    %89 = arith.truncf %88 : vector<40x160xf32> to vector<40x160xbf16>
    %c0_60 = arith.constant 0 : index
    %c0_61 = arith.constant 0 : index
    %90 = vector.load %arg12[%c0_60, %c0_61] : memref<160x80xbf16, #tpu.memory_space<vmem>>, vector<160x80xbf16>
    %cst_62 = arith.constant dense<0.000000e+00> : vector<40x80xf32>
    %91 = tpu.matmul %89, %90, %cst_62 {dimension_numbers = #tpu.dot_dimension_numbers<[1], [0], [0], [1], [0, 0, 1, 1], [], []>} : vector<40x160xbf16>, vector<160x80xbf16>, vector<40x80xf32> -> vector<40x80xf32>
    %c0_63 = arith.constant 0 : index
    %c0_64 = arith.constant 0 : index
    %92 = vector.load %arg13[%c0_63, %c0_64] : memref<160x80xbf16, #tpu.memory_space<vmem>>, vector<160x80xbf16>
    %cst_65 = arith.constant dense<0.000000e+00> : vector<40x80xf32>
    %93 = tpu.matmul %89, %92, %cst_65 {dimension_numbers = #tpu.dot_dimension_numbers<[1], [0], [0], [1], [0, 0, 1, 1], [], []>} : vector<40x160xbf16>, vector<160x80xbf16>, vector<40x80xf32> -> vector<40x80xf32>
    %94 = arith.maximumf %91, %93 : vector<40x80xf32>
    %c0_66 = arith.constant 0 : index
    %c0_67 = arith.constant 0 : index
    %95 = vector.load %arg14[%c0_66, %c0_67] : memref<40x40xbf16, #tpu.memory_space<vmem>>, vector<40x40xbf16>
    %96 = arith.truncf %94 : vector<40x80xf32> to vector<40x80xbf16>
    %cst_68 = arith.constant dense<0.000000e+00> : vector<40x80xf32>
    %97 = tpu.matmul %95, %96, %cst_68 {dimension_numbers = #tpu.dot_dimension_numbers<[1], [0], [0], [1], [0, 0, 1, 1], [], []>} : vector<40x40xbf16>, vector<40x80xbf16>, vector<40x80xf32> -> vector<40x80xf32>
    %c0_69 = arith.constant 0 : index
    %c0_70 = arith.constant 0 : index
    %98 = vector.load %arg16[%c0_69, %c0_70] : memref<1x120xf32, #tpu.memory_space<vmem>>, vector<1x120xf32>
    %99 = vector.shape_cast %98 : vector<1x120xf32> to vector<1x120xf32>
    %100 = vector.broadcast %99 : vector<1x120xf32> to vector<8x120xf32>
    %101 = vector.extract_strided_slice %97 {offsets = [0, 0], sizes = [8, 80], strides = [1, 1]} : vector<40x80xf32> to vector<8x80xf32>
    %102 = arith.truncf %101 : vector<8x80xf32> to vector<8x80xbf16>
    %c0_71 = arith.constant 0 : index
    %c0_72 = arith.constant 0 : index
    %c0_73 = arith.constant 0 : index
    %103 = vector.load %arg15[%c0_71, %c0_72, %c0_73] : memref<5x80x120xbf16, #tpu.memory_space<vmem>>, vector<1x80x120xbf16>
    %104 = vector.shape_cast %103 : vector<1x80x120xbf16> to vector<80x120xbf16>
    %cst_74 = arith.constant dense<0.000000e+00> : vector<8x120xf32>
    %105 = tpu.matmul %102, %104, %cst_74 {dimension_numbers = #tpu.dot_dimension_numbers<[1], [0], [0], [1], [0, 0, 1, 1], [], []>} : vector<8x80xbf16>, vector<80x120xbf16>, vector<8x120xf32> -> vector<8x120xf32>
    %106 = arith.addf %100, %105 : vector<8x120xf32>
    %107 = vector.extract_strided_slice %97 {offsets = [8, 0], sizes = [8, 80], strides = [1, 1]} : vector<40x80xf32> to vector<8x80xf32>
    %108 = arith.truncf %107 : vector<8x80xf32> to vector<8x80xbf16>
    %c1_75 = arith.constant 1 : index
    %c0_76 = arith.constant 0 : index
    %c0_77 = arith.constant 0 : index
    %109 = vector.load %arg15[%c1_75, %c0_76, %c0_77] : memref<5x80x120xbf16, #tpu.memory_space<vmem>>, vector<1x80x120xbf16>
    %110 = vector.shape_cast %109 : vector<1x80x120xbf16> to vector<80x120xbf16>
    %cst_78 = arith.constant dense<0.000000e+00> : vector<8x120xf32>
    %111 = tpu.matmul %108, %110, %cst_78 {dimension_numbers = #tpu.dot_dimension_numbers<[1], [0], [0], [1], [0, 0, 1, 1], [], []>} : vector<8x80xbf16>, vector<80x120xbf16>, vector<8x120xf32> -> vector<8x120xf32>
    %112 = arith.addf %106, %111 : vector<8x120xf32>
    %113 = vector.extract_strided_slice %97 {offsets = [16, 0], sizes = [8, 80], strides = [1, 1]} : vector<40x80xf32> to vector<8x80xf32>
    %114 = arith.truncf %113 : vector<8x80xf32> to vector<8x80xbf16>
    %c2_79 = arith.constant 2 : index
    %c0_80 = arith.constant 0 : index
    %c0_81 = arith.constant 0 : index
    %115 = vector.load %arg15[%c2_79, %c0_80, %c0_81] : memref<5x80x120xbf16, #tpu.memory_space<vmem>>, vector<1x80x120xbf16>
    %116 = vector.shape_cast %115 : vector<1x80x120xbf16> to vector<80x120xbf16>
    %cst_82 = arith.constant dense<0.000000e+00> : vector<8x120xf32>
    %117 = tpu.matmul %114, %116, %cst_82 {dimension_numbers = #tpu.dot_dimension_numbers<[1], [0], [0], [1], [0, 0, 1, 1], [], []>} : vector<8x80xbf16>, vector<80x120xbf16>, vector<8x120xf32> -> vector<8x120xf32>
    %118 = arith.addf %112, %117 : vector<8x120xf32>
    %119 = vector.extract_strided_slice %97 {offsets = [24, 0], sizes = [8, 80], strides = [1, 1]} : vector<40x80xf32> to vector<8x80xf32>
    %120 = arith.truncf %119 : vector<8x80xf32> to vector<8x80xbf16>
    %c3_83 = arith.constant 3 : index
    %c0_84 = arith.constant 0 : index
    %c0_85 = arith.constant 0 : index
    %121 = vector.load %arg15[%c3_83, %c0_84, %c0_85] : memref<5x80x120xbf16, #tpu.memory_space<vmem>>, vector<1x80x120xbf16>
    %122 = vector.shape_cast %121 : vector<1x80x120xbf16> to vector<80x120xbf16>
    %cst_86 = arith.constant dense<0.000000e+00> : vector<8x120xf32>
    %123 = tpu.matmul %120, %122, %cst_86 {dimension_numbers = #tpu.dot_dimension_numbers<[1], [0], [0], [1], [0, 0, 1, 1], [], []>} : vector<8x80xbf16>, vector<80x120xbf16>, vector<8x120xf32> -> vector<8x120xf32>
    %124 = arith.addf %118, %123 : vector<8x120xf32>
    %125 = vector.extract_strided_slice %97 {offsets = [32, 0], sizes = [8, 80], strides = [1, 1]} : vector<40x80xf32> to vector<8x80xf32>
    %126 = arith.truncf %125 : vector<8x80xf32> to vector<8x80xbf16>
    %c4_87 = arith.constant 4 : index
    %c0_88 = arith.constant 0 : index
    %c0_89 = arith.constant 0 : index
    %127 = vector.load %arg15[%c4_87, %c0_88, %c0_89] : memref<5x80x120xbf16, #tpu.memory_space<vmem>>, vector<1x80x120xbf16>
    %128 = vector.shape_cast %127 : vector<1x80x120xbf16> to vector<80x120xbf16>
    %cst_90 = arith.constant dense<0.000000e+00> : vector<8x120xf32>
    %129 = tpu.matmul %126, %128, %cst_90 {dimension_numbers = #tpu.dot_dimension_numbers<[1], [0], [0], [1], [0, 0, 1, 1], [], []>} : vector<8x80xbf16>, vector<80x120xbf16>, vector<8x120xf32> -> vector<8x120xf32>
    %130 = arith.addf %124, %129 : vector<8x120xf32>
    %cst_91 = arith.constant 0.000000e+00 : f32
    %131 = vector.broadcast %cst_91 : f32 to vector<8x120xf32>
    %132 = arith.maximumf %130, %131 : vector<8x120xf32>
    %133 = arith.truncf %132 : vector<8x120xf32> to vector<8x120xbf16>
    %c0_92 = arith.constant 0 : index
    %c0_93 = arith.constant 0 : index
    %134 = vector.load %arg17[%c0_92, %c0_93] : memref<120x84xbf16, #tpu.memory_space<vmem>>, vector<120x84xbf16>
    %cst_94 = arith.constant dense<0.000000e+00> : vector<8x84xf32>
    %135 = tpu.matmul %133, %134, %cst_94 {dimension_numbers = #tpu.dot_dimension_numbers<[1], [0], [0], [1], [0, 0, 1, 1], [], []>} : vector<8x120xbf16>, vector<120x84xbf16>, vector<8x84xf32> -> vector<8x84xf32>
    %c0_95 = arith.constant 0 : index
    %c0_96 = arith.constant 0 : index
    %136 = vector.load %arg18[%c0_95, %c0_96] : memref<1x84xf32, #tpu.memory_space<vmem>>, vector<1x84xf32>
    %137 = vector.broadcast %136 : vector<1x84xf32> to vector<8x84xf32>
    %138 = arith.addf %135, %137 : vector<8x84xf32>
    %cst_97 = arith.constant 0.000000e+00 : f32
    %139 = vector.broadcast %cst_97 : f32 to vector<8x84xf32>
    %140 = arith.maximumf %138, %139 : vector<8x84xf32>
    %141 = arith.truncf %140 : vector<8x84xf32> to vector<8x84xbf16>
    %c0_98 = arith.constant 0 : index
    %c0_99 = arith.constant 0 : index
    %142 = vector.load %arg19[%c0_98, %c0_99] : memref<84x128xbf16, #tpu.memory_space<vmem>>, vector<84x128xbf16>
    %cst_100 = arith.constant dense<0.000000e+00> : vector<8x128xf32>
    %143 = tpu.matmul %141, %142, %cst_100 {dimension_numbers = #tpu.dot_dimension_numbers<[1], [0], [0], [1], [0, 0, 1, 1], [], []>} : vector<8x84xbf16>, vector<84x128xbf16>, vector<8x128xf32> -> vector<8x128xf32>
    %c0_101 = arith.constant 0 : index
    %c0_102 = arith.constant 0 : index
    %144 = vector.load %arg20[%c0_101, %c0_102] : memref<1x128xf32, #tpu.memory_space<vmem>>, vector<1x128xf32>
    %145 = vector.broadcast %144 : vector<1x128xf32> to vector<8x128xf32>
    %146 = arith.addf %143, %145 : vector<8x128xf32>
    %c0_103 = arith.constant 0 : index
    %c0_104 = arith.constant 0 : index
    %147 = vector.load %arg21[%c0_103, %c0_104] : memref<8x128xf32, #tpu.memory_space<vmem>>, vector<8x128xf32>
    tpu.vector_store %arg21[%c0_103, %c0_104], %146 {strides = array<i32>} : memref<8x128xf32, #tpu.memory_space<vmem>>, vector<8x128xf32>,
    return
  }
  func.func @transform_0(%arg0: i32) -> (i32, i32) {
    %c0_i32 = arith.constant 0 : i32
    %c0_i32_0 = arith.constant 0 : i32
    return %arg0, %c0_i32 : i32, i32
  }
  func.func @transform_1(%arg0: i32) -> (i32, i32, i32) {
    %c0_i32 = arith.constant 0 : i32
    %c0_i32_0 = arith.constant 0 : i32
    %c0_i32_1 = arith.constant 0 : i32
    %c0_i32_2 = arith.constant 0 : i32
    return %c0_i32, %c0_i32_0, %c0_i32_1 : i32, i32, i32
  }
  func.func @transform_2(%arg0: i32) -> (i32, i32) {
    %c0_i32 = arith.constant 0 : i32
    %c0_i32_0 = arith.constant 0 : i32
    %c0_i32_1 = arith.constant 0 : i32
    return %c0_i32, %c0_i32_0 : i32, i32
  }
  func.func @transform_3(%arg0: i32) -> (i32, i32) {
    %c0_i32 = arith.constant 0 : i32
    %c0_i32_0 = arith.constant 0 : i32
    %c0_i32_1 = arith.constant 0 : i32
    return %c0_i32, %c0_i32_0 : i32, i32
  }
  func.func @transform_4(%arg0: i32) -> (i32, i32) {
    %c0_i32 = arith.constant 0 : i32
    %c0_i32_0 = arith.constant 0 : i32
    %c0_i32_1 = arith.constant 0 : i32
    return %c0_i32, %c0_i32_0 : i32, i32
  }
  func.func @transform_5(%arg0: i32) -> (i32, i32) {
    %c0_i32 = arith.constant 0 : i32
    %c0_i32_0 = arith.constant 0 : i32
    %c0_i32_1 = arith.constant 0 : i32
    return %c0_i32, %c0_i32_0 : i32, i32
  }
  func.func @transform_6(%arg0: i32) -> (i32, i32) {
    %c0_i32 = arith.constant 0 : i32
    %c0_i32_0 = arith.constant 0 : i32
    %c0_i32_1 = arith.constant 0 : i32
    return %c0_i32, %c0_i32_0 : i32, i32
  }
  func.func @transform_7(%arg0: i32) -> (i32, i32, i32) {
    %c0_i32 = arith.constant 0 : i32
    %c0_i32_0 = arith.constant 0 : i32
    %c0_i32_1 = arith.constant 0 : i32
    %c0_i32_2 = arith.constant 0 : i32
    return %c0_i32, %c0_i32_0, %c0_i32_1 : i32, i32, i32
  }
  func.func @transform_8(%arg0: i32) -> (i32, i32) {
    %c0_i32 = arith.constant 0 : i32
    %c0_i32_0 = arith.constant 0 : i32
    %c0_i32_1 = arith.constant 0 : i32
    return %c0_i32, %c0_i32_0 : i32, i32
  }
  func.func @transform_9(%arg0: i32) -> (i32, i32) {
    %c0_i32 = arith.constant 0 : i32
    %c0_i32_0 = arith.constant 0 : i32
    %c0_i32_1 = arith.constant 0 : i32
    return %c0_i32, %c0_i32_0 : i32, i32
  }
  func.func @transform_10(%arg0: i32) -> (i32, i32) {
    %c0_i32 = arith.constant 0 : i32
    %c0_i32_0 = arith.constant 0 : i32
    %c0_i32_1 = arith.constant 0 : i32
    return %c0_i32, %c0_i32_0 : i32, i32
  }
  func.func @transform_11(%arg0: i32) -> (i32, i32) {
    %c0_i32 = arith.constant 0 : i32
    %c0_i32_0 = arith.constant 0 : i32
    %c0_i32_1 = arith.constant 0 : i32
    return %c0_i32, %c0_i32_0 : i32, i32
  }
  func.func @transform_12(%arg0: i32) -> (i32, i32) {
    %c0_i32 = arith.constant 0 : i32
    %c0_i32_0 = arith.constant 0 : i32
    %c0_i32_1 = arith.constant 0 : i32
    return %c0_i32, %c0_i32_0 : i32, i32
  }
  func.func @transform_13(%arg0: i32) -> (i32, i32) {
    %c0_i32 = arith.constant 0 : i32
    %c0_i32_0 = arith.constant 0 : i32
    %c0_i32_1 = arith.constant 0 : i32
    return %c0_i32, %c0_i32_0 : i32, i32
  }
  func.func @transform_14(%arg0: i32) -> (i32, i32, i32) {
    %c0_i32 = arith.constant 0 : i32
    %c0_i32_0 = arith.constant 0 : i32
    %c0_i32_1 = arith.constant 0 : i32
    %c0_i32_2 = arith.constant 0 : i32
    return %c0_i32, %c0_i32_0, %c0_i32_1 : i32, i32, i32
  }
  func.func @transform_15(%arg0: i32) -> (i32, i32) {
    %c0_i32 = arith.constant 0 : i32
    %c0_i32_0 = arith.constant 0 : i32
    %c0_i32_1 = arith.constant 0 : i32
    return %c0_i32, %c0_i32_0 : i32, i32
  }
  func.func @transform_16(%arg0: i32) -> (i32, i32) {
    %c0_i32 = arith.constant 0 : i32
    %c0_i32_0 = arith.constant 0 : i32
    %c0_i32_1 = arith.constant 0 : i32
    return %c0_i32, %c0_i32_0 : i32, i32
  }
  func.func @transform_17(%arg0: i32) -> (i32, i32) {
    %c0_i32 = arith.constant 0 : i32
    %c0_i32_0 = arith.constant 0 : i32
    %c0_i32_1 = arith.constant 0 : i32
    return %c0_i32, %c0_i32_0 : i32, i32
  }
  func.func @transform_18(%arg0: i32) -> (i32, i32) {
    %c0_i32 = arith.constant 0 : i32
    %c0_i32_0 = arith.constant 0 : i32
    %c0_i32_1 = arith.constant 0 : i32
    return %c0_i32, %c0_i32_0 : i32, i32
  }
  func.func @transform_19(%arg0: i32) -> (i32, i32) {
    %c0_i32 = arith.constant 0 : i32
    %c0_i32_0 = arith.constant 0 : i32
    %c0_i32_1 = arith.constant 0 : i32
    return %c0_i32, %c0_i32_0 : i32, i32
  }
  func.func @transform_20(%arg0: i32) -> (i32, i32) {
    %c0_i32 = arith.constant 0 : i32
    %c0_i32_0 = arith.constant 0 : i32
    return %arg0, %c0_i32 : i32, i32
  }
}

</mosaic_0001>

<llo_original>
// kernel: lenet5_forward.1
$region0: #{lenet5_forward.1}
  #allocation0 [shape = 'u32[]', space=smem, size = 0x4, offset = 0x4, fixed_abs, tag = 'smem constant byte address 0x4 - core index']
  #allocation1 [shape = 'u32[72,128]{1,0:T(1,128)}', space=vmem, size = 0x9000, scoped, tag = 'internal scratch']
  %s0 = inlined_call_operand.vmem [shape: f32[512,96], index: 0, kind: input, shape index: {}]
  %s1 = inlined_call_operand.vmem [shape: bf16[5,96,168], index: 1, kind: input, shape index: {}]
  %s2 = inlined_call_operand.vmem [shape: f32[1,168], index: 2, kind: input, shape index: {}]
  %s3 = inlined_call_operand.vmem [shape: bf16[112,252], index: 3, kind: input, shape index: {}]
  %s4 = inlined_call_operand.vmem [shape: bf16[112,252], index: 4, kind: input, shape index: {}]
  %s5 = inlined_call_operand.vmem [shape: bf16[168,84], index: 5, kind: input, shape index: {}]
  %s6 = inlined_call_operand.vmem [shape: bf16[168,84], index: 6, kind: input, shape index: {}]
  %s7 = inlined_call_operand.vmem [shape: bf16[5,84,160], index: 7, kind: input, shape index: {}]
  %s8 = inlined_call_operand.vmem [shape: f32[1,160], index: 8, kind: input, shape index: {}]
  %s9 = inlined_call_operand.vmem [shape: bf16[40,108], index: 9, kind: input, shape index: {}]
  %s10 = inlined_call_operand.vmem [shape: bf16[40,108], index: 10, kind: input, shape index: {}]
  %s11 = inlined_call_operand.vmem [shape: bf16[160,80], index: 11, kind: input, shape index: {}]
  %s12 = inlined_call_operand.vmem [shape: bf16[160,80], index: 12, kind: input, shape index: {}]
  %s13 = inlined_call_operand.vmem [shape: bf16[40,40], index: 13, kind: input, shape index: {}]
  %s14 = inlined_call_operand.vmem [shape: bf16[5,80,120], index: 14, kind: input, shape index: {}]
  %s15 = inlined_call_operand.vmem [shape: f32[1,120], index: 15, kind: input, shape index: {}]
  %s16 = inlined_call_operand.vmem [shape: bf16[120,84], index: 16, kind: input, shape index: {}]
  %s17 = inlined_call_operand.vmem [shape: f32[1,84], index: 17, kind: input, shape index: {}]
  %s18 = inlined_call_operand.vmem [shape: bf16[84,128], index: 18, kind: input, shape index: {}]
  %s19 = inlined_call_operand.vmem [shape: f32[1,128], index: 19, kind: input, shape index: {}]
  %s20 = inlined_call_operand.hbm [shape: f32[16,128], index: 20, kind: output, shape index: {}]
  %s21 = sld [smem:[#allocation0]]
  $region113: #{lenet5_forward.1} parent=0
    _
  %s23 = ssub.s32 1, %s21
  %s24 = scalar_select 0, %s23, %s21
  $region1: #{lenet5_forward.1} parent=0
    #allocation2 [shape = 'u8[8192]{0}', space=vmem, size = 0x2000, scoped, tag = 'output window, operand 0']
    #allocation3 [shape = 's32[2]{0}', space=sflag, size = 0x8, scoped, tag = 'scoped memory for lenet5_forward.1']
    %25 = vsyncpa [#allocation3], 0
    %s26 = scalar_lea.sflag [#allocation3], 1
    %27 = vsyncpa %s26, 0
    loop: start=0, step=1, limit=4
    $region2: #{lenet5_forward.1} parent=1 // loop_pre_header
      _
    $region3: #{lenet5_forward.1} parent=1 // loop_header
      %s29 = sphi 0, %s33
      %p30 = scmp.ge.s32.totalorder %s29, 4
      %s39 = sphi 0, %s41
      %s42 = sphi 0, %s39
      %s43 = sphi 0, %s42
      %s59 = sphi 0, %s43
      %s63 = sphi 0, %s63
      %s65 = sphi 0, %s63
      %s66 = sphi 0, %s65
      %s80 = sphi 0, %s66
      %s84 = sphi 0, %s84
      %s86 = sphi 0, %s84
      %s87 = sphi 0, %s86
      %s101 = sphi 0, %s87
      %s105 = sphi 0, %s105
      %s107 = sphi 0, %s105
      %s108 = sphi 0, %s107
      %s122 = sphi 0, %s108
      %s126 = sphi 0, %s126
      %s128 = sphi 0, %s126
      %s129 = sphi 0, %s128
      %s143 = sphi 0, %s129
      %s147 = sphi 0, %s147
      %s149 = sphi 0, %s147
      %s150 = sphi 0, %s149
      %s164 = sphi 0, %s150
      %s168 = sphi 0, %s168
      %s170 = sphi 0, %s168
      %s171 = sphi 0, %s170
      %s185 = sphi 0, %s171
      %s189 = sphi 0, %s189
      %s191 = sphi 0, %s189
      %s192 = sphi 0, %s191
      %s206 = sphi 0, %s192
      %s210 = sphi 0, %s210
      %s212 = sphi 0, %s210
      %s213 = sphi 0, %s212
      %s227 = sphi 0, %s213
      %s231 = sphi 0, %s231
      %s233 = sphi 0, %s231
      %s234 = sphi 0, %s233
      %s248 = sphi 0, %s234
      %s252 = sphi 0, %s252
      %s254 = sphi 0, %s252
      %s255 = sphi 0, %s254
      %s269 = sphi 0, %s255
      %s273 = sphi 0, %s273
      %s275 = sphi 0, %s273
      %s276 = sphi 0, %s275
      %s290 = sphi 0, %s276
      %s294 = sphi 0, %s294
      %s296 = sphi 0, %s294
      %s297 = sphi 0, %s296
      %s311 = sphi 0, %s297
      %s315 = sphi 0, %s315
      %s317 = sphi 0, %s315
      %s318 = sphi 0, %s317
      %s332 = sphi 0, %s318
      %s336 = sphi 0, %s336
      %s338 = sphi 0, %s336
      %s339 = sphi 0, %s338
      %s353 = sphi 0, %s339
      %s357 = sphi 0, %s357
      %s359 = sphi 0, %s357
      %s360 = sphi 0, %s359
      %s374 = sphi 0, %s360
      %s378 = sphi 0, %s378
      %s380 = sphi 0, %s378
      %s381 = sphi 0, %s380
      %s395 = sphi 0, %s381
      %s399 = sphi 0, %s399
      %s401 = sphi 0, %s399
      %s402 = sphi 0, %s401
      %s416 = sphi 0, %s402
      %s420 = sphi 0, %s420
      %s422 = sphi 0, %s420
      %s423 = sphi 0, %s422
      %s437 = sphi 0, %s423
      %s441 = sphi 0, %s441
      %s443 = sphi 0, %s441
      %s444 = sphi 0, %s443
      %s458 = sphi 0, %s444
      %s464 = sphi 0, %s466
      %s467 = sphi 0, %s464
      %s468 = sphi 0, %s467
      %s484 = sphi 0, %s468
    $region4: #{lenet5_forward.1} parent=1 // loop_header_branch
      %32 = sbr.rel (%p30) target = $region8
    $region5: #{lenet5_forward.1} parent=1 // loop_body
      %s34 = ssub.s32 %s29, 1
      %s35 = ssub.s32 %s29, 2
      %s36 = sadd.s32 %s29, 1
      %s37 = ssub.s32 %s29, %s36
      %p38 = scmp.eq.s32.totalorder %s37, 0
      %s40 = sadd.s32 %s39, 1
      %s41 = scalar_select %p38, %s39, %s40
      %p44 = pneg %p38
      %p45 = scmp.eq.s32.totalorder %s29, 1
      %p46 = por %p44, %p45
      %p47 = scmp.ne.s32.totalorder %s39, %s42
      %p48 = scmp.eq.s32.totalorder %s29, 0
      %p49 = por %p47, %p48
      %p50 = scmp.ne.s32.totalorder %s39, %s42
      %p51 = scmp.eq.s32.totalorder %s34, 1
      %p52 = por %p50, %p51
      %p53 = scmp.ne.s32.totalorder %s42, %s43
      %p54 = scmp.eq.s32.totalorder %s34, 0
      %p55 = por %p53, %p54
      %p56 = scmp.ne.s32.totalorder %s42, %s43
      %p57 = scmp.eq.s32.totalorder %s35, 1
      %p58 = por %p56, %p57
      %p60 = scmp.ne.s32.totalorder %s43, %s59
      %p61 = scmp.eq.s32.totalorder %s35, 0
      %p62 = por %p60, %p61
      %s64 = sadd.s32 %s63, 1
      %p67 = scmp.eq.s32.totalorder %s29, 1
      %p68 = scmp.ne.s32.totalorder %s63, %s65
      %p69 = scmp.eq.s32.totalorder %s29, 0
      %p70 = por %p68, %p69
      %p71 = scmp.ne.s32.totalorder %s63, %s65
      %p72 = scmp.eq.s32.totalorder %s34, 1
      %p73 = por %p71, %p72
      %p74 = scmp.ne.s32.totalorder %s65, %s66
      %p75 = scmp.eq.s32.totalorder %s34, 0
      %p76 = por %p74, %p75
      %p77 = scmp.ne.s32.totalorder %s65, %s66
      %p78 = scmp.eq.s32.totalorder %s35, 1
      %p79 = por %p77, %p78
      %p81 = scmp.ne.s32.totalorder %s66, %s80
      %p82 = scmp.eq.s32.totalorder %s35, 0
      %p83 = por %p81, %p82
      %s85 = sadd.s32 %s84, 1
      %p88 = scmp.eq.s32.totalorder %s29, 1
      %p89 = scmp.ne.s32.totalorder %s84, %s86
      %p90 = scmp.eq.s32.totalorder %s29, 0
      %p91 = por %p89, %p90
      %p92 = scmp.ne.s32.totalorder %s84, %s86
      %p93 = scmp.eq.s32.totalorder %s34, 1
      %p94 = por %p92, %p93
      %p95 = scmp.ne.s32.totalorder %s86, %s87
      %p96 = scmp.eq.s32.totalorder %s34, 0
      %p97 = por %p95, %p96
      %p98 = scmp.ne.s32.totalorder %s86, %s87
      %p99 = scmp.eq.s32.totalorder %s35, 1
      %p100 = por %p98, %p99
      %p102 = scmp.ne.s32.totalorder %s87, %s101
      %p103 = scmp.eq.s32.totalorder %s35, 0
      %p104 = por %p102, %p103
      %s106 = sadd.s32 %s105, 1
      %p109 = scmp.eq.s32.totalorder %s29, 1
      %p110 = scmp.ne.s32.totalorder %s105, %s107
      %p111 = scmp.eq.s32.totalorder %s29, 0
      %p112 = por %p110, %p111
      %p113 = scmp.ne.s32.totalorder %s105, %s107
      %p114 = scmp.eq.s32.totalorder %s34, 1
      %p115 = por %p113, %p114
      %p116 = scmp.ne.s32.totalorder %s107, %s108
      %p117 = scmp.eq.s32.totalorder %s34, 0
      %p118 = por %p116, %p117
      %p119 = scmp.ne.s32.totalorder %s107, %s108
      %p120 = scmp.eq.s32.totalorder %s35, 1
      %p121 = por %p119, %p120
      %p123 = scmp.ne.s32.totalorder %s108, %s122
      %p124 = scmp.eq.s32.totalorder %s35, 0
      %p125 = por %p123, %p124
      %s127 = sadd.s32 %s126, 1
      %p130 = scmp.eq.s32.totalorder %s29, 1
      %p131 = scmp.ne.s32.totalorder %s126, %s128
      %p132 = scmp.eq.s32.totalorder %s29, 0
      %p133 = por %p131, %p132
      %p134 = scmp.ne.s32.totalorder %s126, %s128
      %p135 = scmp.eq.s32.totalorder %s34, 1
      %p136 = por %p134, %p135
      %p137 = scmp.ne.s32.totalorder %s128, %s129
      %p138 = scmp.eq.s32.totalorder %s34, 0
      %p139 = por %p137, %p138
      %p140 = scmp.ne.s32.totalorder %s128, %s129
      %p141 = scmp.eq.s32.totalorder %s35, 1
      %p142 = por %p140, %p141
      %p144 = scmp.ne.s32.totalorder %s129, %s143
      %p145 = scmp.eq.s32.totalorder %s35, 0
      %p146 = por %p144, %p145
      %s148 = sadd.s32 %s147, 1
      %p151 = scmp.eq.s32.totalorder %s29, 1
      %p152 = scmp.ne.s32.totalorder %s147, %s149
      %p153 = scmp.eq.s32.totalorder %s29, 0
      %p154 = por %p152, %p153
      %p155 = scmp.ne.s32.totalorder %s147, %s149
      %p156 = scmp.eq.s32.totalorder %s34, 1
      %p157 = por %p155, %p156
      %p158 = scmp.ne.s32.totalorder %s149, %s150
      %p159 = scmp.eq.s32.totalorder %s34, 0
      %p160 = por %p158, %p159
      %p161 = scmp.ne.s32.totalorder %s149, %s150
      %p162 = scmp.eq.s32.totalorder %s35, 1
      %p163 = por %p161, %p162
      %p165 = scmp.ne.s32.totalorder %s150, %s164
      %p166 = scmp.eq.s32.totalorder %s35, 0
      %p167 = por %p165, %p166
      %s169 = sadd.s32 %s168, 1
      %p172 = scmp.eq.s32.totalorder %s29, 1
      %p173 = scmp.ne.s32.totalorder %s168, %s170
      %p174 = scmp.eq.s32.totalorder %s29, 0
      %p175 = por %p173, %p174
      %p176 = scmp.ne.s32.totalorder %s168, %s170
      %p177 = scmp.eq.s32.totalorder %s34, 1
      %p178 = por %p176, %p177
      %p179 = scmp.ne.s32.totalorder %s170, %s171
      %p180 = scmp.eq.s32.totalorder %s34, 0
      %p181 = por %p179, %p180
      %p182 = scmp.ne.s32.totalorder %s170, %s171
      %p183 = scmp.eq.s32.totalorder %s35, 1
      %p184 = por %p182, %p183
      %p186 = scmp.ne.s32.totalorder %s171, %s185
      %p187 = scmp.eq.s32.totalorder %s35, 0
      %p188 = por %p186, %p187
      %s190 = sadd.s32 %s189, 1
      %p193 = scmp.eq.s32.totalorder %s29, 1
      %p194 = scmp.ne.s32.totalorder %s189, %s191
      %p195 = scmp.eq.s32.totalorder %s29, 0
      %p196 = por %p194, %p195
      %p197 = scmp.ne.s32.totalorder %s189, %s191
      %p198 = scmp.eq.s32.totalorder %s34, 1
      %p199 = por %p197, %p198
      %p200 = scmp.ne.s32.totalorder %s191, %s192
      %p201 = scmp.eq.s32.totalorder %s34, 0
      %p202 = por %p200, %p201
      %p203 = scmp.ne.s32.totalorder %s191, %s192
      %p204 = scmp.eq.s32.totalorder %s35, 1
      %p205 = por %p203, %p204
      %p207 = scmp.ne.s32.totalorder %s192, %s206
      %p208 = scmp.eq.s32.totalorder %s35, 0
      %p209 = por %p207, %p208
      %s211 = sadd.s32 %s210, 1
      %p214 = scmp.eq.s32.totalorder %s29, 1
      %p215 = scmp.ne.s32.totalorder %s210, %s212
      %p216 = scmp.eq.s32.totalorder %s29, 0
      %p217 = por %p215, %p216
      %p218 = scmp.ne.s32.totalorder %s210, %s212
      %p219 = scmp.eq.s32.totalorder %s34, 1
      %p220 = por %p218, %p219
      %p221 = scmp.ne.s32.totalorder %s212, %s213
      %p222 = scmp.eq.s32.totalorder %s34, 0
      %p223 = por %p221, %p222
      %p224 = scmp.ne.s32.totalorder %s212, %s213
      %p225 = scmp.eq.s32.totalorder %s35, 1
      %p226 = por %p224, %p225
      %p228 = scmp.ne.s32.totalorder %s213, %s227
      %p229 = scmp.eq.s32.totalorder %s35, 0
      %p230 = por %p228, %p229
      %s232 = sadd.s32 %s231, 1
      %p235 = scmp.eq.s32.totalorder %s29, 1
      %p236 = scmp.ne.s32.totalorder %s231, %s233
      %p237 = scmp.eq.s32.totalorder %s29, 0
      %p238 = por %p236, %p237
      %p239 = scmp.ne.s32.totalorder %s231, %s233
      %p240 = scmp.eq.s32.totalorder %s34, 1
      %p241 = por %p239, %p240
      %p242 = scmp.ne.s32.totalorder %s233, %s234
      %p243 = scmp.eq.s32.totalorder %s34, 0
      %p244 = por %p242, %p243
      %p245 = scmp.ne.s32.totalorder %s233, %s234
      %p246 = scmp.eq.s32.totalorder %s35, 1
      %p247 = por %p245, %p246
      %p249 = scmp.ne.s32.totalorder %s234, %s248
      %p250 = scmp.eq.s32.totalorder %s35, 0
      %p251 = por %p249, %p250
      %s253 = sadd.s32 %s252, 1
      %p256 = scmp.eq.s32.totalorder %s29, 1
      %p257 = scmp.ne.s32.totalorder %s252, %s254
      %p258 = scmp.eq.s32.totalorder %s29, 0
      %p259 = por %p257, %p258
      %p260 = scmp.ne.s32.totalorder %s252, %s254
      %p261 = scmp.eq.s32.totalorder %s34, 1
      %p262 = por %p260, %p261
      %p263 = scmp.ne.s32.totalorder %s254, %s255
      %p264 = scmp.eq.s32.totalorder %s34, 0
      %p265 = por %p263, %p264
      %p266 = scmp.ne.s32.totalorder %s254, %s255
      %p267 = scmp.eq.s32.totalorder %s35, 1
      %p268 = por %p266, %p267
      %p270 = scmp.ne.s32.totalorder %s255, %s269
      %p271 = scmp.eq.s32.totalorder %s35, 0
      %p272 = por %p270, %p271
      %s274 = sadd.s32 %s273, 1
      %p277 = scmp.eq.s32.totalorder %s29, 1
      %p278 = scmp.ne.s32.totalorder %s273, %s275
      %p279 = scmp.eq.s32.totalorder %s29, 0
      %p280 = por %p278, %p279
      %p281 = scmp.ne.s32.totalorder %s273, %s275
      %p282 = scmp.eq.s32.totalorder %s34, 1
      %p283 = por %p281, %p282
      %p284 = scmp.ne.s32.totalorder %s275, %s276
      %p285 = scmp.eq.s32.totalorder %s34, 0
      %p286 = por %p284, %p285
      %p287 = scmp.ne.s32.totalorder %s275, %s276
      %p288 = scmp.eq.s32.totalorder %s35, 1
      %p289 = por %p287, %p288
      %p291 = scmp.ne.s32.totalorder %s276, %s290
      %p292 = scmp.eq.s32.totalorder %s35, 0
      %p293 = por %p291, %p292
      %s295 = sadd.s32 %s294, 1
      %p298 = scmp.eq.s32.totalorder %s29, 1
      %p299 = scmp.ne.s32.totalorder %s294, %s296
      %p300 = scmp.eq.s32.totalorder %s29, 0
      %p301 = por %p299, %p300
      %p302 = scmp.ne.s32.totalorder %s294, %s296
      %p303 = scmp.eq.s32.totalorder %s34, 1
      %p304 = por %p302, %p303
      %p305 = scmp.ne.s32.totalorder %s296, %s297
      %p306 = scmp.eq.s32.totalorder %s34, 0
      %p307 = por %p305, %p306
      %p308 = scmp.ne.s32.totalorder %s296, %s297
      %p309 = scmp.eq.s32.totalorder %s35, 1
      %p310 = por %p308, %p309
      %p312 = scmp.ne.s32.totalorder %s297, %s311
      %p313 = scmp.eq.s32.totalorder %s35, 0
      %p314 = por %p312, %p313
      %s316 = sadd.s32 %s315, 1
      %p319 = scmp.eq.s32.totalorder %s29, 1
      %p320 = scmp.ne.s32.totalorder %s315, %s317
      %p321 = scmp.eq.s32.totalorder %s29, 0
      %p322 = por %p320, %p321
      %p323 = scmp.ne.s32.totalorder %s315, %s317
      %p324 = scmp.eq.s32.totalorder %s34, 1
      %p325 = por %p323, %p324
      %p326 = scmp.ne.s32.totalorder %s317, %s318
      %p327 = scmp.eq.s32.totalorder %s34, 0
      %p328 = por %p326, %p327
      %p329 = scmp.ne.s32.totalorder %s317, %s318
      %p330 = scmp.eq.s32.totalorder %s35, 1
      %p331 = por %p329, %p330
      %p333 = scmp.ne.s32.totalorder %s318, %s332
      %p334 = scmp.eq.s32.totalorder %s35, 0
      %p335 = por %p333, %p334
      %s337 = sadd.s32 %s336, 1
      %p340 = scmp.eq.s32.totalorder %s29, 1
      %p341 = scmp.ne.s32.totalorder %s336, %s338
      %p342 = scmp.eq.s32.totalorder %s29, 0
      %p343 = por %p341, %p342
      %p344 = scmp.ne.s32.totalorder %s336, %s338
      %p345 = scmp.eq.s32.totalorder %s34, 1
      %p346 = por %p344, %p345
      %p347 = scmp.ne.s32.totalorder %s338, %s339
      %p348 = scmp.eq.s32.totalorder %s34, 0
      %p349 = por %p347, %p348
      %p350 = scmp.ne.s32.totalorder %s338, %s339
      %p351 = scmp.eq.s32.totalorder %s35, 1
      %p352 = por %p350, %p351
      %p354 = scmp.ne.s32.totalorder %s339, %s353
      %p355 = scmp.eq.s32.totalorder %s35, 0
      %p356 = por %p354, %p355
      %s358 = sadd.s32 %s357, 1
      %p361 = scmp.eq.s32.totalorder %s29, 1
      %p362 = scmp.ne.s32.totalorder %s357, %s359
      %p363 = scmp.eq.s32.totalorder %s29, 0
      %p364 = por %p362, %p363
      %p365 = scmp.ne.s32.totalorder %s357, %s359
      %p366 = scmp.eq.s32.totalorder %s34, 1
      %p367 = por %p365, %p366
      %p368 = scmp.ne.s32.totalorder %s359, %s360
      %p369 = scmp.eq.s32.totalorder %s34, 0
      %p370 = por %p368, %p369
      %p371 = scmp.ne.s32.totalorder %s359, %s360
      %p372 = scmp.eq.s32.totalorder %s35, 1
      %p373 = por %p371, %p372
      %p375 = scmp.ne.s32.totalorder %s360, %s374
      %p376 = scmp.eq.s32.totalorder %s35, 0
      %p377 = por %p375, %p376
      %s379 = sadd.s32 %s378, 1
      %p382 = scmp.eq.s32.totalorder %s29, 1
      %p383 = scmp.ne.s32.totalorder %s378, %s380
      %p384 = scmp.eq.s32.totalorder %s29, 0
      %p385 = por %p383, %p384
      %p386 = scmp.ne.s32.totalorder %s378, %s380
      %p387 = scmp.eq.s32.totalorder %s34, 1
      %p388 = por %p386, %p387
      %p389 = scmp.ne.s32.totalorder %s380, %s381
      %p390 = scmp.eq.s32.totalorder %s34, 0
      %p391 = por %p389, %p390
      %p392 = scmp.ne.s32.totalorder %s380, %s381
      %p393 = scmp.eq.s32.totalorder %s35, 1
      %p394 = por %p392, %p393
      %p396 = scmp.ne.s32.totalorder %s381, %s395
      %p397 = scmp.eq.s32.totalorder %s35, 0
      %p398 = por %p396, %p397
      %s400 = sadd.s32 %s399, 1
      %p403 = scmp.eq.s32.totalorder %s29, 1
      %p404 = scmp.ne.s32.totalorder %s399, %s401
      %p405 = scmp.eq.s32.totalorder %s29, 0
      %p406 = por %p404, %p405
      %p407 = scmp.ne.s32.totalorder %s399, %s401
      %p408 = scmp.eq.s32.totalorder %s34, 1
      %p409 = por %p407, %p408
      %p410 = scmp.ne.s32.totalorder %s401, %s402
      %p411 = scmp.eq.s32.totalorder %s34, 0
      %p412 = por %p410, %p411
      %p413 = scmp.ne.s32.totalorder %s401, %s402
      %p414 = scmp.eq.s32.totalorder %s35, 1
      %p415 = por %p413, %p414
      %p417 = scmp.ne.s32.totalorder %s402, %s416
      %p418 = scmp.eq.s32.totalorder %s35, 0
      %p419 = por %p417, %p418
      %s421 = sadd.s32 %s420, 1
      %p424 = scmp.eq.s32.totalorder %s29, 1
      %p425 = scmp.ne.s32.totalorder %s420, %s422
      %p426 = scmp.eq.s32.totalorder %s29, 0
      %p427 = por %p425, %p426
      %p428 = scmp.ne.s32.totalorder %s420, %s422
      %p429 = scmp.eq.s32.totalorder %s34, 1
      %p430 = por %p428, %p429
      %p431 = scmp.ne.s32.totalorder %s422, %s423
      %p432 = scmp.eq.s32.totalorder %s34, 0
      %p433 = por %p431, %p432
      %p434 = scmp.ne.s32.totalorder %s422, %s423
      %p435 = scmp.eq.s32.totalorder %s35, 1
      %p436 = por %p434, %p435
      %p438 = scmp.ne.s32.totalorder %s423, %s437
      %p439 = scmp.eq.s32.totalorder %s35, 0
      %p440 = por %p438, %p439
      %s442 = sadd.s32 %s441, 1
      %p445 = scmp.eq.s32.totalorder %s29, 1
      %p446 = scmp.ne.s32.totalorder %s441, %s443
      %p447 = scmp.eq.s32.totalorder %s29, 0
      %p448 = por %p446, %p447
      %p449 = scmp.ne.s32.totalorder %s441, %s443
      %p450 = scmp.eq.s32.totalorder %s34, 1
      %p451 = por %p449, %p450
      %p452 = scmp.ne.s32.totalorder %s443, %s444
      %p453 = scmp.eq.s32.totalorder %s34, 0
      %p454 = por %p452, %p453
      %p455 = scmp.ne.s32.totalorder %s443, %s444
      %p456 = scmp.eq.s32.totalorder %s35, 1
      %p457 = por %p455, %p456
      %p459 = scmp.ne.s32.totalorder %s444, %s458
      %p460 = scmp.eq.s32.totalorder %s35, 0
      %p461 = por %p459, %p460
      %s462 = ssub.s32 %s29, %s36
      %p463 = scmp.eq.s32.totalorder %s462, 0
      %s465 = sadd.s32 %s464, 1
      %s466 = scalar_select %p463, %s464, %s465
      %p469 = pneg %p463
      %p470 = scmp.eq.s32.totalorder %s29, 1
      %p471 = por %p469, %p470
      %p472 = scmp.ne.s32.totalorder %s464, %s467
      %p473 = scmp.eq.s32.totalorder %s29, 0
      %p474 = por %p472, %p473
      %p475 = scmp.ne.s32.totalorder %s464, %s467
      %p476 = scmp.eq.s32.totalorder %s34, 1
      %p477 = por %p475, %p476
      %p478 = scmp.ne.s32.totalorder %s467, %s468
      %p479 = scmp.eq.s32.totalorder %s34, 0
      %p480 = por %p478, %p479
      %p481 = scmp.ne.s32.totalorder %s467, %s468
      %p482 = scmp.eq.s32.totalorder %s35, 1
      %p483 = por %p481, %p482
      %p485 = scmp.ne.s32.totalorder %s468, %s484
      %p486 = scmp.eq.s32.totalorder %s35, 0
      %p487 = por %p485, %p486
      %p488 = scmp.le.s32.totalorder 1, %s29
      %p489 = scmp.lt.s32.totalorder %s29, 3
      %p490 = pnand %p488, %p489
      %p491 = pneg %p490
      // Predicated region
      $region9: #{lenet5_forward.1} parent=5 // pred_check
        _
      $region10: #{lenet5_forward.1} parent=5 // pred_check_branch
        %493 = sbr.rel (%p490) target = $region12
      $region11: #{lenet5_forward.1} parent=5 // pred_region
        %s494 = ssub.s32 %s29, 1
        // Predicated region
        $region13: #{lenet5_forward.1} parent=11 // pred_check
          %p495 = pneg %p76
        $region14: #{lenet5_forward.1} parent=11 // pred_check_branch
          %497 = sbr.rel (%p495) target = $region16
        $region15: #{lenet5_forward.1} parent=11 // pred_region
          _
        $region16: #{lenet5_forward.1} parent=11 // pred_fallthru
          _
        // Predicated region
        $region17: #{lenet5_forward.1} parent=11 // pred_check
          %p498 = pneg %p97
        $region18: #{lenet5_forward.1} parent=11 // pred_check_branch
          %500 = sbr.rel (%p498) target = $region20
        $region19: #{lenet5_forward.1} parent=11 // pred_region
          _
        $region20: #{lenet5_forward.1} parent=11 // pred_fallthru
          _
        // Predicated region
        $region21: #{lenet5_forward.1} parent=11 // pred_check
          %p501 = pneg %p118
        $region22: #{lenet5_forward.1} parent=11 // pred_check_branch
          %503 = sbr.rel (%p501) target = $region24
        $region23: #{lenet5_forward.1} parent=11 // pred_region
          _
        $region24: #{lenet5_forward.1} parent=11 // pred_fallthru
          _
        // Predicated region
        $region25: #{lenet5_forward.1} parent=11 // pred_check
          %p504 = pneg %p139
        $region26: #{lenet5_forward.1} parent=11 // pred_check_branch
          %506 = sbr.rel (%p504) target = $region28
        $region27: #{lenet5_forward.1} parent=11 // pred_region
          _
        $region28: #{lenet5_forward.1} parent=11 // pred_fallthru
          _
        // Predicated region
        $region29: #{lenet5_forward.1} parent=11 // pred_check
          %p507 = pneg %p160
        $region30: #{lenet5_forward.1} parent=11 // pred_check_branch
          %509 = sbr.rel (%p507) target = $region32
        $region31: #{lenet5_forward.1} parent=11 // pred_region
          _
        $region32: #{lenet5_forward.1} parent=11 // pred_fallthru
          _
        // Predicated region
        $region33: #{lenet5_forward.1} parent=11 // pred_check
          %p510 = pneg %p181
        $region34: #{lenet5_forward.1} parent=11 // pred_check_branch
          %512 = sbr.rel (%p510) target = $region36
        $region35: #{lenet5_forward.1} parent=11 // pred_region
          _
        $region36: #{lenet5_forward.1} parent=11 // pred_fallthru
          _
        // Predicated region
        $region37: #{lenet5_forward.1} parent=11 // pred_check
          %p513 = pneg %p202
        $region38: #{lenet5_forward.1} parent=11 // pred_check_branch
          %515 = sbr.rel (%p513) target = $region40
        $region39: #{lenet5_forward.1} parent=11 // pred_region
          _
        $region40: #{lenet5_forward.1} parent=11 // pred_fallthru
          _
        // Predicated region
        $region41: #{lenet5_forward.1} parent=11 // pred_check
          %p516 = pneg %p223
        $region42: #{lenet5_forward.1} parent=11 // pred_check_branch
          %518 = sbr.rel (%p516) target = $region44
        $region43: #{lenet5_forward.1} parent=11 // pred_region
          _
        $region44: #{lenet5_forward.1} parent=11 // pred_fallthru
          _
        // Predicated region
        $region45: #{lenet5_forward.1} parent=11 // pred_check
          %p519 = pneg %p244
        $region46: #{lenet5_forward.1} parent=11 // pred_check_branch
          %521 = sbr.rel (%p519) target = $region48
        $region47: #{lenet5_forward.1} parent=11 // pred_region
          _
        $region48: #{lenet5_forward.1} parent=11 // pred_fallthru
          _
        // Predicated region
        $region49: #{lenet5_forward.1} parent=11 // pred_check
          %p522 = pneg %p265
        $region50: #{lenet5_forward.1} parent=11 // pred_check_branch
          %524 = sbr.rel (%p522) target = $region52
        $region51: #{lenet5_forward.1} parent=11 // pred_region
          _
        $region52: #{lenet5_forward.1} parent=11 // pred_fallthru
          _
        // Predicated region
        $region53: #{lenet5_forward.1} parent=11 // pred_check
          %p525 = pneg %p286
        $region54: #{lenet5_forward.1} parent=11 // pred_check_branch
          %527 = sbr.rel (%p525) target = $region56
        $region55: #{lenet5_forward.1} parent=11 // pred_region
          _
        $region56: #{lenet5_forward.1} parent=11 // pred_fallthru
          _
        // Predicated region
        $region57: #{lenet5_forward.1} parent=11 // pred_check
          %p528 = pneg %p307
        $region58: #{lenet5_forward.1} parent=11 // pred_check_branch
          %530 = sbr.rel (%p528) target = $region60
        $region59: #{lenet5_forward.1} parent=11 // pred_region
          _
        $region60: #{lenet5_forward.1} parent=11 // pred_fallthru
          _
        // Predicated region
        $region61: #{lenet5_forward.1} parent=11 // pred_check
          %p531 = pneg %p328
        $region62: #{lenet5_forward.1} parent=11 // pred_check_branch
          %533 = sbr.rel (%p531) target = $region64
        $region63: #{lenet5_forward.1} parent=11 // pred_region
          _
        $region64: #{lenet5_forward.1} parent=11 // pred_fallthru
          _
        // Predicated region
        $region65: #{lenet5_forward.1} parent=11 // pred_check
          %p534 = pneg %p349
        $region66: #{lenet5_forward.1} parent=11 // pred_check_branch
          %536 = sbr.rel (%p534) target = $region68
        $region67: #{lenet5_forward.1} parent=11 // pred_region
          _
        $region68: #{lenet5_forward.1} parent=11 // pred_fallthru
          _
        // Predicated region
        $region69: #{lenet5_forward.1} parent=11 // pred_check
          %p537 = pneg %p370
        $region70: #{lenet5_forward.1} parent=11 // pred_check_branch
          %539 = sbr.rel (%p537) target = $region72
        $region71: #{lenet5_forward.1} parent=11 // pred_region
          _
        $region72: #{lenet5_forward.1} parent=11 // pred_fallthru
          _
        // Predicated region
        $region73: #{lenet5_forward.1} parent=11 // pred_check
          %p540 = pneg %p391
        $region74: #{lenet5_forward.1} parent=11 // pred_check_branch
          %542 = sbr.rel (%p540) target = $region76
        $region75: #{lenet5_forward.1} parent=11 // pred_region
          _
        $region76: #{lenet5_forward.1} parent=11 // pred_fallthru
          _
        // Predicated region
        $region77: #{lenet5_forward.1} parent=11 // pred_check
          %p543 = pneg %p412
        $region78: #{lenet5_forward.1} parent=11 // pred_check_branch
          %545 = sbr.rel (%p543) target = $region80
        $region79: #{lenet5_forward.1} parent=11 // pred_region
          _
        $region80: #{lenet5_forward.1} parent=11 // pred_fallthru
          _
        // Predicated region
        $region81: #{lenet5_forward.1} parent=11 // pred_check
          %p546 = pneg %p433
        $region82: #{lenet5_forward.1} parent=11 // pred_check_branch
          %548 = sbr.rel (%p546) target = $region84
        $region83: #{lenet5_forward.1} parent=11 // pred_region
          _
        $region84: #{lenet5_forward.1} parent=11 // pred_fallthru
          _
        // Predicated region
        $region85: #{lenet5_forward.1} parent=11 // pred_check
          %p549 = pneg %p454
        $region86: #{lenet5_forward.1} parent=11 // pred_check_branch
          %551 = sbr.rel (%p549) target = $region88
        $region87: #{lenet5_forward.1} parent=11 // pred_region
          _
        $region88: #{lenet5_forward.1} parent=11 // pred_fallthru
          _
      $region12: #{lenet5_forward.1} parent=5 // pred_fallthru
        _
      %p552 = scmp.lt.s32.totalorder %s29, 2
      // Predicated region
      $region89: #{lenet5_forward.1} parent=5 // pred_check
        %p553 = pneg %p552
      $region90: #{lenet5_forward.1} parent=5 // pred_check_branch
        %555 = sbr.rel (%p553) target = $region92
      $region91: #{lenet5_forward.1} parent=5 // pred_region
        // Predicated region
        $region93: #{lenet5_forward.1} parent=91 // pred_check
          %p556 = pneg %p49
        $region94: #{lenet5_forward.1} parent=91 // pred_check_branch
          %558 = sbr.rel (%p556) target = $region96
        $region95: #{lenet5_forward.1} parent=91 // pred_region
          %s559 = smul.u32 32, %s29
          %p560 = scmp.lt.s32.totalorder %s559, 63
          %s561 = scalar_select %p560, %s559, 63
          %s562 = smul.addr %s561, 8
          %s563 = scalar_lea.vmem %s0, %s562
          %s564 = smul.u32 32, %s29
        $region96: #{lenet5_forward.1} parent=91 // pred_fallthru
          _
      $region92: #{lenet5_forward.1} parent=5 // pred_fallthru
        _
      %p565 = scmp.le.s32.totalorder 1, %s29
      %p566 = scmp.lt.s32.totalorder %s29, 3
      %p567 = pnand %p565, %p566
      %p568 = pneg %p567
      // Predicated region
      $region97: #{lenet5_forward.1} parent=5 // pred_check
        _
      $region98: #{lenet5_forward.1} parent=5 // pred_check_branch
        %570 = sbr.rel (%p567) target = $region100
      $region99: #{lenet5_forward.1} parent=5 // pred_region
        %s571 = ssub.s32 %s29, 1
        %s572 = smul.u32 32, %s34
        %p573 = scmp.lt.s32.totalorder %s572, 63
        %s574 = scalar_select %p573, %s572, 63
        %s575 = smul.addr %s574, 8
        %s576 = scalar_lea.vmem %s0, %s575
        %p577 = pneg %p55
        %p578 = pneg %p52
        %p579 = pneg %p76
        %p580 = pneg %p73
        %p581 = pneg %p97
        %p582 = pneg %p94
        %p583 = pneg %p118
        %p584 = pneg %p115
        %p585 = pneg %p139
        %p586 = pneg %p136
        %p587 = pneg %p160
        %p588 = pneg %p157
        %p589 = pneg %p181
        %p590 = pneg %p178
        %p591 = pneg %p202
        %p592 = pneg %p199
        %p593 = pneg %p223
        %p594 = pneg %p220
        %p595 = pneg %p244
        %p596 = pneg %p241
        %p597 = pneg %p265
        %p598 = pneg %p262
        %p599 = pneg %p286
        %p600 = pneg %p283
        %p601 = pneg %p307
        %p602 = pneg %p304
        %p603 = pneg %p328
        %p604 = pneg %p325
        %p605 = pneg %p349
        %p606 = pneg %p346
        %p607 = pneg %p370
        %p608 = pneg %p367
        %p609 = pneg %p391
        %p610 = pneg %p388
        %p611 = pneg %p412
        %p612 = pneg %p409
        %p613 = pneg %p433
        %p614 = pneg %p430
        %p615 = pneg %p454
        %p616 = pneg %p451
        %p617 = pneg %p480
        %p618 = pneg %p477
        %s619 = sand.u32 %s467, 1
        %s620 = scalar_lea.sflag [#allocation3], %s619
        %s621 = sand.u32 %s467, 1
        %s622 = smul.addr %s621, 8
        %s623 = scalar_lea.vmem [#allocation2], %s622
        %s624 = smul.u32 32, %s34
        %p625 = scmp.lt.s32.totalorder %s624, 63
        %s626 = scalar_select %p625, %s624, 63
        %s627 = smul.addr %s626, 8
        %s628 = scalar_lea.vmem %s0, %s627
        %s629 = smul.u32 32, %s34
        %v631 = vld [vmem:[%s628] sm:$0xff]
        %v632 = vld [vmem:[%s628 + $0x8] sm:$0xff]
        %v633 = vld [vmem:[%s628 + $0x10] sm:$0xff]
        %v634 = vld [vmem:[%s628 + $0x18] sm:$0xff]
        %v635 = vld [vmem:[%s628 + $0x20] sm:$0xff]
        %v636 = vld [vmem:[%s628 + $0x28] sm:$0xff]
        %v637 = vld [vmem:[%s628 + $0x30] sm:$0xff]
        %v638 = vld [vmem:[%s628 + $0x38] sm:$0xff]
        %v639 = vld [vmem:[%s628 + $0x40] sm:$0xff]
        %v640 = vld [vmem:[%s628 + $0x48] sm:$0xff]
        %v641 = vld [vmem:[%s628 + $0x50] sm:$0xff]
        %v642 = vld [vmem:[%s628 + $0x58] sm:$0xff]
        %v643 = vld [vmem:[%s628 + $0x60] sm:$0xff]
        %v644 = vld [vmem:[%s628 + $0x68] sm:$0xff]
        %v645 = vld [vmem:[%s628 + $0x70] sm:$0xff]
        %v646 = vld [vmem:[%s628 + $0x78] sm:$0xff]
        %v647 = vld [vmem:[%s628 + $0x80] sm:$0xff]
        %v648 = vld [vmem:[%s628 + $0x88] sm:$0xff]
        %v649 = vld [vmem:[%s628 + $0x90] sm:$0xff]
        %v650 = vld [vmem:[%s628 + $0x98] sm:$0xff]
        %v651 = vld [vmem:[%s628 + $0xa0] sm:$0xff]
        %v652 = vld [vmem:[%s628 + $0xa8] sm:$0xff]
        %v653 = vld [vmem:[%s628 + $0xb0] sm:$0xff]
        %v654 = vld [vmem:[%s628 + $0xb8] sm:$0xff]
        %v655 = vld [vmem:[%s628 + $0xc0] sm:$0xff]
        %v656 = vld [vmem:[%s628 + $0xc8] sm:$0xff]
        %v657 = vld [vmem:[%s628 + $0xd0] sm:$0xff]
        %v658 = vld [vmem:[%s628 + $0xd8] sm:$0xff]
        %v659 = vld [vmem:[%s628 + $0xe0] sm:$0xff]
        %v660 = vld [vmem:[%s628 + $0xe8] sm:$0xff]
        %v661 = vld [vmem:[%s628 + $0xf0] sm:$0xff]
        %v662 = vld [vmem:[%s628 + $0xf8] sm:$0xff]
        %v663 = vld [vmem:[%s2] sm:$0x3]
        %v665 = vperm.slane %v663, 0
        %v666 = vperm.slane %v663, 1
        %v669 = vpack.c.bf16 %v632, %v631
        %v670 = vpack.c.bf16 %v634, %v633
        %v671 = vpack.c.bf16 %v636, %v635
        %v672 = vpack.c.bf16 %v638, %v637
        %v673 = vpack.c.bf16 %v640, %v639
        %v674 = vpack.c.bf16 %v642, %v641
        %v675 = vpack.c.bf16 %v644, %v643
        %v676 = vpack.c.bf16 %v646, %v645
        %v677 = vpack.c.bf16 %v648, %v647
        %v678 = vpack.c.bf16 %v650, %v649
        %v679 = vpack.c.bf16 %v652, %v651
        %v680 = vpack.c.bf16 %v654, %v653
        %v681 = vpack.c.bf16 %v656, %v655
        %v682 = vpack.c.bf16 %v658, %v657
        %v683 = vpack.c.bf16 %v660, %v659
        %v684 = vpack.c.bf16 %v662, %v661
        %v685 = vld [vmem:[%s1] sm:$0xff]
        %v686 = vld [vmem:[%s1 + $0x8] sm:$0xff]
        %v687 = vld [vmem:[%s1 + $0x10] sm:$0xff]
        %v688 = vld [vmem:[%s1 + $0x18] sm:$0xff]
        %v689 = vld [vmem:[%s1 + $0x20] sm:$0xff]
        %v690 = vld [vmem:[%s1 + $0x28] sm:$0xff]
        %v691 = vld [vmem:[%s1 + $0x30] sm:$0xff]
        %v692 = vld [vmem:[%s1 + $0x38] sm:$0xff]
        %v693 = vld [vmem:[%s1 + $0x40] sm:$0xff]
        %v694 = vld [vmem:[%s1 + $0x48] sm:$0xff]
        %v695 = vld [vmem:[%s1 + $0x50] sm:$0xff]
        %v696 = vld [vmem:[%s1 + $0x58] sm:$0xff]
        %v709 = vunpack.c.l.b16 %v685
        %v710 = vunpack.c.h.b16 %v685
        %v711 = vunpack.c.l.b16 %v686
        %v712 = vunpack.c.h.b16 %v686
        %v713 = vunpack.c.l.b16 %v687
        %v714 = vunpack.c.h.b16 %v687
        %v715 = vunpack.c.l.b16 %v688
        %v716 = vunpack.c.h.b16 %v688
        %v717 = vunpack.c.l.b16 %v689
        %v718 = vunpack.c.h.b16 %v689
        %v719 = vunpack.c.l.b16 %v690
        %v720 = vunpack.c.h.b16 %v690
        %v721 = vunpack.c.l.b16 %v691
        %v722 = vunpack.c.h.b16 %v691
        %v723 = vunpack.c.l.b16 %v692
        %v724 = vunpack.c.h.b16 %v692
        %v725 = vunpack.c.l.b16 %v693
        %v726 = vunpack.c.h.b16 %v693
        %v727 = vunpack.c.l.b16 %v694
        %v728 = vunpack.c.h.b16 %v694
        %v729 = vunpack.c.l.b16 %v695
        %v730 = vunpack.c.h.b16 %v695
        %v731 = vunpack.c.l.b16 %v696
        %v732 = vunpack.c.h.b16 %v696
        %v733 = vpack.c.b16 %v711, %v709
        %v734 = vpack.c.b16 %v712, %v710
        %v735 = vpack.c.b16 %v715, %v713
        %v736 = vpack.c.b16 %v716, %v714
        %v737 = vpack.c.b16 %v719, %v717
        %v738 = vpack.c.b16 %v720, %v718
        %v739 = vpack.c.b16 %v723, %v721
        %v740 = vpack.c.b16 %v724, %v722
        %v741 = vpack.c.b16 %v727, %v725
        %v742 = vpack.c.b16 %v728, %v726
        %v743 = vpack.c.b16 %v731, %v729
        %v744 = vpack.c.b16 %v732, %v730
        %vm757 = vcmask 785408
        %v759 = vsel %vm757, %v669, 0
        %v762 = vsel %vm757, %v670, 0
        %v765 = vsel %vm757, %v671, 0
        %v768 = vsel %vm757, %v672, 0
        %v771 = vsel %vm757, %v673, 0
        %v774 = vsel %vm757, %v674, 0
        %v777 = vsel %vm757, %v675, 0
        %v780 = vsel %vm757, %v676, 0
        %v783 = vsel %vm757, %v677, 0
        %v786 = vsel %vm757, %v678, 0
        %v789 = vsel %vm757, %v679, 0
        %v792 = vsel %vm757, %v680, 0
        %v795 = vsel %vm757, %v681, 0
        %v798 = vsel %vm757, %v682, 0
        %v801 = vsel %vm757, %v683, 0
        %v804 = vsel %vm757, %v684, 0
        %806 = vmatpush.bf16.msra.mxu0 0
        %807 = vmatpush.bf16.msra.mxu0 0
        %808 = vmatpush.bf16.msra.mxu0 %v743
        %809 = vmatpush.bf16.msra.mxu0 %v741
        %810 = vmatpush.bf16.msra.mxu0 %v739
        %811 = vmatpush.bf16.msra.mxu0 %v737
        %812 = vmatpush.bf16.msra.mxu0 %v735
        %813 = vmatpush.bf16.msra.mxu0 %v733
        %814 = vmatmul.bf16.gmra.mxu0 %v759
        %v815 = vpop.f32.mrf.mxu0
        %v816 = vadd.f32 0.0, %v815
        %v817 = vpop.f32.mrf.mxu0
        %v818 = vadd.f32 0.0, %v817
        %819 = vmatmul.bf16.gmra.mxu0 %v762
        %v820 = vpop.f32.mrf.mxu0
        %v821 = vadd.f32 0.0, %v820
        %v822 = vpop.f32.mrf.mxu0
        %v823 = vadd.f32 0.0, %v822
        %824 = vmatmul.bf16.gmra.mxu0 %v765
        %v825 = vpop.f32.mrf.mxu0
        %v826 = vadd.f32 0.0, %v825
        %v827 = vpop.f32.mrf.mxu0
        %v828 = vadd.f32 0.0, %v827
        %829 = vmatmul.bf16.gmra.mxu0 %v768
        %v830 = vpop.f32.mrf.mxu0
        %v831 = vadd.f32 0.0, %v830
        %v832 = vpop.f32.mrf.mxu0
        %v833 = vadd.f32 0.0, %v832
        %834 = vmatmul.bf16.gmra.mxu0 %v771
        %v835 = vpop.f32.mrf.mxu0
        %v836 = vadd.f32 0.0, %v835
        %v837 = vpop.f32.mrf.mxu0
        %v838 = vadd.f32 0.0, %v837
        %839 = vmatmul.bf16.gmra.mxu0 %v774
        %v840 = vpop.f32.mrf.mxu0
        %v841 = vadd.f32 0.0, %v840
        %v842 = vpop.f32.mrf.mxu0
        %v843 = vadd.f32 0.0, %v842
        %844 = vmatmul.bf16.gmra.mxu0 %v777
        %v845 = vpop.f32.mrf.mxu0
        %v846 = vadd.f32 0.0, %v845
        %v847 = vpop.f32.mrf.mxu0
        %v848 = vadd.f32 0.0, %v847
        %849 = vmatmul.bf16.gmra.mxu0 %v780
        %v850 = vpop.f32.mrf.mxu0
        %v851 = vadd.f32 0.0, %v850
        %v852 = vpop.f32.mrf.mxu0
        %v853 = vadd.f32 0.0, %v852
        %854 = vmatmul.bf16.gmra.mxu0 %v783
        %v855 = vpop.f32.mrf.mxu0
        %v856 = vadd.f32 0.0, %v855
        %v857 = vpop.f32.mrf.mxu0
        %v858 = vadd.f32 0.0, %v857
        %859 = vmatmul.bf16.gmra.mxu0 %v786
        %v860 = vpop.f32.mrf.mxu0
        %v861 = vadd.f32 0.0, %v860
        %v862 = vpop.f32.mrf.mxu0
        %v863 = vadd.f32 0.0, %v862
        %864 = vmatmul.bf16.gmra.mxu0 %v789
        %v865 = vpop.f32.mrf.mxu0
        %v866 = vadd.f32 0.0, %v865
        %v867 = vpop.f32.mrf.mxu0
        %v868 = vadd.f32 0.0, %v867
        %869 = vmatmul.bf16.gmra.mxu0 %v792
        %v870 = vpop.f32.mrf.mxu0
        %v871 = vadd.f32 0.0, %v870
        %v872 = vpop.f32.mrf.mxu0
        %v873 = vadd.f32 0.0, %v872
        %874 = vmatmul.bf16.gmra.mxu0 %v795
        %v875 = vpop.f32.mrf.mxu0
        %v876 = vadd.f32 0.0, %v875
        %v877 = vpop.f32.mrf.mxu0
        %v878 = vadd.f32 0.0, %v877
        %879 = vmatmul.bf16.gmra.mxu0 %v798
        %v880 = vpop.f32.mrf.mxu0
        %v881 = vadd.f32 0.0, %v880
        %v882 = vpop.f32.mrf.mxu0
        %v883 = vadd.f32 0.0, %v882
        %884 = vmatmul.bf16.gmra.mxu0 %v801
        %v885 = vpop.f32.mrf.mxu0
        %v886 = vadd.f32 0.0, %v885
        %v887 = vpop.f32.mrf.mxu0
        %v888 = vadd.f32 0.0, %v887
        %889 = vmatmul.bf16.gmra.mxu0 %v804
        %v890 = vpop.f32.mrf.mxu0
        %v891 = vadd.f32 0.0, %v890
        %v892 = vpop.f32.mrf.mxu0
        %v893 = vadd.f32 0.0, %v892
        %894 = vdwg.mxu0
        %895 = vmatpush.bf16.msra.mxu0 0
        %896 = vmatpush.bf16.msra.mxu0 0
        %897 = vmatpush.bf16.msra.mxu0 %v744
        %898 = vmatpush.bf16.msra.mxu0 %v742
        %899 = vmatpush.bf16.msra.mxu0 %v740
        %900 = vmatpush.bf16.msra.mxu0 %v738
        %901 = vmatpush.bf16.msra.mxu0 %v736
        %902 = vmatpush.bf16.msra.mxu0 %v734
        %903 = vmatmul.bf16.gmra.mxu0 %v759
        %v904 = vpop.f32.mrf.mxu0
        %v905 = vadd.f32 0.0, %v904
        %v906 = vpop.f32.mrf.mxu0
        %v907 = vadd.f32 0.0, %v906
        %908 = vmatmul.bf16.gmra.mxu0 %v762
        %v909 = vpop.f32.mrf.mxu0
        %v910 = vadd.f32 0.0, %v909
        %v911 = vpop.f32.mrf.mxu0
        %v912 = vadd.f32 0.0, %v911
        %913 = vmatmul.bf16.gmra.mxu0 %v765
        %v914 = vpop.f32.mrf.mxu0
        %v915 = vadd.f32 0.0, %v914
        %v916 = vpop.f32.mrf.mxu0
        %v917 = vadd.f32 0.0, %v916
        %918 = vmatmul.bf16.gmra.mxu0 %v768
        %v919 = vpop.f32.mrf.mxu0
        %v920 = vadd.f32 0.0, %v919
        %v921 = vpop.f32.mrf.mxu0
        %v922 = vadd.f32 0.0, %v921
        %923 = vmatmul.bf16.gmra.mxu0 %v771
        %v924 = vpop.f32.mrf.mxu0
        %v925 = vadd.f32 0.0, %v924
        %v926 = vpop.f32.mrf.mxu0
        %v927 = vadd.f32 0.0, %v926
        %928 = vmatmul.bf16.gmra.mxu0 %v774
        %v929 = vpop.f32.mrf.mxu0
        %v930 = vadd.f32 0.0, %v929
        %v931 = vpop.f32.mrf.mxu0
        %v932 = vadd.f32 0.0, %v931
        %933 = vmatmul.bf16.gmra.mxu0 %v777
        %v934 = vpop.f32.mrf.mxu0
        %v935 = vadd.f32 0.0, %v934
        %v936 = vpop.f32.mrf.mxu0
        %v937 = vadd.f32 0.0, %v936
        %938 = vmatmul.bf16.gmra.mxu0 %v780
        %v939 = vpop.f32.mrf.mxu0
        %v940 = vadd.f32 0.0, %v939
        %v941 = vpop.f32.mrf.mxu0
        %v942 = vadd.f32 0.0, %v941
        %943 = vmatmul.bf16.gmra.mxu0 %v783
        %v944 = vpop.f32.mrf.mxu0
        %v945 = vadd.f32 0.0, %v944
        %v946 = vpop.f32.mrf.mxu0
        %v947 = vadd.f32 0.0, %v946
        %948 = vmatmul.bf16.gmra.mxu0 %v786
        %v949 = vpop.f32.mrf.mxu0
        %v950 = vadd.f32 0.0, %v949
        %v951 = vpop.f32.mrf.mxu0
        %v952 = vadd.f32 0.0, %v951
        %953 = vmatmul.bf16.gmra.mxu0 %v789
        %v954 = vpop.f32.mrf.mxu0
        %v955 = vadd.f32 0.0, %v954
        %v956 = vpop.f32.mrf.mxu0
        %v957 = vadd.f32 0.0, %v956
        %958 = vmatmul.bf16.gmra.mxu0 %v792
        %v959 = vpop.f32.mrf.mxu0
        %v960 = vadd.f32 0.0, %v959
        %v961 = vpop.f32.mrf.mxu0
        %v962 = vadd.f32 0.0, %v961
        %963 = vmatmul.bf16.gmra.mxu0 %v795
        %v964 = vpop.f32.mrf.mxu0
        %v965 = vadd.f32 0.0, %v964
        %v966 = vpop.f32.mrf.mxu0
        %v967 = vadd.f32 0.0, %v966
        %968 = vmatmul.bf16.gmra.mxu0 %v798
        %v969 = vpop.f32.mrf.mxu0
        %v970 = vadd.f32 0.0, %v969
        %v971 = vpop.f32.mrf.mxu0
        %v972 = vadd.f32 0.0, %v971
        %973 = vmatmul.bf16.gmra.mxu0 %v801
        %v974 = vpop.f32.mrf.mxu0
        %v975 = vadd.f32 0.0, %v974
        %v976 = vpop.f32.mrf.mxu0
        %v977 = vadd.f32 0.0, %v976
        %978 = vmatmul.bf16.gmra.mxu0 %v804
        %v979 = vpop.f32.mrf.mxu0
        %v980 = vadd.f32 0.0, %v979
        %v981 = vpop.f32.mrf.mxu0
        %v982 = vadd.f32 0.0, %v981
        %983 = vdwg.mxu0
        %v984 = vadd.f32 %v665, %v816
        %v985 = vadd.f32 %v666, %v905
        %v986 = vadd.f32 %v665, %v818
        %v987 = vadd.f32 %v666, %v907
        %v988 = vadd.f32 %v665, %v821
        %v989 = vadd.f32 %v666, %v910
        %v990 = vadd.f32 %v665, %v823
        %v991 = vadd.f32 %v666, %v912
        %v992 = vadd.f32 %v665, %v826
        %v993 = vadd.f32 %v666, %v915
        %v994 = vadd.f32 %v665, %v828
        %v995 = vadd.f32 %v666, %v917
        %v996 = vadd.f32 %v665, %v831
        %v997 = vadd.f32 %v666, %v920
        %v998 = vadd.f32 %v665, %v833
        %v999 = vadd.f32 %v666, %v922
        %v1000 = vadd.f32 %v665, %v836
        %v1001 = vadd.f32 %v666, %v925
        %v1002 = vadd.f32 %v665, %v838
        %v1003 = vadd.f32 %v666, %v927
        %v1004 = vadd.f32 %v665, %v841
        %v1005 = vadd.f32 %v666, %v930
        %v1006 = vadd.f32 %v665, %v843
        %v1007 = vadd.f32 %v666, %v932
        %v1008 = vadd.f32 %v665, %v846
        %v1009 = vadd.f32 %v666, %v935
        %v1010 = vadd.f32 %v665, %v848
        %v1011 = vadd.f32 %v666, %v937
        %v1012 = vadd.f32 %v665, %v851
        %v1013 = vadd.f32 %v666, %v940
        %v1014 = vadd.f32 %v665, %v853
        %v1015 = vadd.f32 %v666, %v942
        %v1016 = vadd.f32 %v665, %v856
        %v1017 = vadd.f32 %v666, %v945
        %v1018 = vadd.f32 %v665, %v858
        %v1019 = vadd.f32 %v666, %v947
        %v1020 = vadd.f32 %v665, %v861
        %v1021 = vadd.f32 %v666, %v950
        %v1022 = vadd.f32 %v665, %v863
        %v1023 = vadd.f32 %v666, %v952
        %v1024 = vadd.f32 %v665, %v866
        %v1025 = vadd.f32 %v666, %v955
        %v1026 = vadd.f32 %v665, %v868
        %v1027 = vadd.f32 %v666, %v957
        %v1028 = vadd.f32 %v665, %v871
        %v1029 = vadd.f32 %v666, %v960
        %v1030 = vadd.f32 %v665, %v873
        %v1031 = vadd.f32 %v666, %v962
        %v1032 = vadd.f32 %v665, %v876
        %v1033 = vadd.f32 %v666, %v965
        %v1034 = vadd.f32 %v665, %v878
        %v1035 = vadd.f32 %v666, %v967
        %v1036 = vadd.f32 %v665, %v881
        %v1037 = vadd.f32 %v666, %v970
        %v1038 = vadd.f32 %v665, %v883
        %v1039 = vadd.f32 %v666, %v972
        %v1040 = vadd.f32 %v665, %v886
        %v1041 = vadd.f32 %v666, %v975
        %v1042 = vadd.f32 %v665, %v888
        %v1043 = vadd.f32 %v666, %v977
        %v1044 = vadd.f32 %v665, %v891
        %v1045 = vadd.f32 %v666, %v980
        %v1046 = vadd.f32 %v665, %v893
        %v1047 = vadd.f32 %v666, %v982
        %s1048 = scalar_lea.vmem %s1, 96
        %v1049 = vld [vmem:[%s1048] sm:$0xff]
        %v1050 = vld [vmem:[%s1048 + $0x8] sm:$0xff]
        %v1051 = vld [vmem:[%s1048 + $0x10] sm:$0xff]
        %v1052 = vld [vmem:[%s1048 + $0x18] sm:$0xff]
        %v1053 = vld [vmem:[%s1048 + $0x20] sm:$0xff]
        %v1054 = vld [vmem:[%s1048 + $0x28] sm:$0xff]
        %v1055 = vld [vmem:[%s1048 + $0x30] sm:$0xff]
        %v1056 = vld [vmem:[%s1048 + $0x38] sm:$0xff]
        %v1057 = vld [vmem:[%s1048 + $0x40] sm:$0xff]
        %v1058 = vld [vmem:[%s1048 + $0x48] sm:$0xff]
        %v1059 = vld [vmem:[%s1048 + $0x50] sm:$0xff]
        %v1060 = vld [vmem:[%s1048 + $0x58] sm:$0xff]
        %vm1061 = vsmask.f32 7424
        %v1062 = vshrl.u32 %v669, 16
        %v1064 = vshll.u32 %v669, 16
        %v1066 = vrot.slane %v1064, 1
        %v1067 = vor.u32 %v1062, %v1066
        %v1068 = vshll.u32 %v670, 16
        %v1070 = vrot.slane %v1068, 1
        %v1071 = vsel %vm1061, %v1067, %v1070
        %v1072 = vshrl.u32 %v670, 16
        %v1074 = vor.u32 %v1072, %v1070
        %v1075 = vshll.u32 %v671, 16
        %v1077 = vrot.slane %v1075, 1
        %v1078 = vsel %vm1061, %v1074, %v1077
        %v1079 = vshrl.u32 %v671, 16
        %v1081 = vor.u32 %v1079, %v1077
        %v1082 = vshll.u32 %v672, 16
        %v1084 = vrot.slane %v1082, 1
        %v1085 = vsel %vm1061, %v1081, %v1084
        %v1086 = vshrl.u32 %v672, 16
        %v1088 = vor.u32 %v1086, %v1084
        %v1089 = vshll.u32 %v673, 16
        %v1091 = vrot.slane %v1089, 1
        %v1092 = vsel %vm1061, %v1088, %v1091
        %v1093 = vshrl.u32 %v673, 16
        %v1095 = vor.u32 %v1093, %v1091
        %v1096 = vshll.u32 %v674, 16
        %v1098 = vrot.slane %v1096, 1
        %v1099 = vsel %vm1061, %v1095, %v1098
        %v1100 = vshrl.u32 %v674, 16
        %v1102 = vor.u32 %v1100, %v1098
        %v1103 = vshll.u32 %v675, 16
        %v1105 = vrot.slane %v1103, 1
        %v1106 = vsel %vm1061, %v1102, %v1105
        %v1107 = vshrl.u32 %v675, 16
        %v1109 = vor.u32 %v1107, %v1105
        %v1110 = vshll.u32 %v676, 16
        %v1112 = vrot.slane %v1110, 1
        %v1113 = vsel %vm1061, %v1109, %v1112
        %v1114 = vshrl.u32 %v676, 16
        %v1116 = vor.u32 %v1114, %v1112
        %v1117 = vshll.u32 %v677, 16
        %v1119 = vrot.slane %v1117, 1
        %v1120 = vsel %vm1061, %v1116, %v1119
        %v1121 = vshrl.u32 %v677, 16
        %v1123 = vor.u32 %v1121, %v1119
        %v1124 = vshll.u32 %v678, 16
        %v1126 = vrot.slane %v1124, 1
        %v1127 = vsel %vm1061, %v1123, %v1126
        %v1128 = vshrl.u32 %v678, 16
        %v1130 = vor.u32 %v1128, %v1126
        %v1131 = vshll.u32 %v679, 16
        %v1133 = vrot.slane %v1131, 1
        %v1134 = vsel %vm1061, %v1130, %v1133
        %v1135 = vshrl.u32 %v679, 16
        %v1137 = vor.u32 %v1135, %v1133
        %v1138 = vshll.u32 %v680, 16
        %v1140 = vrot.slane %v1138, 1
        %v1141 = vsel %vm1061, %v1137, %v1140
        %v1142 = vshrl.u32 %v680, 16
        %v1144 = vor.u32 %v1142, %v1140
        %v1145 = vshll.u32 %v681, 16
        %v1147 = vrot.slane %v1145, 1
        %v1148 = vsel %vm1061, %v1144, %v1147
        %v1149 = vshrl.u32 %v681, 16
        %v1151 = vor.u32 %v1149, %v1147
        %v1152 = vshll.u32 %v682, 16
        %v1154 = vrot.slane %v1152, 1
        %v1155 = vsel %vm1061, %v1151, %v1154
        %v1156 = vshrl.u32 %v682, 16
        %v1158 = vor.u32 %v1156, %v1154
        %v1159 = vshll.u32 %v683, 16
        %v1161 = vrot.slane %v1159, 1
        %v1162 = vsel %vm1061, %v1158, %v1161
        %v1163 = vshrl.u32 %v683, 16
        %v1165 = vor.u32 %v1163, %v1161
        %v1166 = vshll.u32 %v684, 16
        %v1168 = vrot.slane %v1166, 1
        %v1169 = vsel %vm1061, %v1165, %v1168
        %v1170 = vshrl.u32 %v684, 16
        %v1172 = vor.u32 %v1170, %v1168
        %v1185 = vunpack.c.l.b16 %v1049
        %v1186 = vunpack.c.h.b16 %v1049
        %v1187 = vunpack.c.l.b16 %v1050
        %v1188 = vunpack.c.h.b16 %v1050
        %v1189 = vunpack.c.l.b16 %v1051
        %v1190 = vunpack.c.h.b16 %v1051
        %v1191 = vunpack.c.l.b16 %v1052
        %v1192 = vunpack.c.h.b16 %v1052
        %v1193 = vunpack.c.l.b16 %v1053
        %v1194 = vunpack.c.h.b16 %v1053
        %v1195 = vunpack.c.l.b16 %v1054
        %v1196 = vunpack.c.h.b16 %v1054
        %v1197 = vunpack.c.l.b16 %v1055
        %v1198 = vunpack.c.h.b16 %v1055
        %v1199 = vunpack.c.l.b16 %v1056
        %v1200 = vunpack.c.h.b16 %v1056
        %v1201 = vunpack.c.l.b16 %v1057
        %v1202 = vunpack.c.h.b16 %v1057
        %v1203 = vunpack.c.l.b16 %v1058
        %v1204 = vunpack.c.h.b16 %v1058
        %v1205 = vunpack.c.l.b16 %v1059
        %v1206 = vunpack.c.h.b16 %v1059
        %v1207 = vunpack.c.l.b16 %v1060
        %v1208 = vunpack.c.h.b16 %v1060
        %v1209 = vpack.c.b16 %v1187, %v1185
        %v1210 = vpack.c.b16 %v1188, %v1186
        %v1211 = vpack.c.b16 %v1191, %v1189
        %v1212 = vpack.c.b16 %v1192, %v1190
        %v1213 = vpack.c.b16 %v1195, %v1193
        %v1214 = vpack.c.b16 %v1196, %v1194
        %v1215 = vpack.c.b16 %v1199, %v1197
        %v1216 = vpack.c.b16 %v1200, %v1198
        %v1217 = vpack.c.b16 %v1203, %v1201
        %v1218 = vpack.c.b16 %v1204, %v1202
        %v1219 = vpack.c.b16 %v1207, %v1205
        %v1220 = vpack.c.b16 %v1208, %v1206
        %v1234 = vsel %vm757, %v1071, 0
        %v1237 = vsel %vm757, %v1078, 0
        %v1240 = vsel %vm757, %v1085, 0
        %v1243 = vsel %vm757, %v1092, 0
        %v1246 = vsel %vm757, %v1099, 0
        %v1249 = vsel %vm757, %v1106, 0
        %v1252 = vsel %vm757, %v1113, 0
        %v1255 = vsel %vm757, %v1120, 0
        %v1258 = vsel %vm757, %v1127, 0
        %v1261 = vsel %vm757, %v1134, 0
        %v1264 = vsel %vm757, %v1141, 0
        %v1267 = vsel %vm757, %v1148, 0
        %v1270 = vsel %vm757, %v1155, 0
        %v1273 = vsel %vm757, %v1162, 0
        %v1276 = vsel %vm757, %v1169, 0
        %v1279 = vsel %vm757, %v1172, 0
        %1281 = vmatpush.bf16.msra.mxu0 0
        %1282 = vmatpush.bf16.msra.mxu0 0
        %1283 = vmatpush.bf16.msra.mxu0 %v1219
        %1284 = vmatpush.bf16.msra.mxu0 %v1217
        %1285 = vmatpush.bf16.msra.mxu0 %v1215
        %1286 = vmatpush.bf16.msra.mxu0 %v1213
        %1287 = vmatpush.bf16.msra.mxu0 %v1211
        %1288 = vmatpush.bf16.msra.mxu0 %v1209
        %1289 = vmatmul.bf16.gmra.mxu0 %v1234
        %v1290 = vpop.f32.mrf.mxu0
        %v1291 = vadd.f32 0.0, %v1290
        %v1292 = vpop.f32.mrf.mxu0
        %v1293 = vadd.f32 0.0, %v1292
        %1294 = vmatmul.bf16.gmra.mxu0 %v1237
        %v1295 = vpop.f32.mrf.mxu0
        %v1296 = vadd.f32 0.0, %v1295
        %v1297 = vpop.f32.mrf.mxu0
        %v1298 = vadd.f32 0.0, %v1297
        %1299 = vmatmul.bf16.gmra.mxu0 %v1240
        %v1300 = vpop.f32.mrf.mxu0
        %v1301 = vadd.f32 0.0, %v1300
        %v1302 = vpop.f32.mrf.mxu0
        %v1303 = vadd.f32 0.0, %v1302
        %1304 = vmatmul.bf16.gmra.mxu0 %v1243
        %v1305 = vpop.f32.mrf.mxu0
        %v1306 = vadd.f32 0.0, %v1305
        %v1307 = vpop.f32.mrf.mxu0
        %v1308 = vadd.f32 0.0, %v1307
        %1309 = vmatmul.bf16.gmra.mxu0 %v1246
        %v1310 = vpop.f32.mrf.mxu0
        %v1311 = vadd.f32 0.0, %v1310
        %v1312 = vpop.f32.mrf.mxu0
        %v1313 = vadd.f32 0.0, %v1312
        %1314 = vmatmul.bf16.gmra.mxu0 %v1249
        %v1315 = vpop.f32.mrf.mxu0
        %v1316 = vadd.f32 0.0, %v1315
        %v1317 = vpop.f32.mrf.mxu0
        %v1318 = vadd.f32 0.0, %v1317
        %1319 = vmatmul.bf16.gmra.mxu0 %v1252
        %v1320 = vpop.f32.mrf.mxu0
        %v1321 = vadd.f32 0.0, %v1320
        %v1322 = vpop.f32.mrf.mxu0
        %v1323 = vadd.f32 0.0, %v1322
        %1324 = vmatmul.bf16.gmra.mxu0 %v1255
        %v1325 = vpop.f32.mrf.mxu0
        %v1326 = vadd.f32 0.0, %v1325
        %v1327 = vpop.f32.mrf.mxu0
        %v1328 = vadd.f32 0.0, %v1327
        %1329 = vmatmul.bf16.gmra.mxu0 %v1258
        %v1330 = vpop.f32.mrf.mxu0
        %v1331 = vadd.f32 0.0, %v1330
        %v1332 = vpop.f32.mrf.mxu0
        %v1333 = vadd.f32 0.0, %v1332
        %1334 = vmatmul.bf16.gmra.mxu0 %v1261
        %v1335 = vpop.f32.mrf.mxu0
        %v1336 = vadd.f32 0.0, %v1335
        %v1337 = vpop.f32.mrf.mxu0
        %v1338 = vadd.f32 0.0, %v1337
        %1339 = vmatmul.bf16.gmra.mxu0 %v1264
        %v1340 = vpop.f32.mrf.mxu0
        %v1341 = vadd.f32 0.0, %v1340
        %v1342 = vpop.f32.mrf.mxu0
        %v1343 = vadd.f32 0.0, %v1342
        %1344 = vmatmul.bf16.gmra.mxu0 %v1267
        %v1345 = vpop.f32.mrf.mxu0
        %v1346 = vadd.f32 0.0, %v1345
        %v1347 = vpop.f32.mrf.mxu0
        %v1348 = vadd.f32 0.0, %v1347
        %1349 = vmatmul.bf16.gmra.mxu0 %v1270
        %v1350 = vpop.f32.mrf.mxu0
        %v1351 = vadd.f32 0.0, %v1350
        %v1352 = vpop.f32.mrf.mxu0
        %v1353 = vadd.f32 0.0, %v1352
        %1354 = vmatmul.bf16.gmra.mxu0 %v1273
        %v1355 = vpop.f32.mrf.mxu0
        %v1356 = vadd.f32 0.0, %v1355
        %v1357 = vpop.f32.mrf.mxu0
        %v1358 = vadd.f32 0.0, %v1357
        %1359 = vmatmul.bf16.gmra.mxu0 %v1276
        %v1360 = vpop.f32.mrf.mxu0
        %v1361 = vadd.f32 0.0, %v1360
        %v1362 = vpop.f32.mrf.mxu0
        %v1363 = vadd.f32 0.0, %v1362
        %1364 = vmatmul.bf16.gmra.mxu0 %v1279
        %v1365 = vpop.f32.mrf.mxu0
        %v1366 = vadd.f32 0.0, %v1365
        %v1367 = vpop.f32.mrf.mxu0
        %v1368 = vadd.f32 0.0, %v1367
        %1369 = vdwg.mxu0
        %1370 = vmatpush.bf16.msra.mxu0 0
        %1371 = vmatpush.bf16.msra.mxu0 0
        %1372 = vmatpush.bf16.msra.mxu0 %v1220
        %1373 = vmatpush.bf16.msra.mxu0 %v1218
        %1374 = vmatpush.bf16.msra.mxu0 %v1216
        %1375 = vmatpush.bf16.msra.mxu0 %v1214
        %1376 = vmatpush.bf16.msra.mxu0 %v1212
        %1377 = vmatpush.bf16.msra.mxu0 %v1210
        %1378 = vmatmul.bf16.gmra.mxu0 %v1234
        %v1379 = vpop.f32.mrf.mxu0
        %v1380 = vadd.f32 0.0, %v1379
        %v1381 = vpop.f32.mrf.mxu0
        %v1382 = vadd.f32 0.0, %v1381
        %1383 = vmatmul.bf16.gmra.mxu0 %v1237
        %v1384 = vpop.f32.mrf.mxu0
        %v1385 = vadd.f32 0.0, %v1384
        %v1386 = vpop.f32.mrf.mxu0
        %v1387 = vadd.f32 0.0, %v1386
        %1388 = vmatmul.bf16.gmra.mxu0 %v1240
        %v1389 = vpop.f32.mrf.mxu0
        %v1390 = vadd.f32 0.0, %v1389
        %v1391 = vpop.f32.mrf.mxu0
        %v1392 = vadd.f32 0.0, %v1391
        %1393 = vmatmul.bf16.gmra.mxu0 %v1243
        %v1394 = vpop.f32.mrf.mxu0
        %v1395 = vadd.f32 0.0, %v1394
        %v1396 = vpop.f32.mrf.mxu0
        %v1397 = vadd.f32 0.0, %v1396
        %1398 = vmatmul.bf16.gmra.mxu0 %v1246
        %v1399 = vpop.f32.mrf.mxu0
        %v1400 = vadd.f32 0.0, %v1399
        %v1401 = vpop.f32.mrf.mxu0
        %v1402 = vadd.f32 0.0, %v1401
        %1403 = vmatmul.bf16.gmra.mxu0 %v1249
        %v1404 = vpop.f32.mrf.mxu0
        %v1405 = vadd.f32 0.0, %v1404
        %v1406 = vpop.f32.mrf.mxu0
        %v1407 = vadd.f32 0.0, %v1406
        %1408 = vmatmul.bf16.gmra.mxu0 %v1252
        %v1409 = vpop.f32.mrf.mxu0
        %v1410 = vadd.f32 0.0, %v1409
        %v1411 = vpop.f32.mrf.mxu0
        %v1412 = vadd.f32 0.0, %v1411
        %1413 = vmatmul.bf16.gmra.mxu0 %v1255
        %v1414 = vpop.f32.mrf.mxu0
        %v1415 = vadd.f32 0.0, %v1414
        %v1416 = vpop.f32.mrf.mxu0
        %v1417 = vadd.f32 0.0, %v1416
        %1418 = vmatmul.bf16.gmra.mxu0 %v1258
        %v1419 = vpop.f32.mrf.mxu0
        %v1420 = vadd.f32 0.0, %v1419
        %v1421 = vpop.f32.mrf.mxu0
        %v1422 = vadd.f32 0.0, %v1421
        %1423 = vmatmul.bf16.gmra.mxu0 %v1261
        %v1424 = vpop.f32.mrf.mxu0
        %v1425 = vadd.f32 0.0, %v1424
        %v1426 = vpop.f32.mrf.mxu0
        %v1427 = vadd.f32 0.0, %v1426
        %1428 = vmatmul.bf16.gmra.mxu0 %v1264
        %v1429 = vpop.f32.mrf.mxu0
        %v1430 = vadd.f32 0.0, %v1429
        %v1431 = vpop.f32.mrf.mxu0
        %v1432 = vadd.f32 0.0, %v1431
        %1433 = vmatmul.bf16.gmra.mxu0 %v1267
        %v1434 = vpop.f32.mrf.mxu0
        %v1435 = vadd.f32 0.0, %v1434
        %v1436 = vpop.f32.mrf.mxu0
        %v1437 = vadd.f32 0.0, %v1436
        %1438 = vmatmul.bf16.gmra.mxu0 %v1270
        %v1439 = vpop.f32.mrf.mxu0
        %v1440 = vadd.f32 0.0, %v1439
        %v1441 = vpop.f32.mrf.mxu0
        %v1442 = vadd.f32 0.0, %v1441
        %1443 = vmatmul.bf16.gmra.mxu0 %v1273
        %v1444 = vpop.f32.mrf.mxu0
        %v1445 = vadd.f32 0.0, %v1444
        %v1446 = vpop.f32.mrf.mxu0
        %v1447 = vadd.f32 0.0, %v1446
        %1448 = vmatmul.bf16.gmra.mxu0 %v1276
        %v1449 = vpop.f32.mrf.mxu0
        %v1450 = vadd.f32 0.0, %v1449
        %v1451 = vpop.f32.mrf.mxu0
        %v1452 = vadd.f32 0.0, %v1451
        %1453 = vmatmul.bf16.gmra.mxu0 %v1279
        %v1454 = vpop.f32.mrf.mxu0
        %v1455 = vadd.f32 0.0, %v1454
        %v1456 = vpop.f32.mrf.mxu0
        %v1457 = vadd.f32 0.0, %v1456
        %1458 = vdwg.mxu0
        %v1459 = vadd.f32 %v984, %v1291
        %v1460 = vadd.f32 %v985, %v1380
        %v1461 = vadd.f32 %v986, %v1293
        %v1462 = vadd.f32 %v987, %v1382
        %v1463 = vadd.f32 %v988, %v1296
        %v1464 = vadd.f32 %v989, %v1385
        %v1465 = vadd.f32 %v990, %v1298
        %v1466 = vadd.f32 %v991, %v1387
        %v1467 = vadd.f32 %v992, %v1301
        %v1468 = vadd.f32 %v993, %v1390
        %v1469 = vadd.f32 %v994, %v1303
        %v1470 = vadd.f32 %v995, %v1392
        %v1471 = vadd.f32 %v996, %v1306
        %v1472 = vadd.f32 %v997, %v1395
        %v1473 = vadd.f32 %v998, %v1308
        %v1474 = vadd.f32 %v999, %v1397
        %v1475 = vadd.f32 %v1000, %v1311
        %v1476 = vadd.f32 %v1001, %v1400
        %v1477 = vadd.f32 %v1002, %v1313
        %v1478 = vadd.f32 %v1003, %v1402
        %v1479 = vadd.f32 %v1004, %v1316
        %v1480 = vadd.f32 %v1005, %v1405
        %v1481 = vadd.f32 %v1006, %v1318
        %v1482 = vadd.f32 %v1007, %v1407
        %v1483 = vadd.f32 %v1008, %v1321
        %v1484 = vadd.f32 %v1009, %v1410
        %v1485 = vadd.f32 %v1010, %v1323
        %v1486 = vadd.f32 %v1011, %v1412
        %v1487 = vadd.f32 %v1012, %v1326
        %v1488 = vadd.f32 %v1013, %v1415
        %v1489 = vadd.f32 %v1014, %v1328
        %v1490 = vadd.f32 %v1015, %v1417
        %v1491 = vadd.f32 %v1016, %v1331
        %v1492 = vadd.f32 %v1017, %v1420
        %v1493 = vadd.f32 %v1018, %v1333
        %v1494 = vadd.f32 %v1019, %v1422
        %v1495 = vadd.f32 %v1020, %v1336
        %v1496 = vadd.f32 %v1021, %v1425
        %v1497 = vadd.f32 %v1022, %v1338
        %v1498 = vadd.f32 %v1023, %v1427
        %v1499 = vadd.f32 %v1024, %v1341
        %v1500 = vadd.f32 %v1025, %v1430
        %v1501 = vadd.f32 %v1026, %v1343
        %v1502 = vadd.f32 %v1027, %v1432
        %v1503 = vadd.f32 %v1028, %v1346
        %v1504 = vadd.f32 %v1029, %v1435
        %v1505 = vadd.f32 %v1030, %v1348
        %v1506 = vadd.f32 %v1031, %v1437
        %v1507 = vadd.f32 %v1032, %v1351
        %v1508 = vadd.f32 %v1033, %v1440
        %v1509 = vadd.f32 %v1034, %v1353
        %v1510 = vadd.f32 %v1035, %v1442
        %v1511 = vadd.f32 %v1036, %v1356
        %v1512 = vadd.f32 %v1037, %v1445
        %v1513 = vadd.f32 %v1038, %v1358
        %v1514 = vadd.f32 %v1039, %v1447
        %v1515 = vadd.f32 %v1040, %v1361
        %v1516 = vadd.f32 %v1041, %v1450
        %v1517 = vadd.f32 %v1042, %v1363
        %v1518 = vadd.f32 %v1043, %v1452
        %v1519 = vadd.f32 %v1044, %v1366
        %v1520 = vadd.f32 %v1045, %v1455
        %v1521 = vadd.f32 %v1046, %v1368
        %v1522 = vadd.f32 %v1047, %v1457
        %s1523 = scalar_lea.vmem %s1, 192
        %v1524 = vld [vmem:[%s1523] sm:$0xff]
        %v1525 = vld [vmem:[%s1523 + $0x8] sm:$0xff]
        %v1526 = vld [vmem:[%s1523 + $0x10] sm:$0xff]
        %v1527 = vld [vmem:[%s1523 + $0x18] sm:$0xff]
        %v1528 = vld [vmem:[%s1523 + $0x20] sm:$0xff]
        %v1529 = vld [vmem:[%s1523 + $0x28] sm:$0xff]
        %v1530 = vld [vmem:[%s1523 + $0x30] sm:$0xff]
        %v1531 = vld [vmem:[%s1523 + $0x38] sm:$0xff]
        %v1532 = vld [vmem:[%s1523 + $0x40] sm:$0xff]
        %v1533 = vld [vmem:[%s1523 + $0x48] sm:$0xff]
        %v1534 = vld [vmem:[%s1523 + $0x50] sm:$0xff]
        %v1535 = vld [vmem:[%s1523 + $0x58] sm:$0xff]
        %vm1552 = vcmask 1046528
        %v1553 = vrot.slane %v669, 1
        %v1554 = vrot.slane %v670, 1
        %v1555 = vsel %vm1552, %v1553, %v1554
        %v1556 = vrot.slane %v671, 1
        %v1557 = vsel %vm1552, %v1554, %v1556
        %v1558 = vrot.slane %v672, 1
        %v1559 = vsel %vm1552, %v1556, %v1558
        %v1560 = vrot.slane %v673, 1
        %v1561 = vsel %vm1552, %v1558, %v1560
        %v1562 = vrot.slane %v674, 1
        %v1563 = vsel %vm1552, %v1560, %v1562
        %v1564 = vrot.slane %v675, 1
        %v1565 = vsel %vm1552, %v1562, %v1564
        %v1566 = vrot.slane %v676, 1
        %v1567 = vsel %vm1552, %v1564, %v1566
        %v1568 = vrot.slane %v677, 1
        %v1569 = vsel %vm1552, %v1566, %v1568
        %v1570 = vrot.slane %v678, 1
        %v1571 = vsel %vm1552, %v1568, %v1570
        %v1572 = vrot.slane %v679, 1
        %v1573 = vsel %vm1552, %v1570, %v1572
        %v1574 = vrot.slane %v680, 1
        %v1575 = vsel %vm1552, %v1572, %v1574
        %v1576 = vrot.slane %v681, 1
        %v1577 = vsel %vm1552, %v1574, %v1576
        %v1578 = vrot.slane %v682, 1
        %v1579 = vsel %vm1552, %v1576, %v1578
        %v1580 = vrot.slane %v683, 1
        %v1581 = vsel %vm1552, %v1578, %v1580
        %v1582 = vrot.slane %v684, 1
        %v1583 = vsel %vm1552, %v1580, %v1582
        %v1596 = vunpack.c.l.b16 %v1524
        %v1597 = vunpack.c.h.b16 %v1524
        %v1598 = vunpack.c.l.b16 %v1525
        %v1599 = vunpack.c.h.b16 %v1525
        %v1600 = vunpack.c.l.b16 %v1526
        %v1601 = vunpack.c.h.b16 %v1526
        %v1602 = vunpack.c.l.b16 %v1527
        %v1603 = vunpack.c.h.b16 %v1527
        %v1604 = vunpack.c.l.b16 %v1528
        %v1605 = vunpack.c.h.b16 %v1528
        %v1606 = vunpack.c.l.b16 %v1529
        %v1607 = vunpack.c.h.b16 %v1529
        %v1608 = vunpack.c.l.b16 %v1530
        %v1609 = vunpack.c.h.b16 %v1530
        %v1610 = vunpack.c.l.b16 %v1531
        %v1611 = vunpack.c.h.b16 %v1531
        %v1612 = vunpack.c.l.b16 %v1532
        %v1613 = vunpack.c.h.b16 %v1532
        %v1614 = vunpack.c.l.b16 %v1533
        %v1615 = vunpack.c.h.b16 %v1533
        %v1616 = vunpack.c.l.b16 %v1534
        %v1617 = vunpack.c.h.b16 %v1534
        %v1618 = vunpack.c.l.b16 %v1535
        %v1619 = vunpack.c.h.b16 %v1535
        %v1620 = vpack.c.b16 %v1598, %v1596
        %v1621 = vpack.c.b16 %v1599, %v1597
        %v1622 = vpack.c.b16 %v1602, %v1600
        %v1623 = vpack.c.b16 %v1603, %v1601
        %v1624 = vpack.c.b16 %v1606, %v1604
        %v1625 = vpack.c.b16 %v1607, %v1605
        %v1626 = vpack.c.b16 %v1610, %v1608
        %v1627 = vpack.c.b16 %v1611, %v1609
        %v1628 = vpack.c.b16 %v1614, %v1612
        %v1629 = vpack.c.b16 %v1615, %v1613
        %v1630 = vpack.c.b16 %v1618, %v1616
        %v1631 = vpack.c.b16 %v1619, %v1617
        %v1645 = vsel %vm757, %v1555, 0
        %v1648 = vsel %vm757, %v1557, 0
        %v1651 = vsel %vm757, %v1559, 0
        %v1654 = vsel %vm757, %v1561, 0
        %v1657 = vsel %vm757, %v1563, 0
        %v1660 = vsel %vm757, %v1565, 0
        %v1663 = vsel %vm757, %v1567, 0
        %v1666 = vsel %vm757, %v1569, 0
        %v1669 = vsel %vm757, %v1571, 0
        %v1672 = vsel %vm757, %v1573, 0
        %v1675 = vsel %vm757, %v1575, 0
        %v1678 = vsel %vm757, %v1577, 0
        %v1681 = vsel %vm757, %v1579, 0
        %v1684 = vsel %vm757, %v1581, 0
        %v1687 = vsel %vm757, %v1583, 0
        %v1690 = vsel %vm757, %v1582, 0
        %1692 = vmatpush.bf16.msra.mxu0 0
        %1693 = vmatpush.bf16.msra.mxu0 0
        %1694 = vmatpush.bf16.msra.mxu0 %v1630
        %1695 = vmatpush.bf16.msra.mxu0 %v1628
        %1696 = vmatpush.bf16.msra.mxu0 %v1626
        %1697 = vmatpush.bf16.msra.mxu0 %v1624
        %1698 = vmatpush.bf16.msra.mxu0 %v1622
        %1699 = vmatpush.bf16.msra.mxu0 %v1620
        %1700 = vmatmul.bf16.gmra.mxu0 %v1645
        %v1701 = vpop.f32.mrf.mxu0
        %v1702 = vadd.f32 0.0, %v1701
        %v1703 = vpop.f32.mrf.mxu0
        %v1704 = vadd.f32 0.0, %v1703
        %1705 = vmatmul.bf16.gmra.mxu0 %v1648
        %v1706 = vpop.f32.mrf.mxu0
        %v1707 = vadd.f32 0.0, %v1706
        %v1708 = vpop.f32.mrf.mxu0
        %v1709 = vadd.f32 0.0, %v1708
        %1710 = vmatmul.bf16.gmra.mxu0 %v1651
        %v1711 = vpop.f32.mrf.mxu0
        %v1712 = vadd.f32 0.0, %v1711
        %v1713 = vpop.f32.mrf.mxu0
        %v1714 = vadd.f32 0.0, %v1713
        %1715 = vmatmul.bf16.gmra.mxu0 %v1654
        %v1716 = vpop.f32.mrf.mxu0
        %v1717 = vadd.f32 0.0, %v1716
        %v1718 = vpop.f32.mrf.mxu0
        %v1719 = vadd.f32 0.0, %v1718
        %1720 = vmatmul.bf16.gmra.mxu0 %v1657
        %v1721 = vpop.f32.mrf.mxu0
        %v1722 = vadd.f32 0.0, %v1721
        %v1723 = vpop.f32.mrf.mxu0
        %v1724 = vadd.f32 0.0, %v1723
        %1725 = vmatmul.bf16.gmra.mxu0 %v1660
        %v1726 = vpop.f32.mrf.mxu0
        %v1727 = vadd.f32 0.0, %v1726
        %v1728 = vpop.f32.mrf.mxu0
        %v1729 = vadd.f32 0.0, %v1728
        %1730 = vmatmul.bf16.gmra.mxu0 %v1663
        %v1731 = vpop.f32.mrf.mxu0
        %v1732 = vadd.f32 0.0, %v1731
        %v1733 = vpop.f32.mrf.mxu0
        %v1734 = vadd.f32 0.0, %v1733
        %1735 = vmatmul.bf16.gmra.mxu0 %v1666
        %v1736 = vpop.f32.mrf.mxu0
        %v1737 = vadd.f32 0.0, %v1736
        %v1738 = vpop.f32.mrf.mxu0
        %v1739 = vadd.f32 0.0, %v1738
        %1740 = vmatmul.bf16.gmra.mxu0 %v1669
        %v1741 = vpop.f32.mrf.mxu0
        %v1742 = vadd.f32 0.0, %v1741
        %v1743 = vpop.f32.mrf.mxu0
        %v1744 = vadd.f32 0.0, %v1743
        %1745 = vmatmul.bf16.gmra.mxu0 %v1672
        %v1746 = vpop.f32.mrf.mxu0
        %v1747 = vadd.f32 0.0, %v1746
        %v1748 = vpop.f32.mrf.mxu0
        %v1749 = vadd.f32 0.0, %v1748
        %1750 = vmatmul.bf16.gmra.mxu0 %v1675
        %v1751 = vpop.f32.mrf.mxu0
        %v1752 = vadd.f32 0.0, %v1751
        %v1753 = vpop.f32.mrf.mxu0
        %v1754 = vadd.f32 0.0, %v1753
        %1755 = vmatmul.bf16.gmra.mxu0 %v1678
        %v1756 = vpop.f32.mrf.mxu0
        %v1757 = vadd.f32 0.0, %v1756
        %v1758 = vpop.f32.mrf.mxu0
        %v1759 = vadd.f32 0.0, %v1758
        %1760 = vmatmul.bf16.gmra.mxu0 %v1681
        %v1761 = vpop.f32.mrf.mxu0
        %v1762 = vadd.f32 0.0, %v1761
        %v1763 = vpop.f32.mrf.mxu0
        %v1764 = vadd.f32 0.0, %v1763
        %1765 = vmatmul.bf16.gmra.mxu0 %v1684
        %v1766 = vpop.f32.mrf.mxu0
        %v1767 = vadd.f32 0.0, %v1766
        %v1768 = vpop.f32.mrf.mxu0
        %v1769 = vadd.f32 0.0, %v1768
        %1770 = vmatmul.bf16.gmra.mxu0 %v1687
        %v1771 = vpop.f32.mrf.mxu0
        %v1772 = vadd.f32 0.0, %v1771
        %v1773 = vpop.f32.mrf.mxu0
        %v1774 = vadd.f32 0.0, %v1773
        %1775 = vmatmul.bf16.gmra.mxu0 %v1690
        %v1776 = vpop.f32.mrf.mxu0
        %v1777 = vadd.f32 0.0, %v1776
        %v1778 = vpop.f32.mrf.mxu0
        %v1779 = vadd.f32 0.0, %v1778
        %1780 = vdwg.mxu0
        %1781 = vmatpush.bf16.msra.mxu0 0
        %1782 = vmatpush.bf16.msra.mxu0 0
        %1783 = vmatpush.bf16.msra.mxu0 %v1631
        %1784 = vmatpush.bf16.msra.mxu0 %v1629
        %1785 = vmatpush.bf16.msra.mxu0 %v1627
        %1786 = vmatpush.bf16.msra.mxu0 %v1625
        %1787 = vmatpush.bf16.msra.mxu0 %v1623
        %1788 = vmatpush.bf16.msra.mxu0 %v1621
        %1789 = vmatmul.bf16.gmra.mxu0 %v1645
        %v1790 = vpop.f32.mrf.mxu0
        %v1791 = vadd.f32 0.0, %v1790
        %v1792 = vpop.f32.mrf.mxu0
        %v1793 = vadd.f32 0.0, %v1792
        %1794 = vmatmul.bf16.gmra.mxu0 %v1648
        %v1795 = vpop.f32.mrf.mxu0
        %v1796 = vadd.f32 0.0, %v1795
        %v1797 = vpop.f32.mrf.mxu0
        %v1798 = vadd.f32 0.0, %v1797
        %1799 = vmatmul.bf16.gmra.mxu0 %v1651
        %v1800 = vpop.f32.mrf.mxu0
        %v1801 = vadd.f32 0.0, %v1800
        %v1802 = vpop.f32.mrf.mxu0
        %v1803 = vadd.f32 0.0, %v1802
        %1804 = vmatmul.bf16.gmra.mxu0 %v1654
        %v1805 = vpop.f32.mrf.mxu0
        %v1806 = vadd.f32 0.0, %v1805
        %v1807 = vpop.f32.mrf.mxu0
        %v1808 = vadd.f32 0.0, %v1807
        %1809 = vmatmul.bf16.gmra.mxu0 %v1657
        %v1810 = vpop.f32.mrf.mxu0
        %v1811 = vadd.f32 0.0, %v1810
        %v1812 = vpop.f32.mrf.mxu0
        %v1813 = vadd.f32 0.0, %v1812
        %1814 = vmatmul.bf16.gmra.mxu0 %v1660
        %v1815 = vpop.f32.mrf.mxu0
        %v1816 = vadd.f32 0.0, %v1815
        %v1817 = vpop.f32.mrf.mxu0
        %v1818 = vadd.f32 0.0, %v1817
        %1819 = vmatmul.bf16.gmra.mxu0 %v1663
        %v1820 = vpop.f32.mrf.mxu0
        %v1821 = vadd.f32 0.0, %v1820
        %v1822 = vpop.f32.mrf.mxu0
        %v1823 = vadd.f32 0.0, %v1822
        %1824 = vmatmul.bf16.gmra.mxu0 %v1666
        %v1825 = vpop.f32.mrf.mxu0
        %v1826 = vadd.f32 0.0, %v1825
        %v1827 = vpop.f32.mrf.mxu0
        %v1828 = vadd.f32 0.0, %v1827
        %1829 = vmatmul.bf16.gmra.mxu0 %v1669
        %v1830 = vpop.f32.mrf.mxu0
        %v1831 = vadd.f32 0.0, %v1830
        %v1832 = vpop.f32.mrf.mxu0
        %v1833 = vadd.f32 0.0, %v1832
        %1834 = vmatmul.bf16.gmra.mxu0 %v1672
        %v1835 = vpop.f32.mrf.mxu0
        %v1836 = vadd.f32 0.0, %v1835
        %v1837 = vpop.f32.mrf.mxu0
        %v1838 = vadd.f32 0.0, %v1837
        %1839 = vmatmul.bf16.gmra.mxu0 %v1675
        %v1840 = vpop.f32.mrf.mxu0
        %v1841 = vadd.f32 0.0, %v1840
        %v1842 = vpop.f32.mrf.mxu0
        %v1843 = vadd.f32 0.0, %v1842
        %1844 = vmatmul.bf16.gmra.mxu0 %v1678
        %v1845 = vpop.f32.mrf.mxu0
        %v1846 = vadd.f32 0.0, %v1845
        %v1847 = vpop.f32.mrf.mxu0
        %v1848 = vadd.f32 0.0, %v1847
        %1849 = vmatmul.bf16.gmra.mxu0 %v1681
        %v1850 = vpop.f32.mrf.mxu0
        %v1851 = vadd.f32 0.0, %v1850
        %v1852 = vpop.f32.mrf.mxu0
        %v1853 = vadd.f32 0.0, %v1852
        %1854 = vmatmul.bf16.gmra.mxu0 %v1684
        %v1855 = vpop.f32.mrf.mxu0
        %v1856 = vadd.f32 0.0, %v1855
        %v1857 = vpop.f32.mrf.mxu0
        %v1858 = vadd.f32 0.0, %v1857
        %1859 = vmatmul.bf16.gmra.mxu0 %v1687
        %v1860 = vpop.f32.mrf.mxu0
        %v1861 = vadd.f32 0.0, %v1860
        %v1862 = vpop.f32.mrf.mxu0
        %v1863 = vadd.f32 0.0, %v1862
        %1864 = vmatmul.bf16.gmra.mxu0 %v1690
        %v1865 = vpop.f32.mrf.mxu0
        %v1866 = vadd.f32 0.0, %v1865
        %v1867 = vpop.f32.mrf.mxu0
        %v1868 = vadd.f32 0.0, %v1867
        %1869 = vdwg.mxu0
        %v1870 = vadd.f32 %v1459, %v1702
        %v1871 = vadd.f32 %v1460, %v1791
        %v1872 = vadd.f32 %v1461, %v1704
        %v1873 = vadd.f32 %v1462, %v1793
        %v1874 = vadd.f32 %v1463, %v1707
        %v1875 = vadd.f32 %v1464, %v1796
        %v1876 = vadd.f32 %v1465, %v1709
        %v1877 = vadd.f32 %v1466, %v1798
        %v1878 = vadd.f32 %v1467, %v1712
        %v1879 = vadd.f32 %v1468, %v1801
        %v1880 = vadd.f32 %v1469, %v1714
        %v1881 = vadd.f32 %v1470, %v1803
        %v1882 = vadd.f32 %v1471, %v1717
        %v1883 = vadd.f32 %v1472, %v1806
        %v1884 = vadd.f32 %v1473, %v1719
        %v1885 = vadd.f32 %v1474, %v1808
        %v1886 = vadd.f32 %v1475, %v1722
        %v1887 = vadd.f32 %v1476, %v1811
        %v1888 = vadd.f32 %v1477, %v1724
        %v1889 = vadd.f32 %v1478, %v1813
        %v1890 = vadd.f32 %v1479, %v1727
        %v1891 = vadd.f32 %v1480, %v1816
        %v1892 = vadd.f32 %v1481, %v1729
        %v1893 = vadd.f32 %v1482, %v1818
        %v1894 = vadd.f32 %v1483, %v1732
        %v1895 = vadd.f32 %v1484, %v1821
        %v1896 = vadd.f32 %v1485, %v1734
        %v1897 = vadd.f32 %v1486, %v1823
        %v1898 = vadd.f32 %v1487, %v1737
        %v1899 = vadd.f32 %v1488, %v1826
        %v1900 = vadd.f32 %v1489, %v1739
        %v1901 = vadd.f32 %v1490, %v1828
        %v1902 = vadd.f32 %v1491, %v1742
        %v1903 = vadd.f32 %v1492, %v1831
        %v1904 = vadd.f32 %v1493, %v1744
        %v1905 = vadd.f32 %v1494, %v1833
        %v1906 = vadd.f32 %v1495, %v1747
        %v1907 = vadd.f32 %v1496, %v1836
        %v1908 = vadd.f32 %v1497, %v1749
        %v1909 = vadd.f32 %v1498, %v1838
        %v1910 = vadd.f32 %v1499, %v1752
        %v1911 = vadd.f32 %v1500, %v1841
        %v1912 = vadd.f32 %v1501, %v1754
        %v1913 = vadd.f32 %v1502, %v1843
        %v1914 = vadd.f32 %v1503, %v1757
        %v1915 = vadd.f32 %v1504, %v1846
        %v1916 = vadd.f32 %v1505, %v1759
        %v1917 = vadd.f32 %v1506, %v1848
        %v1918 = vadd.f32 %v1507, %v1762
        %v1919 = vadd.f32 %v1508, %v1851
        %v1920 = vadd.f32 %v1509, %v1764
        %v1921 = vadd.f32 %v1510, %v1853
        %v1922 = vadd.f32 %v1511, %v1767
        %v1923 = vadd.f32 %v1512, %v1856
        %v1924 = vadd.f32 %v1513, %v1769
        %v1925 = vadd.f32 %v1514, %v1858
        %v1926 = vadd.f32 %v1515, %v1772
        %v1927 = vadd.f32 %v1516, %v1861
        %v1928 = vadd.f32 %v1517, %v1774
        %v1929 = vadd.f32 %v1518, %v1863
        %v1930 = vadd.f32 %v1519, %v1777
        %v1931 = vadd.f32 %v1520, %v1866
        %v1932 = vadd.f32 %v1521, %v1779
        %v1933 = vadd.f32 %v1522, %v1868
        %s1934 = scalar_lea.vmem %s1, 288
        %v1935 = vld [vmem:[%s1934] sm:$0xff]
        %v1936 = vld [vmem:[%s1934 + $0x8] sm:$0xff]
        %v1937 = vld [vmem:[%s1934 + $0x10] sm:$0xff]
        %v1938 = vld [vmem:[%s1934 + $0x18] sm:$0xff]
        %v1939 = vld [vmem:[%s1934 + $0x20] sm:$0xff]
        %v1940 = vld [vmem:[%s1934 + $0x28] sm:$0xff]
        %v1941 = vld [vmem:[%s1934 + $0x30] sm:$0xff]
        %v1942 = vld [vmem:[%s1934 + $0x38] sm:$0xff]
        %v1943 = vld [vmem:[%s1934 + $0x40] sm:$0xff]
        %v1944 = vld [vmem:[%s1934 + $0x48] sm:$0xff]
        %v1945 = vld [vmem:[%s1934 + $0x50] sm:$0xff]
        %v1946 = vld [vmem:[%s1934 + $0x58] sm:$0xff]
        %vm1947 = vsmask.f32 6400
        %v1948 = vrot.slane %v1062, 1
        %v1949 = vrot.slane %v1064, 2
        %v1950 = vor.u32 %v1948, %v1949
        %v1951 = vrot.slane %v1072, 1
        %v1952 = vrot.slane %v1068, 2
        %v1953 = vor.u32 %v1951, %v1952
        %v1954 = vsel %vm1947, %v1950, %v1953
        %v1955 = vrot.slane %v1079, 1
        %v1956 = vrot.slane %v1075, 2
        %v1957 = vor.u32 %v1955, %v1956
        %v1958 = vsel %vm1947, %v1953, %v1957
        %v1959 = vrot.slane %v1086, 1
        %v1960 = vrot.slane %v1082, 2
        %v1961 = vor.u32 %v1959, %v1960
        %v1962 = vsel %vm1947, %v1957, %v1961
        %v1963 = vrot.slane %v1093, 1
        %v1964 = vrot.slane %v1089, 2
        %v1965 = vor.u32 %v1963, %v1964
        %v1966 = vsel %vm1947, %v1961, %v1965
        %v1967 = vrot.slane %v1100, 1
        %v1968 = vrot.slane %v1096, 2
        %v1969 = vor.u32 %v1967, %v1968
        %v1970 = vsel %vm1947, %v1965, %v1969
        %v1971 = vrot.slane %v1107, 1
        %v1972 = vrot.slane %v1103, 2
        %v1973 = vor.u32 %v1971, %v1972
        %v1974 = vsel %vm1947, %v1969, %v1973
        %v1975 = vrot.slane %v1114, 1
        %v1976 = vrot.slane %v1110, 2
        %v1977 = vor.u32 %v1975, %v1976
        %v1978 = vsel %vm1947, %v1973, %v1977
        %v1979 = vrot.slane %v1121, 1
        %v1980 = vrot.slane %v1117, 2
        %v1981 = vor.u32 %v1979, %v1980
        %v1982 = vsel %vm1947, %v1977, %v1981
        %v1983 = vrot.slane %v1128, 1
        %v1984 = vrot.slane %v1124, 2
        %v1985 = vor.u32 %v1983, %v1984
        %v1986 = vsel %vm1947, %v1981, %v1985
        %v1987 = vrot.slane %v1135, 1
        %v1988 = vrot.slane %v1131, 2
        %v1989 = vor.u32 %v1987, %v1988
        %v1990 = vsel %vm1947, %v1985, %v1989
        %v1991 = vrot.slane %v1142, 1
        %v1992 = vrot.slane %v1138, 2
        %v1993 = vor.u32 %v1991, %v1992
        %v1994 = vsel %vm1947, %v1989, %v1993
        %v1995 = vrot.slane %v1149, 1
        %v1996 = vrot.slane %v1145, 2
        %v1997 = vor.u32 %v1995, %v1996
        %v1998 = vsel %vm1947, %v1993, %v1997
        %v1999 = vrot.slane %v1156, 1
        %v2000 = vrot.slane %v1152, 2
        %v2001 = vor.u32 %v1999, %v2000
        %v2002 = vsel %vm1947, %v1997, %v2001
        %v2003 = vrot.slane %v1163, 1
        %v2004 = vrot.slane %v1159, 2
        %v2005 = vor.u32 %v2003, %v2004
        %v2006 = vsel %vm1947, %v2001, %v2005
        %v2007 = vrot.slane %v1170, 1
        %v2008 = vrot.slane %v1166, 2
        %v2009 = vor.u32 %v2007, %v2008
        %v2010 = vsel %vm1947, %v2005, %v2009
        %v2023 = vunpack.c.l.b16 %v1935
        %v2024 = vunpack.c.h.b16 %v1935
        %v2025 = vunpack.c.l.b16 %v1936
        %v2026 = vunpack.c.h.b16 %v1936
        %v2027 = vunpack.c.l.b16 %v1937
        %v2028 = vunpack.c.h.b16 %v1937
        %v2029 = vunpack.c.l.b16 %v1938
        %v2030 = vunpack.c.h.b16 %v1938
        %v2031 = vunpack.c.l.b16 %v1939
        %v2032 = vunpack.c.h.b16 %v1939
        %v2033 = vunpack.c.l.b16 %v1940
        %v2034 = vunpack.c.h.b16 %v1940
        %v2035 = vunpack.c.l.b16 %v1941
        %v2036 = vunpack.c.h.b16 %v1941
        %v2037 = vunpack.c.l.b16 %v1942
        %v2038 = vunpack.c.h.b16 %v1942
        %v2039 = vunpack.c.l.b16 %v1943
        %v2040 = vunpack.c.h.b16 %v1943
        %v2041 = vunpack.c.l.b16 %v1944
        %v2042 = vunpack.c.h.b16 %v1944
        %v2043 = vunpack.c.l.b16 %v1945
        %v2044 = vunpack.c.h.b16 %v1945
        %v2045 = vunpack.c.l.b16 %v1946
        %v2046 = vunpack.c.h.b16 %v1946
        %v2047 = vpack.c.b16 %v2025, %v2023
        %v2048 = vpack.c.b16 %v2026, %v2024
        %v2049 = vpack.c.b16 %v2029, %v2027
        %v2050 = vpack.c.b16 %v2030, %v2028
        %v2051 = vpack.c.b16 %v2033, %v2031
        %v2052 = vpack.c.b16 %v2034, %v2032
        %v2053 = vpack.c.b16 %v2037, %v2035
        %v2054 = vpack.c.b16 %v2038, %v2036
        %v2055 = vpack.c.b16 %v2041, %v2039
        %v2056 = vpack.c.b16 %v2042, %v2040
        %v2057 = vpack.c.b16 %v2045, %v2043
        %v2058 = vpack.c.b16 %v2046, %v2044
        %v2072 = vsel %vm757, %v1954, 0
        %v2075 = vsel %vm757, %v1958, 0
        %v2078 = vsel %vm757, %v1962, 0
        %v2081 = vsel %vm757, %v1966, 0
        %v2084 = vsel %vm757, %v1970, 0
        %v2087 = vsel %vm757, %v1974, 0
        %v2090 = vsel %vm757, %v1978, 0
        %v2093 = vsel %vm757, %v1982, 0
        %v2096 = vsel %vm757, %v1986, 0
        %v2099 = vsel %vm757, %v1990, 0
        %v2102 = vsel %vm757, %v1994, 0
        %v2105 = vsel %vm757, %v1998, 0
        %v2108 = vsel %vm757, %v2002, 0
        %v2111 = vsel %vm757, %v2006, 0
        %v2114 = vsel %vm757, %v2010, 0
        %v2117 = vsel %vm757, %v2009, 0
        %2119 = vmatpush.bf16.msra.mxu0 0
        %2120 = vmatpush.bf16.msra.mxu0 0
        %2121 = vmatpush.bf16.msra.mxu0 %v2057
        %2122 = vmatpush.bf16.msra.mxu0 %v2055
        %2123 = vmatpush.bf16.msra.mxu0 %v2053
        %2124 = vmatpush.bf16.msra.mxu0 %v2051
        %2125 = vmatpush.bf16.msra.mxu0 %v2049
        %2126 = vmatpush.bf16.msra.mxu0 %v2047
        %2127 = vmatmul.bf16.gmra.mxu0 %v2072
        %v2128 = vpop.f32.mrf.mxu0
        %v2129 = vadd.f32 0.0, %v2128
        %v2130 = vpop.f32.mrf.mxu0
        %v2131 = vadd.f32 0.0, %v2130
        %2132 = vmatmul.bf16.gmra.mxu0 %v2075
        %v2133 = vpop.f32.mrf.mxu0
        %v2134 = vadd.f32 0.0, %v2133
        %v2135 = vpop.f32.mrf.mxu0
        %v2136 = vadd.f32 0.0, %v2135
        %2137 = vmatmul.bf16.gmra.mxu0 %v2078
        %v2138 = vpop.f32.mrf.mxu0
        %v2139 = vadd.f32 0.0, %v2138
        %v2140 = vpop.f32.mrf.mxu0
        %v2141 = vadd.f32 0.0, %v2140
        %2142 = vmatmul.bf16.gmra.mxu0 %v2081
        %v2143 = vpop.f32.mrf.mxu0
        %v2144 = vadd.f32 0.0, %v2143
        %v2145 = vpop.f32.mrf.mxu0
        %v2146 = vadd.f32 0.0, %v2145
        %2147 = vmatmul.bf16.gmra.mxu0 %v2084
        %v2148 = vpop.f32.mrf.mxu0
        %v2149 = vadd.f32 0.0, %v2148
        %v2150 = vpop.f32.mrf.mxu0
        %v2151 = vadd.f32 0.0, %v2150
        %2152 = vmatmul.bf16.gmra.mxu0 %v2087
        %v2153 = vpop.f32.mrf.mxu0
        %v2154 = vadd.f32 0.0, %v2153
        %v2155 = vpop.f32.mrf.mxu0
        %v2156 = vadd.f32 0.0, %v2155
        %2157 = vmatmul.bf16.gmra.mxu0 %v2090
        %v2158 = vpop.f32.mrf.mxu0
        %v2159 = vadd.f32 0.0, %v2158
        %v2160 = vpop.f32.mrf.mxu0
        %v2161 = vadd.f32 0.0, %v2160
        %2162 = vmatmul.bf16.gmra.mxu0 %v2093
        %v2163 = vpop.f32.mrf.mxu0
        %v2164 = vadd.f32 0.0, %v2163
        %v2165 = vpop.f32.mrf.mxu0
        %v2166 = vadd.f32 0.0, %v2165
        %2167 = vmatmul.bf16.gmra.mxu0 %v2096
        %v2168 = vpop.f32.mrf.mxu0
        %v2169 = vadd.f32 0.0, %v2168
        %v2170 = vpop.f32.mrf.mxu0
        %v2171 = vadd.f32 0.0, %v2170
        %2172 = vmatmul.bf16.gmra.mxu0 %v2099
        %v2173 = vpop.f32.mrf.mxu0
        %v2174 = vadd.f32 0.0, %v2173
        %v2175 = vpop.f32.mrf.mxu0
        %v2176 = vadd.f32 0.0, %v2175
        %2177 = vmatmul.bf16.gmra.mxu0 %v2102
        %v2178 = vpop.f32.mrf.mxu0
        %v2179 = vadd.f32 0.0, %v2178
        %v2180 = vpop.f32.mrf.mxu0
        %v2181 = vadd.f32 0.0, %v2180
        %2182 = vmatmul.bf16.gmra.mxu0 %v2105
        %v2183 = vpop.f32.mrf.mxu0
        %v2184 = vadd.f32 0.0, %v2183
        %v2185 = vpop.f32.mrf.mxu0
        %v2186 = vadd.f32 0.0, %v2185
        %2187 = vmatmul.bf16.gmra.mxu0 %v2108
        %v2188 = vpop.f32.mrf.mxu0
        %v2189 = vadd.f32 0.0, %v2188
        %v2190 = vpop.f32.mrf.mxu0
        %v2191 = vadd.f32 0.0, %v2190
        %2192 = vmatmul.bf16.gmra.mxu0 %v2111
        %v2193 = vpop.f32.mrf.mxu0
        %v2194 = vadd.f32 0.0, %v2193
        %v2195 = vpop.f32.mrf.mxu0
        %v2196 = vadd.f32 0.0, %v2195
        %2197 = vmatmul.bf16.gmra.mxu0 %v2114
        %v2198 = vpop.f32.mrf.mxu0
        %v2199 = vadd.f32 0.0, %v2198
        %v2200 = vpop.f32.mrf.mxu0
        %v2201 = vadd.f32 0.0, %v2200
        %2202 = vmatmul.bf16.gmra.mxu0 %v2117
        %v2203 = vpop.f32.mrf.mxu0
        %v2204 = vadd.f32 0.0, %v2203
        %v2205 = vpop.f32.mrf.mxu0
        %v2206 = vadd.f32 0.0, %v2205
        %2207 = vdwg.mxu0
        %2208 = vmatpush.bf16.msra.mxu0 0
        %2209 = vmatpush.bf16.msra.mxu0 0
        %2210 = vmatpush.bf16.msra.mxu0 %v2058
        %2211 = vmatpush.bf16.msra.mxu0 %v2056
        %2212 = vmatpush.bf16.msra.mxu0 %v2054
        %2213 = vmatpush.bf16.msra.mxu0 %v2052
        %2214 = vmatpush.bf16.msra.mxu0 %v2050
        %2215 = vmatpush.bf16.msra.mxu0 %v2048
        %2216 = vmatmul.bf16.gmra.mxu0 %v2072
        %v2217 = vpop.f32.mrf.mxu0
        %v2218 = vadd.f32 0.0, %v2217
        %v2219 = vpop.f32.mrf.mxu0
        %v2220 = vadd.f32 0.0, %v2219
        %2221 = vmatmul.bf16.gmra.mxu0 %v2075
        %v2222 = vpop.f32.mrf.mxu0
        %v2223 = vadd.f32 0.0, %v2222
        %v2224 = vpop.f32.mrf.mxu0
        %v2225 = vadd.f32 0.0, %v2224
        %2226 = vmatmul.bf16.gmra.mxu0 %v2078
        %v2227 = vpop.f32.mrf.mxu0
        %v2228 = vadd.f32 0.0, %v2227
        %v2229 = vpop.f32.mrf.mxu0
        %v2230 = vadd.f32 0.0, %v2229
        %2231 = vmatmul.bf16.gmra.mxu0 %v2081
        %v2232 = vpop.f32.mrf.mxu0
        %v2233 = vadd.f32 0.0, %v2232
        %v2234 = vpop.f32.mrf.mxu0
        %v2235 = vadd.f32 0.0, %v2234
        %2236 = vmatmul.bf16.gmra.mxu0 %v2084
        %v2237 = vpop.f32.mrf.mxu0
        %v2238 = vadd.f32 0.0, %v2237
        %v2239 = vpop.f32.mrf.mxu0
        %v2240 = vadd.f32 0.0, %v2239
        %2241 = vmatmul.bf16.gmra.mxu0 %v2087
        %v2242 = vpop.f32.mrf.mxu0
        %v2243 = vadd.f32 0.0, %v2242
        %v2244 = vpop.f32.mrf.mxu0
        %v2245 = vadd.f32 0.0, %v2244
        %2246 = vmatmul.bf16.gmra.mxu0 %v2090
        %v2247 = vpop.f32.mrf.mxu0
        %v2248 = vadd.f32 0.0, %v2247
        %v2249 = vpop.f32.mrf.mxu0
        %v2250 = vadd.f32 0.0, %v2249
        %2251 = vmatmul.bf16.gmra.mxu0 %v2093
        %v2252 = vpop.f32.mrf.mxu0
        %v2253 = vadd.f32 0.0, %v2252
        %v2254 = vpop.f32.mrf.mxu0
        %v2255 = vadd.f32 0.0, %v2254
        %2256 = vmatmul.bf16.gmra.mxu0 %v2096
        %v2257 = vpop.f32.mrf.mxu0
        %v2258 = vadd.f32 0.0, %v2257
        %v2259 = vpop.f32.mrf.mxu0
        %v2260 = vadd.f32 0.0, %v2259
        %2261 = vmatmul.bf16.gmra.mxu0 %v2099
        %v2262 = vpop.f32.mrf.mxu0
        %v2263 = vadd.f32 0.0, %v2262
        %v2264 = vpop.f32.mrf.mxu0
        %v2265 = vadd.f32 0.0, %v2264
        %2266 = vmatmul.bf16.gmra.mxu0 %v2102
        %v2267 = vpop.f32.mrf.mxu0
        %v2268 = vadd.f32 0.0, %v2267
        %v2269 = vpop.f32.mrf.mxu0
        %v2270 = vadd.f32 0.0, %v2269
        %2271 = vmatmul.bf16.gmra.mxu0 %v2105
        %v2272 = vpop.f32.mrf.mxu0
        %v2273 = vadd.f32 0.0, %v2272
        %v2274 = vpop.f32.mrf.mxu0
        %v2275 = vadd.f32 0.0, %v2274
        %2276 = vmatmul.bf16.gmra.mxu0 %v2108
        %v2277 = vpop.f32.mrf.mxu0
        %v2278 = vadd.f32 0.0, %v2277
        %v2279 = vpop.f32.mrf.mxu0
        %v2280 = vadd.f32 0.0, %v2279
        %2281 = vmatmul.bf16.gmra.mxu0 %v2111
        %v2282 = vpop.f32.mrf.mxu0
        %v2283 = vadd.f32 0.0, %v2282
        %v2284 = vpop.f32.mrf.mxu0
        %v2285 = vadd.f32 0.0, %v2284
        %2286 = vmatmul.bf16.gmra.mxu0 %v2114
        %v2287 = vpop.f32.mrf.mxu0
        %v2288 = vadd.f32 0.0, %v2287
        %v2289 = vpop.f32.mrf.mxu0
        %v2290 = vadd.f32 0.0, %v2289
        %2291 = vmatmul.bf16.gmra.mxu0 %v2117
        %v2292 = vpop.f32.mrf.mxu0
        %v2293 = vadd.f32 0.0, %v2292
        %v2294 = vpop.f32.mrf.mxu0
        %v2295 = vadd.f32 0.0, %v2294
        %2296 = vdwg.mxu0
        %v2297 = vadd.f32 %v1870, %v2129
        %v2298 = vadd.f32 %v1871, %v2218
        %v2299 = vadd.f32 %v1872, %v2131
        %v2300 = vadd.f32 %v1873, %v2220
        %v2301 = vadd.f32 %v1874, %v2134
        %v2302 = vadd.f32 %v1875, %v2223
        %v2303 = vadd.f32 %v1876, %v2136
        %v2304 = vadd.f32 %v1877, %v2225
        %v2305 = vadd.f32 %v1878, %v2139
        %v2306 = vadd.f32 %v1879, %v2228
        %v2307 = vadd.f32 %v1880, %v2141
        %v2308 = vadd.f32 %v1881, %v2230
        %v2309 = vadd.f32 %v1882, %v2144
        %v2310 = vadd.f32 %v1883, %v2233
        %v2311 = vadd.f32 %v1884, %v2146
        %v2312 = vadd.f32 %v1885, %v2235
        %v2313 = vadd.f32 %v1886, %v2149
        %v2314 = vadd.f32 %v1887, %v2238
        %v2315 = vadd.f32 %v1888, %v2151
        %v2316 = vadd.f32 %v1889, %v2240
        %v2317 = vadd.f32 %v1890, %v2154
        %v2318 = vadd.f32 %v1891, %v2243
        %v2319 = vadd.f32 %v1892, %v2156
        %v2320 = vadd.f32 %v1893, %v2245
        %v2321 = vadd.f32 %v1894, %v2159
        %v2322 = vadd.f32 %v1895, %v2248
        %v2323 = vadd.f32 %v1896, %v2161
        %v2324 = vadd.f32 %v1897, %v2250
        %v2325 = vadd.f32 %v1898, %v2164
        %v2326 = vadd.f32 %v1899, %v2253
        %v2327 = vadd.f32 %v1900, %v2166
        %v2328 = vadd.f32 %v1901, %v2255
        %v2329 = vadd.f32 %v1902, %v2169
        %v2330 = vadd.f32 %v1903, %v2258
        %v2331 = vadd.f32 %v1904, %v2171
        %v2332 = vadd.f32 %v1905, %v2260
        %v2333 = vadd.f32 %v1906, %v2174
        %v2334 = vadd.f32 %v1907, %v2263
        %v2335 = vadd.f32 %v1908, %v2176
        %v2336 = vadd.f32 %v1909, %v2265
        %v2337 = vadd.f32 %v1910, %v2179
        %v2338 = vadd.f32 %v1911, %v2268
        %v2339 = vadd.f32 %v1912, %v2181
        %v2340 = vadd.f32 %v1913, %v2270
        %v2341 = vadd.f32 %v1914, %v2184
        %v2342 = vadd.f32 %v1915, %v2273
        %v2343 = vadd.f32 %v1916, %v2186
        %v2344 = vadd.f32 %v1917, %v2275
        %v2345 = vadd.f32 %v1918, %v2189
        %v2346 = vadd.f32 %v1919, %v2278
        %v2347 = vadd.f32 %v1920, %v2191
        %v2348 = vadd.f32 %v1921, %v2280
        %v2349 = vadd.f32 %v1922, %v2194
        %v2350 = vadd.f32 %v1923, %v2283
        %v2351 = vadd.f32 %v1924, %v2196
        %v2352 = vadd.f32 %v1925, %v2285
        %v2353 = vadd.f32 %v1926, %v2199
        %v2354 = vadd.f32 %v1927, %v2288
        %v2355 = vadd.f32 %v1928, %v2201
        %v2356 = vadd.f32 %v1929, %v2290
        %v2357 = vadd.f32 %v1930, %v2204
        %v2358 = vadd.f32 %v1931, %v2293
        %v2359 = vadd.f32 %v1932, %v2206
        %v2360 = vadd.f32 %v1933, %v2295
        %s2361 = scalar_lea.vmem %s1, 384
        %v2362 = vld [vmem:[%s2361] sm:$0xff]
        %v2363 = vld [vmem:[%s2361 + $0x8] sm:$0xff]
        %v2364 = vld [vmem:[%s2361 + $0x10] sm:$0xff]
        %v2365 = vld [vmem:[%s2361 + $0x18] sm:$0xff]
        %v2366 = vld [vmem:[%s2361 + $0x20] sm:$0xff]
        %v2367 = vld [vmem:[%s2361 + $0x28] sm:$0xff]
        %v2368 = vld [vmem:[%s2361 + $0x30] sm:$0xff]
        %v2369 = vld [vmem:[%s2361 + $0x38] sm:$0xff]
        %v2370 = vld [vmem:[%s2361 + $0x40] sm:$0xff]
        %v2371 = vld [vmem:[%s2361 + $0x48] sm:$0xff]
        %v2372 = vld [vmem:[%s2361 + $0x50] sm:$0xff]
        %v2373 = vld [vmem:[%s2361 + $0x58] sm:$0xff]
        %vm2374 = vcmask 1045504
        %v2375 = vrot.slane %v669, 2
        %v2376 = vrot.slane %v670, 2
        %v2377 = vsel %vm2374, %v2375, %v2376
        %v2378 = vrot.slane %v671, 2
        %v2379 = vsel %vm2374, %v2376, %v2378
        %v2380 = vrot.slane %v672, 2
        %v2381 = vsel %vm2374, %v2378, %v2380
        %v2382 = vrot.slane %v673, 2
        %v2383 = vsel %vm2374, %v2380, %v2382
        %v2384 = vrot.slane %v674, 2
        %v2385 = vsel %vm2374, %v2382, %v2384
        %v2386 = vrot.slane %v675, 2
        %v2387 = vsel %vm2374, %v2384, %v2386
        %v2388 = vrot.slane %v676, 2
        %v2389 = vsel %vm2374, %v2386, %v2388
        %v2390 = vrot.slane %v677, 2
        %v2391 = vsel %vm2374, %v2388, %v2390
        %v2392 = vrot.slane %v678, 2
        %v2393 = vsel %vm2374, %v2390, %v2392
        %v2394 = vrot.slane %v679, 2
        %v2395 = vsel %vm2374, %v2392, %v2394
        %v2396 = vrot.slane %v680, 2
        %v2397 = vsel %vm2374, %v2394, %v2396
        %v2398 = vrot.slane %v681, 2
        %v2399 = vsel %vm2374, %v2396, %v2398
        %v2400 = vrot.slane %v682, 2
        %v2401 = vsel %vm2374, %v2398, %v2400
        %v2402 = vrot.slane %v683, 2
        %v2403 = vsel %vm2374, %v2400, %v2402
        %v2404 = vrot.slane %v684, 2
        %v2405 = vsel %vm2374, %v2402, %v2404
        %v2418 = vunpack.c.l.b16 %v2362
        %v2419 = vunpack.c.h.b16 %v2362
        %v2420 = vunpack.c.l.b16 %v2363
        %v2421 = vunpack.c.h.b16 %v2363
        %v2422 = vunpack.c.l.b16 %v2364
        %v2423 = vunpack.c.h.b16 %v2364
        %v2424 = vunpack.c.l.b16 %v2365
        %v2425 = vunpack.c.h.b16 %v2365
        %v2426 = vunpack.c.l.b16 %v2366
        %v2427 = vunpack.c.h.b16 %v2366
        %v2428 = vunpack.c.l.b16 %v2367
        %v2429 = vunpack.c.h.b16 %v2367
        %v2430 = vunpack.c.l.b16 %v2368
        %v2431 = vunpack.c.h.b16 %v2368
        %v2432 = vunpack.c.l.b16 %v2369
        %v2433 = vunpack.c.h.b16 %v2369
        %v2434 = vunpack.c.l.b16 %v2370
        %v2435 = vunpack.c.h.b16 %v2370
        %v2436 = vunpack.c.l.b16 %v2371
        %v2437 = vunpack.c.h.b16 %v2371
        %v2438 = vunpack.c.l.b16 %v2372
        %v2439 = vunpack.c.h.b16 %v2372
        %v2440 = vunpack.c.l.b16 %v2373
        %v2441 = vunpack.c.h.b16 %v2373
        %v2442 = vpack.c.b16 %v2420, %v2418
        %v2443 = vpack.c.b16 %v2421, %v2419
        %v2444 = vpack.c.b16 %v2424, %v2422
        %v2445 = vpack.c.b16 %v2425, %v2423
        %v2446 = vpack.c.b16 %v2428, %v2426
        %v2447 = vpack.c.b16 %v2429, %v2427
        %v2448 = vpack.c.b16 %v2432, %v2430
        %v2449 = vpack.c.b16 %v2433, %v2431
        %v2450 = vpack.c.b16 %v2436, %v2434
        %v2451 = vpack.c.b16 %v2437, %v2435
        %v2452 = vpack.c.b16 %v2440, %v2438
        %v2453 = vpack.c.b16 %v2441, %v2439
        %v2467 = vsel %vm757, %v2377, 0
        %v2470 = vsel %vm757, %v2379, 0
        %v2473 = vsel %vm757, %v2381, 0
        %v2476 = vsel %vm757, %v2383, 0
        %v2479 = vsel %vm757, %v2385, 0
        %v2482 = vsel %vm757, %v2387, 0
        %v2485 = vsel %vm757, %v2389, 0
        %v2488 = vsel %vm757, %v2391, 0
        %v2491 = vsel %vm757, %v2393, 0
        %v2494 = vsel %vm757, %v2395, 0
        %v2497 = vsel %vm757, %v2397, 0
        %v2500 = vsel %vm757, %v2399, 0
        %v2503 = vsel %vm757, %v2401, 0
        %v2506 = vsel %vm757, %v2403, 0
        %v2509 = vsel %vm757, %v2405, 0
        %v2512 = vsel %vm757, %v2404, 0
        %2514 = vmatpush.bf16.msra.mxu0 0
        %2515 = vmatpush.bf16.msra.mxu0 0
        %2516 = vmatpush.bf16.msra.mxu0 %v2452
        %2517 = vmatpush.bf16.msra.mxu0 %v2450
        %2518 = vmatpush.bf16.msra.mxu0 %v2448
        %2519 = vmatpush.bf16.msra.mxu0 %v2446
        %2520 = vmatpush.bf16.msra.mxu0 %v2444
        %2521 = vmatpush.bf16.msra.mxu0 %v2442
        %2522 = vmatmul.bf16.gmra.mxu0 %v2467
        %v2523 = vpop.f32.mrf.mxu0
        %v2524 = vadd.f32 0.0, %v2523
        %v2525 = vpop.f32.mrf.mxu0
        %v2526 = vadd.f32 0.0, %v2525
        %2527 = vmatmul.bf16.gmra.mxu0 %v2470
        %v2528 = vpop.f32.mrf.mxu0
        %v2529 = vadd.f32 0.0, %v2528
        %v2530 = vpop.f32.mrf.mxu0
        %v2531 = vadd.f32 0.0, %v2530
        %2532 = vmatmul.bf16.gmra.mxu0 %v2473
        %v2533 = vpop.f32.mrf.mxu0
        %v2534 = vadd.f32 0.0, %v2533
        %v2535 = vpop.f32.mrf.mxu0
        %v2536 = vadd.f32 0.0, %v2535
        %2537 = vmatmul.bf16.gmra.mxu0 %v2476
        %v2538 = vpop.f32.mrf.mxu0
        %v2539 = vadd.f32 0.0, %v2538
        %v2540 = vpop.f32.mrf.mxu0
        %v2541 = vadd.f32 0.0, %v2540
        %2542 = vmatmul.bf16.gmra.mxu0 %v2479
        %v2543 = vpop.f32.mrf.mxu0
        %v2544 = vadd.f32 0.0, %v2543
        %v2545 = vpop.f32.mrf.mxu0
        %v2546 = vadd.f32 0.0, %v2545
        %2547 = vmatmul.bf16.gmra.mxu0 %v2482
        %v2548 = vpop.f32.mrf.mxu0
        %v2549 = vadd.f32 0.0, %v2548
        %v2550 = vpop.f32.mrf.mxu0
        %v2551 = vadd.f32 0.0, %v2550
        %2552 = vmatmul.bf16.gmra.mxu0 %v2485
        %v2553 = vpop.f32.mrf.mxu0
        %v2554 = vadd.f32 0.0, %v2553
        %v2555 = vpop.f32.mrf.mxu0
        %v2556 = vadd.f32 0.0, %v2555
        %2557 = vmatmul.bf16.gmra.mxu0 %v2488
        %v2558 = vpop.f32.mrf.mxu0
        %v2559 = vadd.f32 0.0, %v2558
        %v2560 = vpop.f32.mrf.mxu0
        %v2561 = vadd.f32 0.0, %v2560
        %2562 = vmatmul.bf16.gmra.mxu0 %v2491
        %v2563 = vpop.f32.mrf.mxu0
        %v2564 = vadd.f32 0.0, %v2563
        %v2565 = vpop.f32.mrf.mxu0
        %v2566 = vadd.f32 0.0, %v2565
        %2567 = vmatmul.bf16.gmra.mxu0 %v2494
        %v2568 = vpop.f32.mrf.mxu0
        %v2569 = vadd.f32 0.0, %v2568
        %v2570 = vpop.f32.mrf.mxu0
        %v2571 = vadd.f32 0.0, %v2570
        %2572 = vmatmul.bf16.gmra.mxu0 %v2497
        %v2573 = vpop.f32.mrf.mxu0
        %v2574 = vadd.f32 0.0, %v2573
        %v2575 = vpop.f32.mrf.mxu0
        %v2576 = vadd.f32 0.0, %v2575
        %2577 = vmatmul.bf16.gmra.mxu0 %v2500
        %v2578 = vpop.f32.mrf.mxu0
        %v2579 = vadd.f32 0.0, %v2578
        %v2580 = vpop.f32.mrf.mxu0
        %v2581 = vadd.f32 0.0, %v2580
        %2582 = vmatmul.bf16.gmra.mxu0 %v2503
        %v2583 = vpop.f32.mrf.mxu0
        %v2584 = vadd.f32 0.0, %v2583
        %v2585 = vpop.f32.mrf.mxu0
        %v2586 = vadd.f32 0.0, %v2585
        %2587 = vmatmul.bf16.gmra.mxu0 %v2506
        %v2588 = vpop.f32.mrf.mxu0
        %v2589 = vadd.f32 0.0, %v2588
        %v2590 = vpop.f32.mrf.mxu0
        %v2591 = vadd.f32 0.0, %v2590
        %2592 = vmatmul.bf16.gmra.mxu0 %v2509
        %v2593 = vpop.f32.mrf.mxu0
        %v2594 = vadd.f32 0.0, %v2593
        %v2595 = vpop.f32.mrf.mxu0
        %v2596 = vadd.f32 0.0, %v2595
        %2597 = vmatmul.bf16.gmra.mxu0 %v2512
        %v2598 = vpop.f32.mrf.mxu0
        %v2599 = vadd.f32 0.0, %v2598
        %v2600 = vpop.f32.mrf.mxu0
        %v2601 = vadd.f32 0.0, %v2600
        %2602 = vdwg.mxu0
        %2603 = vmatpush.bf16.msra.mxu0 0
        %2604 = vmatpush.bf16.msra.mxu0 0
        %2605 = vmatpush.bf16.msra.mxu0 %v2453
        %2606 = vmatpush.bf16.msra.mxu0 %v2451
        %2607 = vmatpush.bf16.msra.mxu0 %v2449
        %2608 = vmatpush.bf16.msra.mxu0 %v2447
        %2609 = vmatpush.bf16.msra.mxu0 %v2445
        %2610 = vmatpush.bf16.msra.mxu0 %v2443
        %2611 = vmatmul.bf16.gmra.mxu0 %v2467
        %v2612 = vpop.f32.mrf.mxu0
        %v2613 = vadd.f32 0.0, %v2612
        %v2614 = vpop.f32.mrf.mxu0
        %v2615 = vadd.f32 0.0, %v2614
        %2616 = vmatmul.bf16.gmra.mxu0 %v2470
        %v2617 = vpop.f32.mrf.mxu0
        %v2618 = vadd.f32 0.0, %v2617
        %v2619 = vpop.f32.mrf.mxu0
        %v2620 = vadd.f32 0.0, %v2619
        %2621 = vmatmul.bf16.gmra.mxu0 %v2473
        %v2622 = vpop.f32.mrf.mxu0
        %v2623 = vadd.f32 0.0, %v2622
        %v2624 = vpop.f32.mrf.mxu0
        %v2625 = vadd.f32 0.0, %v2624
        %2626 = vmatmul.bf16.gmra.mxu0 %v2476
        %v2627 = vpop.f32.mrf.mxu0
        %v2628 = vadd.f32 0.0, %v2627
        %v2629 = vpop.f32.mrf.mxu0
        %v2630 = vadd.f32 0.0, %v2629
        %2631 = vmatmul.bf16.gmra.mxu0 %v2479
        %v2632 = vpop.f32.mrf.mxu0
        %v2633 = vadd.f32 0.0, %v2632
        %v2634 = vpop.f32.mrf.mxu0
        %v2635 = vadd.f32 0.0, %v2634
        %2636 = vmatmul.bf16.gmra.mxu0 %v2482
        %v2637 = vpop.f32.mrf.mxu0
        %v2638 = vadd.f32 0.0, %v2637
        %v2639 = vpop.f32.mrf.mxu0
        %v2640 = vadd.f32 0.0, %v2639
        %2641 = vmatmul.bf16.gmra.mxu0 %v2485
        %v2642 = vpop.f32.mrf.mxu0
        %v2643 = vadd.f32 0.0, %v2642
        %v2644 = vpop.f32.mrf.mxu0
        %v2645 = vadd.f32 0.0, %v2644
        %2646 = vmatmul.bf16.gmra.mxu0 %v2488
        %v2647 = vpop.f32.mrf.mxu0
        %v2648 = vadd.f32 0.0, %v2647
        %v2649 = vpop.f32.mrf.mxu0
        %v2650 = vadd.f32 0.0, %v2649
        %2651 = vmatmul.bf16.gmra.mxu0 %v2491
        %v2652 = vpop.f32.mrf.mxu0
        %v2653 = vadd.f32 0.0, %v2652
        %v2654 = vpop.f32.mrf.mxu0
        %v2655 = vadd.f32 0.0, %v2654
        %2656 = vmatmul.bf16.gmra.mxu0 %v2494
        %v2657 = vpop.f32.mrf.mxu0
        %v2658 = vadd.f32 0.0, %v2657
        %v2659 = vpop.f32.mrf.mxu0
        %v2660 = vadd.f32 0.0, %v2659
        %2661 = vmatmul.bf16.gmra.mxu0 %v2497
        %v2662 = vpop.f32.mrf.mxu0
        %v2663 = vadd.f32 0.0, %v2662
        %v2664 = vpop.f32.mrf.mxu0
        %v2665 = vadd.f32 0.0, %v2664
        %2666 = vmatmul.bf16.gmra.mxu0 %v2500
        %v2667 = vpop.f32.mrf.mxu0
        %v2668 = vadd.f32 0.0, %v2667
        %v2669 = vpop.f32.mrf.mxu0
        %v2670 = vadd.f32 0.0, %v2669
        %2671 = vmatmul.bf16.gmra.mxu0 %v2503
        %v2672 = vpop.f32.mrf.mxu0
        %v2673 = vadd.f32 0.0, %v2672
        %v2674 = vpop.f32.mrf.mxu0
        %v2675 = vadd.f32 0.0, %v2674
        %2676 = vmatmul.bf16.gmra.mxu0 %v2506
        %v2677 = vpop.f32.mrf.mxu0
        %v2678 = vadd.f32 0.0, %v2677
        %v2679 = vpop.f32.mrf.mxu0
        %v2680 = vadd.f32 0.0, %v2679
        %2681 = vmatmul.bf16.gmra.mxu0 %v2509
        %v2682 = vpop.f32.mrf.mxu0
        %v2683 = vadd.f32 0.0, %v2682
        %v2684 = vpop.f32.mrf.mxu0
        %v2685 = vadd.f32 0.0, %v2684
        %2686 = vmatmul.bf16.gmra.mxu0 %v2512
        %v2687 = vpop.f32.mrf.mxu0
        %v2688 = vadd.f32 0.0, %v2687
        %v2689 = vpop.f32.mrf.mxu0
        %v2690 = vadd.f32 0.0, %v2689
        %2691 = vdwg.mxu0
        %v2692 = vadd.f32 %v2297, %v2524
        %v2693 = vadd.f32 %v2298, %v2613
        %v2694 = vadd.f32 %v2299, %v2526
        %v2695 = vadd.f32 %v2300, %v2615
        %v2696 = vadd.f32 %v2301, %v2529
        %v2697 = vadd.f32 %v2302, %v2618
        %v2698 = vadd.f32 %v2303, %v2531
        %v2699 = vadd.f32 %v2304, %v2620
        %v2700 = vadd.f32 %v2305, %v2534
        %v2701 = vadd.f32 %v2306, %v2623
        %v2702 = vadd.f32 %v2307, %v2536
        %v2703 = vadd.f32 %v2308, %v2625
        %v2704 = vadd.f32 %v2309, %v2539
        %v2705 = vadd.f32 %v2310, %v2628
        %v2706 = vadd.f32 %v2311, %v2541
        %v2707 = vadd.f32 %v2312, %v2630
        %v2708 = vadd.f32 %v2313, %v2544
        %v2709 = vadd.f32 %v2314, %v2633
        %v2710 = vadd.f32 %v2315, %v2546
        %v2711 = vadd.f32 %v2316, %v2635
        %v2712 = vadd.f32 %v2317, %v2549
        %v2713 = vadd.f32 %v2318, %v2638
        %v2714 = vadd.f32 %v2319, %v2551
        %v2715 = vadd.f32 %v2320, %v2640
        %v2716 = vadd.f32 %v2321, %v2554
        %v2717 = vadd.f32 %v2322, %v2643
        %v2718 = vadd.f32 %v2323, %v2556
        %v2719 = vadd.f32 %v2324, %v2645
        %v2720 = vadd.f32 %v2325, %v2559
        %v2721 = vadd.f32 %v2326, %v2648
        %v2722 = vadd.f32 %v2327, %v2561
        %v2723 = vadd.f32 %v2328, %v2650
        %v2724 = vadd.f32 %v2329, %v2564
        %v2725 = vadd.f32 %v2330, %v2653
        %v2726 = vadd.f32 %v2331, %v2566
        %v2727 = vadd.f32 %v2332, %v2655
        %v2728 = vadd.f32 %v2333, %v2569
        %v2729 = vadd.f32 %v2334, %v2658
        %v2730 = vadd.f32 %v2335, %v2571
        %v2731 = vadd.f32 %v2336, %v2660
        %v2732 = vadd.f32 %v2337, %v2574
        %v2733 = vadd.f32 %v2338, %v2663
        %v2734 = vadd.f32 %v2339, %v2576
        %v2735 = vadd.f32 %v2340, %v2665
        %v2736 = vadd.f32 %v2341, %v2579
        %v2737 = vadd.f32 %v2342, %v2668
        %v2738 = vadd.f32 %v2343, %v2581
        %v2739 = vadd.f32 %v2344, %v2670
        %v2740 = vadd.f32 %v2345, %v2584
        %v2741 = vadd.f32 %v2346, %v2673
        %v2742 = vadd.f32 %v2347, %v2586
        %v2743 = vadd.f32 %v2348, %v2675
        %v2744 = vadd.f32 %v2349, %v2589
        %v2745 = vadd.f32 %v2350, %v2678
        %v2746 = vadd.f32 %v2351, %v2591
        %v2747 = vadd.f32 %v2352, %v2680
        %v2748 = vadd.f32 %v2353, %v2594
        %v2749 = vadd.f32 %v2354, %v2683
        %v2750 = vadd.f32 %v2355, %v2596
        %v2751 = vadd.f32 %v2356, %v2685
        %v2752 = vadd.f32 %v2357, %v2599
        %v2753 = vadd.f32 %v2358, %v2688
        %v2754 = vadd.f32 %v2359, %v2601
        %v2755 = vadd.f32 %v2360, %v2690
        %v2756 = vmax.f32 %v2692, 0.0
        %v2757 = vmax.f32 %v2693, 0.0
        %v2758 = vmax.f32 %v2694, 0.0
        %v2759 = vmax.f32 %v2695, 0.0
        %v2760 = vmax.f32 %v2696, 0.0
        %v2761 = vmax.f32 %v2697, 0.0
        %v2762 = vmax.f32 %v2698, 0.0
        %v2763 = vmax.f32 %v2699, 0.0
        %v2764 = vmax.f32 %v2700, 0.0
        %v2765 = vmax.f32 %v2701, 0.0
        %v2766 = vmax.f32 %v2702, 0.0
        %v2767 = vmax.f32 %v2703, 0.0
        %v2768 = vmax.f32 %v2704, 0.0
        %v2769 = vmax.f32 %v2705, 0.0
        %v2770 = vmax.f32 %v2706, 0.0
        %v2771 = vmax.f32 %v2707, 0.0
        %v2772 = vmax.f32 %v2708, 0.0
        %v2773 = vmax.f32 %v2709, 0.0
        %v2774 = vmax.f32 %v2710, 0.0
        %v2775 = vmax.f32 %v2711, 0.0
        %v2776 = vmax.f32 %v2712, 0.0
        %v2777 = vmax.f32 %v2713, 0.0
        %v2778 = vmax.f32 %v2714, 0.0
        %v2779 = vmax.f32 %v2715, 0.0
        %v2780 = vmax.f32 %v2716, 0.0
        %v2781 = vmax.f32 %v2717, 0.0
        %v2782 = vmax.f32 %v2718, 0.0
        %v2783 = vmax.f32 %v2719, 0.0
        %v2784 = vmax.f32 %v2720, 0.0
        %v2785 = vmax.f32 %v2721, 0.0
        %v2786 = vmax.f32 %v2722, 0.0
        %v2787 = vmax.f32 %v2723, 0.0
        %v2788 = vmax.f32 %v2724, 0.0
        %v2789 = vmax.f32 %v2725, 0.0
        %v2790 = vmax.f32 %v2726, 0.0
        %v2791 = vmax.f32 %v2727, 0.0
        %v2792 = vmax.f32 %v2728, 0.0
        %v2793 = vmax.f32 %v2729, 0.0
        %v2794 = vmax.f32 %v2730, 0.0
        %v2795 = vmax.f32 %v2731, 0.0
        %v2796 = vmax.f32 %v2732, 0.0
        %v2797 = vmax.f32 %v2733, 0.0
        %v2798 = vmax.f32 %v2734, 0.0
        %v2799 = vmax.f32 %v2735, 0.0
        %v2800 = vmax.f32 %v2736, 0.0
        %v2801 = vmax.f32 %v2737, 0.0
        %v2802 = vmax.f32 %v2738, 0.0
        %v2803 = vmax.f32 %v2739, 0.0
        %v2804 = vmax.f32 %v2740, 0.0
        %v2805 = vmax.f32 %v2741, 0.0
        %v2806 = vmax.f32 %v2742, 0.0
        %v2807 = vmax.f32 %v2743, 0.0
        %v2808 = vmax.f32 %v2744, 0.0
        %v2809 = vmax.f32 %v2745, 0.0
        %v2810 = vmax.f32 %v2746, 0.0
        %v2811 = vmax.f32 %v2747, 0.0
        %v2812 = vmax.f32 %v2748, 0.0
        %v2813 = vmax.f32 %v2749, 0.0
        %v2814 = vmax.f32 %v2750, 0.0
        %v2815 = vmax.f32 %v2751, 0.0
        %v2816 = vmax.f32 %v2752, 0.0
        %v2817 = vmax.f32 %v2753, 0.0
        %v2818 = vmax.f32 %v2754, 0.0
        %v2819 = vmax.f32 %v2755, 0.0
        %v2820 = vpack.c.bf16 %v2758, %v2756
        %v2821 = vpack.c.bf16 %v2759, %v2757
        %v2822 = vpack.c.bf16 %v2762, %v2760
        %v2823 = vpack.c.bf16 %v2763, %v2761
        %v2824 = vpack.c.bf16 %v2766, %v2764
        %v2825 = vpack.c.bf16 %v2767, %v2765
        %v2826 = vpack.c.bf16 %v2770, %v2768
        %v2827 = vpack.c.bf16 %v2771, %v2769
        %v2828 = vpack.c.bf16 %v2774, %v2772
        %v2829 = vpack.c.bf16 %v2775, %v2773
        %v2830 = vpack.c.bf16 %v2778, %v2776
        %v2831 = vpack.c.bf16 %v2779, %v2777
        %v2832 = vpack.c.bf16 %v2782, %v2780
        %v2833 = vpack.c.bf16 %v2783, %v2781
        %v2834 = vpack.c.bf16 %v2786, %v2784
        %v2835 = vpack.c.bf16 %v2787, %v2785
        %v2836 = vpack.c.bf16 %v2790, %v2788
        %v2837 = vpack.c.bf16 %v2791, %v2789
        %v2838 = vpack.c.bf16 %v2794, %v2792
        %v2839 = vpack.c.bf16 %v2795, %v2793
        %v2840 = vpack.c.bf16 %v2798, %v2796
        %v2841 = vpack.c.bf16 %v2799, %v2797
        %v2842 = vpack.c.bf16 %v2802, %v2800
        %v2843 = vpack.c.bf16 %v2803, %v2801
        %v2844 = vpack.c.bf16 %v2806, %v2804
        %v2845 = vpack.c.bf16 %v2807, %v2805
        %v2846 = vpack.c.bf16 %v2810, %v2808
        %v2847 = vpack.c.bf16 %v2811, %v2809
        %v2848 = vpack.c.bf16 %v2814, %v2812
        %v2849 = vpack.c.bf16 %v2815, %v2813
        %v2850 = vpack.c.bf16 %v2818, %v2816
        %v2851 = vpack.c.bf16 %v2819, %v2817
        %v2852 = vld [vmem:[%s3] sm:$0xff]
        %v2853 = vld [vmem:[%s3 + $0x8] sm:$0xff]
        %v2854 = vld [vmem:[%s3 + $0x10] sm:$0xff]
        %v2855 = vld [vmem:[%s3 + $0x18] sm:$0xff]
        %v2856 = vld [vmem:[%s3 + $0x20] sm:$0xff]
        %v2857 = vld [vmem:[%s3 + $0x28] sm:$0xff]
        %v2858 = vld [vmem:[%s3 + $0x30] sm:$0xff]
        %v2859 = vld [vmem:[%s3 + $0x38] sm:$0xff]
        %v2860 = vld [vmem:[%s3 + $0x40] sm:$0xff]
        %v2861 = vld [vmem:[%s3 + $0x48] sm:$0xff]
        %v2862 = vld [vmem:[%s3 + $0x50] sm:$0xff]
        %v2863 = vld [vmem:[%s3 + $0x58] sm:$0xff]
        %v2864 = vld [vmem:[%s3 + $0x60] sm:$0xff]
        %v2865 = vld [vmem:[%s3 + $0x68] sm:$0xff]
        %v2880 = vunpack.c.l.b16 %v2852
        %v2881 = vunpack.c.h.b16 %v2852
        %v2882 = vunpack.c.l.b16 %v2853
        %v2883 = vunpack.c.h.b16 %v2853
        %v2884 = vunpack.c.l.b16 %v2854
        %v2885 = vunpack.c.h.b16 %v2854
        %v2886 = vunpack.c.l.b16 %v2855
        %v2887 = vunpack.c.h.b16 %v2855
        %v2888 = vunpack.c.l.b16 %v2856
        %v2889 = vunpack.c.h.b16 %v2856
        %v2890 = vunpack.c.l.b16 %v2857
        %v2891 = vunpack.c.h.b16 %v2857
        %v2892 = vunpack.c.l.b16 %v2858
        %v2893 = vunpack.c.h.b16 %v2858
        %v2894 = vunpack.c.l.b16 %v2859
        %v2895 = vunpack.c.h.b16 %v2859
        %v2896 = vunpack.c.l.b16 %v2860
        %v2897 = vunpack.c.h.b16 %v2860
        %v2898 = vunpack.c.l.b16 %v2861
        %v2899 = vunpack.c.h.b16 %v2861
        %v2900 = vunpack.c.l.b16 %v2862
        %v2901 = vunpack.c.h.b16 %v2862
        %v2902 = vunpack.c.l.b16 %v2863
        %v2903 = vunpack.c.h.b16 %v2863
        %v2904 = vunpack.c.l.b16 %v2864
        %v2905 = vunpack.c.h.b16 %v2864
        %v2906 = vunpack.c.l.b16 %v2865
        %v2907 = vunpack.c.h.b16 %v2865
        %v2908 = vpack.c.b16 %v2882, %v2880
        %v2909 = vpack.c.b16 %v2883, %v2881
        %v2910 = vpack.c.b16 %v2886, %v2884
        %v2911 = vpack.c.b16 %v2887, %v2885
        %v2912 = vpack.c.b16 %v2890, %v2888
        %v2913 = vpack.c.b16 %v2891, %v2889
        %v2914 = vpack.c.b16 %v2894, %v2892
        %v2915 = vpack.c.b16 %v2895, %v2893
        %v2916 = vpack.c.b16 %v2898, %v2896
        %v2917 = vpack.c.b16 %v2899, %v2897
        %v2918 = vpack.c.b16 %v2902, %v2900
        %v2919 = vpack.c.b16 %v2903, %v2901
        %v2920 = vpack.c.b16 %v2906, %v2904
        %v2921 = vpack.c.b16 %v2907, %v2905
        %vm2929 = vcmask 1014784
        %v2931 = vsel %vm2929, %v2909, 0
        %v2934 = vsel %vm2929, %v2911, 0
        %v2937 = vsel %vm2929, %v2913, 0
        %v2940 = vsel %vm2929, %v2915, 0
        %v2943 = vsel %vm2929, %v2917, 0
        %v2946 = vsel %vm2929, %v2919, 0
        %v2949 = vsel %vm2929, %v2921, 0
        %vm2951 = vcmask 1045504
        %v2953 = vsel %vm2951, %v2850, 0
        %v2956 = vsel %vm2951, %v2851, 0
        %2958 = vmatpush.bf16.msra.mxu0 %v2834
        %2959 = vmatpush.bf16.msra.mxu0 %v2832
        %2960 = vmatpush.bf16.msra.mxu0 %v2830
        %2961 = vmatpush.bf16.msra.mxu0 %v2828
        %2962 = vmatpush.bf16.msra.mxu0 %v2826
        %2963 = vmatpush.bf16.msra.mxu0 %v2824
        %2964 = vmatpush.bf16.msra.mxu0 %v2822
        %2965 = vmatpush.bf16.msra.mxu0 %v2820
        %2966 = vmatmul.bf16.gmra.mxu0 %v2908
        %v2967 = vpop.f32.mrf.mxu0
        %v2968 = vadd.f32 0.0, %v2967
        %v2969 = vpop.f32.mrf.mxu0
        %v2970 = vadd.f32 0.0, %v2969
        %2971 = vmatmul.bf16.gmra.mxu0 %v2910
        %v2972 = vpop.f32.mrf.mxu0
        %v2973 = vadd.f32 0.0, %v2972
        %v2974 = vpop.f32.mrf.mxu0
        %v2975 = vadd.f32 0.0, %v2974
        %2976 = vmatmul.bf16.gmra.mxu0 %v2912
        %v2977 = vpop.f32.mrf.mxu0
        %v2978 = vadd.f32 0.0, %v2977
        %v2979 = vpop.f32.mrf.mxu0
        %v2980 = vadd.f32 0.0, %v2979
        %2981 = vmatmul.bf16.gmra.mxu0 %v2914
        %v2982 = vpop.f32.mrf.mxu0
        %v2983 = vadd.f32 0.0, %v2982
        %v2984 = vpop.f32.mrf.mxu0
        %v2985 = vadd.f32 0.0, %v2984
        %2986 = vmatmul.bf16.gmra.mxu0 %v2916
        %v2987 = vpop.f32.mrf.mxu0
        %v2988 = vadd.f32 0.0, %v2987
        %v2989 = vpop.f32.mrf.mxu0
        %v2990 = vadd.f32 0.0, %v2989
        %2991 = vmatmul.bf16.gmra.mxu0 %v2918
        %v2992 = vpop.f32.mrf.mxu0
        %v2993 = vadd.f32 0.0, %v2992
        %v2994 = vpop.f32.mrf.mxu0
        %v2995 = vadd.f32 0.0, %v2994
        %2996 = vmatmul.bf16.gmra.mxu0 %v2920
        %v2997 = vpop.f32.mrf.mxu0
        %v2998 = vadd.f32 0.0, %v2997
        %v2999 = vpop.f32.mrf.mxu0
        %v3000 = vadd.f32 0.0, %v2999
        %3001 = vdwg.mxu0
        %3002 = vmatpush.bf16.msra.mxu0 %v2953
        %3003 = vmatpush.bf16.msra.mxu0 %v2848
        %3004 = vmatpush.bf16.msra.mxu0 %v2846
        %3005 = vmatpush.bf16.msra.mxu0 %v2844
        %3006 = vmatpush.bf16.msra.mxu0 %v2842
        %3007 = vmatpush.bf16.msra.mxu0 %v2840
        %3008 = vmatpush.bf16.msra.mxu0 %v2838
        %3009 = vmatpush.bf16.msra.mxu0 %v2836
        %3010 = vmatmul.bf16.gmra.mxu0 %v2931
        %v3011 = vpop.f32.mrf.mxu0
        %v3012 = vadd.f32 %v2968, %v3011
        %v3013 = vpop.f32.mrf.mxu0
        %v3014 = vadd.f32 %v2970, %v3013
        %3015 = vmatmul.bf16.gmra.mxu0 %v2934
        %v3016 = vpop.f32.mrf.mxu0
        %v3017 = vadd.f32 %v2973, %v3016
        %v3018 = vpop.f32.mrf.mxu0
        %v3019 = vadd.f32 %v2975, %v3018
        %3020 = vmatmul.bf16.gmra.mxu0 %v2937
        %v3021 = vpop.f32.mrf.mxu0
        %v3022 = vadd.f32 %v2978, %v3021
        %v3023 = vpop.f32.mrf.mxu0
        %v3024 = vadd.f32 %v2980, %v3023
        %3025 = vmatmul.bf16.gmra.mxu0 %v2940
        %v3026 = vpop.f32.mrf.mxu0
        %v3027 = vadd.f32 %v2983, %v3026
        %v3028 = vpop.f32.mrf.mxu0
        %v3029 = vadd.f32 %v2985, %v3028
        %3030 = vmatmul.bf16.gmra.mxu0 %v2943
        %v3031 = vpop.f32.mrf.mxu0
        %v3032 = vadd.f32 %v2988, %v3031
        %v3033 = vpop.f32.mrf.mxu0
        %v3034 = vadd.f32 %v2990, %v3033
        %3035 = vmatmul.bf16.gmra.mxu0 %v2946
        %v3036 = vpop.f32.mrf.mxu0
        %v3037 = vadd.f32 %v2993, %v3036
        %v3038 = vpop.f32.mrf.mxu0
        %v3039 = vadd.f32 %v2995, %v3038
        %3040 = vmatmul.bf16.gmra.mxu0 %v2949
        %v3041 = vpop.f32.mrf.mxu0
        %v3042 = vadd.f32 %v2998, %v3041
        %v3043 = vpop.f32.mrf.mxu0
        %v3044 = vadd.f32 %v3000, %v3043
        %3045 = vdwg.mxu0
        %3046 = vmatpush.bf16.msra.mxu0 %v2835
        %3047 = vmatpush.bf16.msra.mxu0 %v2833
        %3048 = vmatpush.bf16.msra.mxu0 %v2831
        %3049 = vmatpush.bf16.msra.mxu0 %v2829
        %3050 = vmatpush.bf16.msra.mxu0 %v2827
        %3051 = vmatpush.bf16.msra.mxu0 %v2825
        %3052 = vmatpush.bf16.msra.mxu0 %v2823
        %3053 = vmatpush.bf16.msra.mxu0 %v2821
        %3054 = vmatmul.bf16.gmra.mxu0 %v2908
        %v3055 = vpop.f32.mrf.mxu0
        %v3056 = vadd.f32 0.0, %v3055
        %v3057 = vpop.f32.mrf.mxu0
        %v3058 = vadd.f32 0.0, %v3057
        %3059 = vmatmul.bf16.gmra.mxu0 %v2910
        %v3060 = vpop.f32.mrf.mxu0
        %v3061 = vadd.f32 0.0, %v3060
        %v3062 = vpop.f32.mrf.mxu0
        %v3063 = vadd.f32 0.0, %v3062
        %3064 = vmatmul.bf16.gmra.mxu0 %v2912
        %v3065 = vpop.f32.mrf.mxu0
        %v3066 = vadd.f32 0.0, %v3065
        %v3067 = vpop.f32.mrf.mxu0
        %v3068 = vadd.f32 0.0, %v3067
        %3069 = vmatmul.bf16.gmra.mxu0 %v2914
        %v3070 = vpop.f32.mrf.mxu0
        %v3071 = vadd.f32 0.0, %v3070
        %v3072 = vpop.f32.mrf.mxu0
        %v3073 = vadd.f32 0.0, %v3072
        %3074 = vmatmul.bf16.gmra.mxu0 %v2916
        %v3075 = vpop.f32.mrf.mxu0
        %v3076 = vadd.f32 0.0, %v3075
        %v3077 = vpop.f32.mrf.mxu0
        %v3078 = vadd.f32 0.0, %v3077
        %3079 = vmatmul.bf16.gmra.mxu0 %v2918
        %v3080 = vpop.f32.mrf.mxu0
        %v3081 = vadd.f32 0.0, %v3080
        %v3082 = vpop.f32.mrf.mxu0
        %v3083 = vadd.f32 0.0, %v3082
        %3084 = vmatmul.bf16.gmra.mxu0 %v2920
        %v3085 = vpop.f32.mrf.mxu0
        %v3086 = vadd.f32 0.0, %v3085
        %v3087 = vpop.f32.mrf.mxu0
        %v3088 = vadd.f32 0.0, %v3087
        %3089 = vdwg.mxu0
        %3090 = vmatpush.bf16.msra.mxu0 %v2956
        %3091 = vmatpush.bf16.msra.mxu0 %v2849
        %3092 = vmatpush.bf16.msra.mxu0 %v2847
        %3093 = vmatpush.bf16.msra.mxu0 %v2845
        %3094 = vmatpush.bf16.msra.mxu0 %v2843
        %3095 = vmatpush.bf16.msra.mxu0 %v2841
        %3096 = vmatpush.bf16.msra.mxu0 %v2839
        %3097 = vmatpush.bf16.msra.mxu0 %v2837
        %3098 = vmatmul.bf16.gmra.mxu0 %v2931
        %v3099 = vpop.f32.mrf.mxu0
        %v3100 = vadd.f32 %v3056, %v3099
        %v3101 = vpop.f32.mrf.mxu0
        %v3102 = vadd.f32 %v3058, %v3101
        %3103 = vmatmul.bf16.gmra.mxu0 %v2934
        %v3104 = vpop.f32.mrf.mxu0
        %v3105 = vadd.f32 %v3061, %v3104
        %v3106 = vpop.f32.mrf.mxu0
        %v3107 = vadd.f32 %v3063, %v3106
        %3108 = vmatmul.bf16.gmra.mxu0 %v2937
        %v3109 = vpop.f32.mrf.mxu0
        %v3110 = vadd.f32 %v3066, %v3109
        %v3111 = vpop.f32.mrf.mxu0
        %v3112 = vadd.f32 %v3068, %v3111
        %3113 = vmatmul.bf16.gmra.mxu0 %v2940
        %v3114 = vpop.f32.mrf.mxu0
        %v3115 = vadd.f32 %v3071, %v3114
        %v3116 = vpop.f32.mrf.mxu0
        %v3117 = vadd.f32 %v3073, %v3116
        %3118 = vmatmul.bf16.gmra.mxu0 %v2943
        %v3119 = vpop.f32.mrf.mxu0
        %v3120 = vadd.f32 %v3076, %v3119
        %v3121 = vpop.f32.mrf.mxu0
        %v3122 = vadd.f32 %v3078, %v3121
        %3123 = vmatmul.bf16.gmra.mxu0 %v2946
        %v3124 = vpop.f32.mrf.mxu0
        %v3125 = vadd.f32 %v3081, %v3124
        %v3126 = vpop.f32.mrf.mxu0
        %v3127 = vadd.f32 %v3083, %v3126
        %3128 = vmatmul.bf16.gmra.mxu0 %v2949
        %v3129 = vpop.f32.mrf.mxu0
        %v3130 = vadd.f32 %v3086, %v3129
        %v3131 = vpop.f32.mrf.mxu0
        %v3132 = vadd.f32 %v3088, %v3131
        %3133 = vdwg.mxu0
        %v3134 = vld [vmem:[%s4] sm:$0xff]
        %v3135 = vld [vmem:[%s4 + $0x8] sm:$0xff]
        %v3136 = vld [vmem:[%s4 + $0x10] sm:$0xff]
        %v3137 = vld [vmem:[%s4 + $0x18] sm:$0xff]
        %v3138 = vld [vmem:[%s4 + $0x20] sm:$0xff]
        %v3139 = vld [vmem:[%s4 + $0x28] sm:$0xff]
        %v3140 = vld [vmem:[%s4 + $0x30] sm:$0xff]
        %v3141 = vld [vmem:[%s4 + $0x38] sm:$0xff]
        %v3142 = vld [vmem:[%s4 + $0x40] sm:$0xff]
        %v3143 = vld [vmem:[%s4 + $0x48] sm:$0xff]
        %v3144 = vld [vmem:[%s4 + $0x50] sm:$0xff]
        %v3145 = vld [vmem:[%s4 + $0x58] sm:$0xff]
        %v3146 = vld [vmem:[%s4 + $0x60] sm:$0xff]
        %v3147 = vld [vmem:[%s4 + $0x68] sm:$0xff]
        %v3162 = vunpack.c.l.b16 %v3134
        %v3163 = vunpack.c.h.b16 %v3134
        %v3164 = vunpack.c.l.b16 %v3135
        %v3165 = vunpack.c.h.b16 %v3135
        %v3166 = vunpack.c.l.b16 %v3136
        %v3167 = vunpack.c.h.b16 %v3136
        %v3168 = vunpack.c.l.b16 %v3137
        %v3169 = vunpack.c.h.b16 %v3137
        %v3170 = vunpack.c.l.b16 %v3138
        %v3171 = vunpack.c.h.b16 %v3138
        %v3172 = vunpack.c.l.b16 %v3139
        %v3173 = vunpack.c.h.b16 %v3139
        %v3174 = vunpack.c.l.b16 %v3140
        %v3175 = vunpack.c.h.b16 %v3140
        %v3176 = vunpack.c.l.b16 %v3141
        %v3177 = vunpack.c.h.b16 %v3141
        %v3178 = vunpack.c.l.b16 %v3142
        %v3179 = vunpack.c.h.b16 %v3142
        %v3180 = vunpack.c.l.b16 %v3143
        %v3181 = vunpack.c.h.b16 %v3143
        %v3182 = vunpack.c.l.b16 %v3144
        %v3183 = vunpack.c.h.b16 %v3144
        %v3184 = vunpack.c.l.b16 %v3145
        %v3185 = vunpack.c.h.b16 %v3145
        %v3186 = vunpack.c.l.b16 %v3146
        %v3187 = vunpack.c.h.b16 %v3146
        %v3188 = vunpack.c.l.b16 %v3147
        %v3189 = vunpack.c.h.b16 %v3147
        %v3190 = vpack.c.b16 %v3164, %v3162
        %v3191 = vpack.c.b16 %v3165, %v3163
        %v3192 = vpack.c.b16 %v3168, %v3166
        %v3193 = vpack.c.b16 %v3169, %v3167
        %v3194 = vpack.c.b16 %v3172, %v3170
        %v3195 = vpack.c.b16 %v3173, %v3171
        %v3196 = vpack.c.b16 %v3176, %v3174
        %v3197 = vpack.c.b16 %v3177, %v3175
        %v3198 = vpack.c.b16 %v3180, %v3178
        %v3199 = vpack.c.b16 %v3181, %v3179
        %v3200 = vpack.c.b16 %v3184, %v3182
        %v3201 = vpack.c.b16 %v3185, %v3183
        %v3202 = vpack.c.b16 %v3188, %v3186
        %v3203 = vpack.c.b16 %v3189, %v3187
        %v3212 = vsel %vm2929, %v3191, 0
        %v3215 = vsel %vm2929, %v3193, 0
        %v3218 = vsel %vm2929, %v3195, 0
        %v3221 = vsel %vm2929, %v3197, 0
        %v3224 = vsel %vm2929, %v3199, 0
        %v3227 = vsel %vm2929, %v3201, 0
        %v3230 = vsel %vm2929, %v3203, 0
        %3232 = vmatpush.bf16.msra.mxu0 %v2834
        %3233 = vmatpush.bf16.msra.mxu0 %v2832
        %3234 = vmatpush.bf16.msra.mxu0 %v2830
        %3235 = vmatpush.bf16.msra.mxu0 %v2828
        %3236 = vmatpush.bf16.msra.mxu0 %v2826
        %3237 = vmatpush.bf16.msra.mxu0 %v2824
        %3238 = vmatpush.bf16.msra.mxu0 %v2822
        %3239 = vmatpush.bf16.msra.mxu0 %v2820
        %3240 = vmatmul.bf16.gmra.mxu0 %v3190
        %v3241 = vpop.f32.mrf.mxu0
        %v3242 = vadd.f32 0.0, %v3241
        %v3243 = vpop.f32.mrf.mxu0
        %v3244 = vadd.f32 0.0, %v3243
        %3245 = vmatmul.bf16.gmra.mxu0 %v3192
        %v3246 = vpop.f32.mrf.mxu0
        %v3247 = vadd.f32 0.0, %v3246
        %v3248 = vpop.f32.mrf.mxu0
        %v3249 = vadd.f32 0.0, %v3248
        %3250 = vmatmul.bf16.gmra.mxu0 %v3194
        %v3251 = vpop.f32.mrf.mxu0
        %v3252 = vadd.f32 0.0, %v3251
        %v3253 = vpop.f32.mrf.mxu0
        %v3254 = vadd.f32 0.0, %v3253
        %3255 = vmatmul.bf16.gmra.mxu0 %v3196
        %v3256 = vpop.f32.mrf.mxu0
        %v3257 = vadd.f32 0.0, %v3256
        %v3258 = vpop.f32.mrf.mxu0
        %v3259 = vadd.f32 0.0, %v3258
        %3260 = vmatmul.bf16.gmra.mxu0 %v3198
        %v3261 = vpop.f32.mrf.mxu0
        %v3262 = vadd.f32 0.0, %v3261
        %v3263 = vpop.f32.mrf.mxu0
        %v3264 = vadd.f32 0.0, %v3263
        %3265 = vmatmul.bf16.gmra.mxu0 %v3200
        %v3266 = vpop.f32.mrf.mxu0
        %v3267 = vadd.f32 0.0, %v3266
        %v3268 = vpop.f32.mrf.mxu0
        %v3269 = vadd.f32 0.0, %v3268
        %3270 = vmatmul.bf16.gmra.mxu0 %v3202
        %v3271 = vpop.f32.mrf.mxu0
        %v3272 = vadd.f32 0.0, %v3271
        %v3273 = vpop.f32.mrf.mxu0
        %v3274 = vadd.f32 0.0, %v3273
        %3275 = vdwg.mxu0
        %3276 = vmatpush.bf16.msra.mxu0 %v2953
        %3277 = vmatpush.bf16.msra.mxu0 %v2848
        %3278 = vmatpush.bf16.msra.mxu0 %v2846
        %3279 = vmatpush.bf16.msra.mxu0 %v2844
        %3280 = vmatpush.bf16.msra.mxu0 %v2842
        %3281 = vmatpush.bf16.msra.mxu0 %v2840
        %3282 = vmatpush.bf16.msra.mxu0 %v2838
        %3283 = vmatpush.bf16.msra.mxu0 %v2836
        %3284 = vmatmul.bf16.gmra.mxu0 %v3212
        %v3285 = vpop.f32.mrf.mxu0
        %v3286 = vadd.f32 %v3242, %v3285
        %v3287 = vpop.f32.mrf.mxu0
        %v3288 = vadd.f32 %v3244, %v3287
        %3289 = vmatmul.bf16.gmra.mxu0 %v3215
        %v3290 = vpop.f32.mrf.mxu0
        %v3291 = vadd.f32 %v3247, %v3290
        %v3292 = vpop.f32.mrf.mxu0
        %v3293 = vadd.f32 %v3249, %v3292
        %3294 = vmatmul.bf16.gmra.mxu0 %v3218
        %v3295 = vpop.f32.mrf.mxu0
        %v3296 = vadd.f32 %v3252, %v3295
        %v3297 = vpop.f32.mrf.mxu0
        %v3298 = vadd.f32 %v3254, %v3297
        %3299 = vmatmul.bf16.gmra.mxu0 %v3221
        %v3300 = vpop.f32.mrf.mxu0
        %v3301 = vadd.f32 %v3257, %v3300
        %v3302 = vpop.f32.mrf.mxu0
        %v3303 = vadd.f32 %v3259, %v3302
        %3304 = vmatmul.bf16.gmra.mxu0 %v3224
        %v3305 = vpop.f32.mrf.mxu0
        %v3306 = vadd.f32 %v3262, %v3305
        %v3307 = vpop.f32.mrf.mxu0
        %v3308 = vadd.f32 %v3264, %v3307
        %3309 = vmatmul.bf16.gmra.mxu0 %v3227
        %v3310 = vpop.f32.mrf.mxu0
        %v3311 = vadd.f32 %v3267, %v3310
        %v3312 = vpop.f32.mrf.mxu0
        %v3313 = vadd.f32 %v3269, %v3312
        %3314 = vmatmul.bf16.gmra.mxu0 %v3230
        %v3315 = vpop.f32.mrf.mxu0
        %v3316 = vadd.f32 %v3272, %v3315
        %v3317 = vpop.f32.mrf.mxu0
        %v3318 = vadd.f32 %v3274, %v3317
        %3319 = vdwg.mxu0
        %3320 = vmatpush.bf16.msra.mxu0 %v2835
        %3321 = vmatpush.bf16.msra.mxu0 %v2833
        %3322 = vmatpush.bf16.msra.mxu0 %v2831
        %3323 = vmatpush.bf16.msra.mxu0 %v2829
        %3324 = vmatpush.bf16.msra.mxu0 %v2827
        %3325 = vmatpush.bf16.msra.mxu0 %v2825
        %3326 = vmatpush.bf16.msra.mxu0 %v2823
        %3327 = vmatpush.bf16.msra.mxu0 %v2821
        %3328 = vmatmul.bf16.gmra.mxu0 %v3190
        %v3329 = vpop.f32.mrf.mxu0
        %v3330 = vadd.f32 0.0, %v3329
        %v3331 = vpop.f32.mrf.mxu0
        %v3332 = vadd.f32 0.0, %v3331
        %3333 = vmatmul.bf16.gmra.mxu0 %v3192
        %v3334 = vpop.f32.mrf.mxu0
        %v3335 = vadd.f32 0.0, %v3334
        %v3336 = vpop.f32.mrf.mxu0
        %v3337 = vadd.f32 0.0, %v3336
        %3338 = vmatmul.bf16.gmra.mxu0 %v3194
        %v3339 = vpop.f32.mrf.mxu0
        %v3340 = vadd.f32 0.0, %v3339
        %v3341 = vpop.f32.mrf.mxu0
        %v3342 = vadd.f32 0.0, %v3341
        %3343 = vmatmul.bf16.gmra.mxu0 %v3196
        %v3344 = vpop.f32.mrf.mxu0
        %v3345 = vadd.f32 0.0, %v3344
        %v3346 = vpop.f32.mrf.mxu0
        %v3347 = vadd.f32 0.0, %v3346
        %3348 = vmatmul.bf16.gmra.mxu0 %v3198
        %v3349 = vpop.f32.mrf.mxu0
        %v3350 = vadd.f32 0.0, %v3349
        %v3351 = vpop.f32.mrf.mxu0
        %v3352 = vadd.f32 0.0, %v3351
        %3353 = vmatmul.bf16.gmra.mxu0 %v3200
        %v3354 = vpop.f32.mrf.mxu0
        %v3355 = vadd.f32 0.0, %v3354
        %v3356 = vpop.f32.mrf.mxu0
        %v3357 = vadd.f32 0.0, %v3356
        %3358 = vmatmul.bf16.gmra.mxu0 %v3202
        %v3359 = vpop.f32.mrf.mxu0
        %v3360 = vadd.f32 0.0, %v3359
        %v3361 = vpop.f32.mrf.mxu0
        %v3362 = vadd.f32 0.0, %v3361
        %3363 = vdwg.mxu0
        %3364 = vmatpush.bf16.msra.mxu0 %v2956
        %3365 = vmatpush.bf16.msra.mxu0 %v2849
        %3366 = vmatpush.bf16.msra.mxu0 %v2847
        %3367 = vmatpush.bf16.msra.mxu0 %v2845
        %3368 = vmatpush.bf16.msra.mxu0 %v2843
        %3369 = vmatpush.bf16.msra.mxu0 %v2841
        %3370 = vmatpush.bf16.msra.mxu0 %v2839
        %3371 = vmatpush.bf16.msra.mxu0 %v2837
        %3372 = vmatmul.bf16.gmra.mxu0 %v3212
        %v3373 = vpop.f32.mrf.mxu0
        %v3374 = vadd.f32 %v3330, %v3373
        %v3375 = vpop.f32.mrf.mxu0
        %v3376 = vadd.f32 %v3332, %v3375
        %3377 = vmatmul.bf16.gmra.mxu0 %v3215
        %v3378 = vpop.f32.mrf.mxu0
        %v3379 = vadd.f32 %v3335, %v3378
        %v3380 = vpop.f32.mrf.mxu0
        %v3381 = vadd.f32 %v3337, %v3380
        %3382 = vmatmul.bf16.gmra.mxu0 %v3218
        %v3383 = vpop.f32.mrf.mxu0
        %v3384 = vadd.f32 %v3340, %v3383
        %v3385 = vpop.f32.mrf.mxu0
        %v3386 = vadd.f32 %v3342, %v3385
        %3387 = vmatmul.bf16.gmra.mxu0 %v3221
        %v3388 = vpop.f32.mrf.mxu0
        %v3389 = vadd.f32 %v3345, %v3388
        %v3390 = vpop.f32.mrf.mxu0
        %v3391 = vadd.f32 %v3347, %v3390
        %3392 = vmatmul.bf16.gmra.mxu0 %v3224
        %v3393 = vpop.f32.mrf.mxu0
        %v3394 = vadd.f32 %v3350, %v3393
        %v3395 = vpop.f32.mrf.mxu0
        %v3396 = vadd.f32 %v3352, %v3395
        %3397 = vmatmul.bf16.gmra.mxu0 %v3227
        %v3398 = vpop.f32.mrf.mxu0
        %v3399 = vadd.f32 %v3355, %v3398
        %v3400 = vpop.f32.mrf.mxu0
        %v3401 = vadd.f32 %v3357, %v3400
        %3402 = vmatmul.bf16.gmra.mxu0 %v3230
        %v3403 = vpop.f32.mrf.mxu0
        %v3404 = vadd.f32 %v3360, %v3403
        %v3405 = vpop.f32.mrf.mxu0
        %v3406 = vadd.f32 %v3362, %v3405
        %3407 = vdwg.mxu0
        %v3408 = vmax.f32 %v3012, %v3286
        %v3409 = vmax.f32 %v3100, %v3374
        %v3410 = vmax.f32 %v3014, %v3288
        %v3411 = vmax.f32 %v3102, %v3376
        %v3412 = vmax.f32 %v3017, %v3291
        %v3413 = vmax.f32 %v3105, %v3379
        %v3414 = vmax.f32 %v3019, %v3293
        %v3415 = vmax.f32 %v3107, %v3381
        %v3416 = vmax.f32 %v3022, %v3296
        %v3417 = vmax.f32 %v3110, %v3384
        %v3418 = vmax.f32 %v3024, %v3298
        %v3419 = vmax.f32 %v3112, %v3386
        %v3420 = vmax.f32 %v3027, %v3301
        %v3421 = vmax.f32 %v3115, %v3389
        %v3422 = vmax.f32 %v3029, %v3303
        %v3423 = vmax.f32 %v3117, %v3391
        %v3424 = vmax.f32 %v3032, %v3306
        %v3425 = vmax.f32 %v3120, %v3394
        %v3426 = vmax.f32 %v3034, %v3308
        %v3427 = vmax.f32 %v3122, %v3396
        %v3428 = vmax.f32 %v3037, %v3311
        %v3429 = vmax.f32 %v3125, %v3399
        %v3430 = vmax.f32 %v3039, %v3313
        %v3431 = vmax.f32 %v3127, %v3401
        %v3432 = vmax.f32 %v3042, %v3316
        %v3433 = vmax.f32 %v3130, %v3404
        %v3434 = vmax.f32 %v3044, %v3318
        %v3435 = vmax.f32 %v3132, %v3406
        %v3436 = vpack.c.bf16 %v3410, %v3408
        %v3437 = vpack.c.bf16 %v3411, %v3409
        %v3438 = vpack.c.bf16 %v3414, %v3412
        %v3439 = vpack.c.bf16 %v3415, %v3413
        %v3440 = vpack.c.bf16 %v3418, %v3416
        %v3441 = vpack.c.bf16 %v3419, %v3417
        %v3442 = vpack.c.bf16 %v3422, %v3420
        %v3443 = vpack.c.bf16 %v3423, %v3421
        %v3444 = vpack.c.bf16 %v3426, %v3424
        %v3445 = vpack.c.bf16 %v3427, %v3425
        %v3446 = vpack.c.bf16 %v3430, %v3428
        %v3447 = vpack.c.bf16 %v3431, %v3429
        %v3448 = vpack.c.bf16 %v3434, %v3432
        %v3449 = vpack.c.bf16 %v3435, %v3433
        %v3450 = vld [vmem:[%s5] sm:$0xf]
        %v3451 = vld [vmem:[%s5 + $0x4] sm:$0xf]
        %v3452 = vld [vmem:[%s5 + $0x8] sm:$0xf]
        %v3453 = vld [vmem:[%s5 + $0xc] sm:$0xf]
        %v3454 = vld [vmem:[%s5 + $0x10] sm:$0xf]
        %v3455 = vld [vmem:[%s5 + $0x14] sm:$0xf]
        %v3456 = vld [vmem:[%s5 + $0x18] sm:$0xf]
        %v3457 = vld [vmem:[%s5 + $0x1c] sm:$0xf]
        %v3458 = vld [vmem:[%s5 + $0x20] sm:$0xf]
        %v3459 = vld [vmem:[%s5 + $0x24] sm:$0xf]
        %v3460 = vld [vmem:[%s5 + $0x28] sm:$0xf]
        %v3461 = vld [vmem:[%s5 + $0x2c] sm:$0xf]
        %v3462 = vld [vmem:[%s5 + $0x30] sm:$0xf]
        %v3463 = vld [vmem:[%s5 + $0x34] sm:$0xf]
        %v3464 = vld [vmem:[%s5 + $0x38] sm:$0xf]
        %v3465 = vld [vmem:[%s5 + $0x3c] sm:$0xf]
        %v3466 = vld [vmem:[%s5 + $0x40] sm:$0xf]
        %v3467 = vld [vmem:[%s5 + $0x44] sm:$0xf]
        %v3468 = vld [vmem:[%s5 + $0x48] sm:$0xf]
        %v3469 = vld [vmem:[%s5 + $0x4c] sm:$0xf]
        %v3470 = vld [vmem:[%s5 + $0x50] sm:$0xf]
        %v3492 = vunpack.c.l.b16 %v3450
        %v3493 = vunpack.c.l.b16 %v3451
        %v3494 = vunpack.c.l.b16 %v3452
        %v3495 = vunpack.c.l.b16 %v3453
        %v3496 = vunpack.c.l.b16 %v3454
        %v3497 = vunpack.c.l.b16 %v3455
        %v3498 = vunpack.c.l.b16 %v3456
        %v3499 = vunpack.c.l.b16 %v3457
        %v3500 = vunpack.c.l.b16 %v3458
        %v3501 = vunpack.c.l.b16 %v3459
        %v3502 = vunpack.c.l.b16 %v3460
        %v3503 = vunpack.c.l.b16 %v3461
        %v3504 = vunpack.c.l.b16 %v3462
        %v3505 = vunpack.c.l.b16 %v3463
        %v3506 = vunpack.c.l.b16 %v3464
        %v3507 = vunpack.c.l.b16 %v3465
        %v3508 = vunpack.c.l.b16 %v3466
        %v3509 = vunpack.c.l.b16 %v3467
        %v3510 = vunpack.c.l.b16 %v3468
        %v3511 = vunpack.c.l.b16 %v3469
        %v3512 = vunpack.c.l.b16 %v3470
        %v3513 = vpack.c.b16 %v3493, %v3492
        %v3514 = vpack.c.b16 %v3495, %v3494
        %v3515 = vpack.c.b16 %v3497, %v3496
        %v3516 = vpack.c.b16 %v3499, %v3498
        %v3517 = vpack.c.b16 %v3501, %v3500
        %v3518 = vpack.c.b16 %v3503, %v3502
        %v3519 = vpack.c.b16 %v3505, %v3504
        %v3520 = vpack.c.b16 %v3507, %v3506
        %v3521 = vpack.c.b16 %v3509, %v3508
        %v3522 = vpack.c.b16 %v3511, %v3510
        %v3523 = vpack.c.b16 %v3512, %v3512
        %vm3534 = vcmask 326656
        %v3536 = vsel %vm3534, %v3437, 0
        %v3539 = vsel %vm3534, %v3439, 0
        %v3542 = vsel %vm3534, %v3441, 0
        %v3545 = vsel %vm3534, %v3443, 0
        %v3548 = vsel %vm3534, %v3445, 0
        %v3551 = vsel %vm3534, %v3447, 0
        %v3554 = vsel %vm3534, %v3449, 0
        %vm3556 = vcmask 1043456
        %v3558 = vsel %vm3556, %v3523, 0
        %3560 = vmatpush.bf16.msra.mxu0 %v3520
        %3561 = vmatpush.bf16.msra.mxu0 %v3519
        %3562 = vmatpush.bf16.msra.mxu0 %v3518
        %3563 = vmatpush.bf16.msra.mxu0 %v3517
        %3564 = vmatpush.bf16.msra.mxu0 %v3516
        %3565 = vmatpush.bf16.msra.mxu0 %v3515
        %3566 = vmatpush.bf16.msra.mxu0 %v3514
        %3567 = vmatpush.bf16.msra.mxu0 %v3513
        %3568 = vmatmul.bf16.gmra.mxu0 %v3436
        %v3569 = vpop.f32.mrf.mxu0
        %v3570 = vadd.f32 0.0, %v3569
        %v3571 = vpop.f32.mrf.mxu0
        %v3572 = vadd.f32 0.0, %v3571
        %3573 = vmatmul.bf16.gmra.mxu0 %v3438
        %v3574 = vpop.f32.mrf.mxu0
        %v3575 = vadd.f32 0.0, %v3574
        %v3576 = vpop.f32.mrf.mxu0
        %v3577 = vadd.f32 0.0, %v3576
        %3578 = vmatmul.bf16.gmra.mxu0 %v3440
        %v3579 = vpop.f32.mrf.mxu0
        %v3580 = vadd.f32 0.0, %v3579
        %v3581 = vpop.f32.mrf.mxu0
        %v3582 = vadd.f32 0.0, %v3581
        %3583 = vmatmul.bf16.gmra.mxu0 %v3442
        %v3584 = vpop.f32.mrf.mxu0
        %v3585 = vadd.f32 0.0, %v3584
        %v3586 = vpop.f32.mrf.mxu0
        %v3587 = vadd.f32 0.0, %v3586
        %3588 = vmatmul.bf16.gmra.mxu0 %v3444
        %v3589 = vpop.f32.mrf.mxu0
        %v3590 = vadd.f32 0.0, %v3589
        %v3591 = vpop.f32.mrf.mxu0
        %v3592 = vadd.f32 0.0, %v3591
        %3593 = vmatmul.bf16.gmra.mxu0 %v3446
        %v3594 = vpop.f32.mrf.mxu0
        %v3595 = vadd.f32 0.0, %v3594
        %v3596 = vpop.f32.mrf.mxu0
        %v3597 = vadd.f32 0.0, %v3596
        %3598 = vmatmul.bf16.gmra.mxu0 %v3448
        %v3599 = vpop.f32.mrf.mxu0
        %v3600 = vadd.f32 0.0, %v3599
        %v3601 = vpop.f32.mrf.mxu0
        %v3602 = vadd.f32 0.0, %v3601
        %3603 = vdwg.mxu0
        %3604 = vmatpush.bf16.msra.mxu0 0
        %3605 = vmatpush.bf16.msra.mxu0 0
        %3606 = vmatpush.bf16.msra.mxu0 0
        %3607 = vmatpush.bf16.msra.mxu0 0
        %3608 = vmatpush.bf16.msra.mxu0 0
        %3609 = vmatpush.bf16.msra.mxu0 %v3558
        %3610 = vmatpush.bf16.msra.mxu0 %v3522
        %3611 = vmatpush.bf16.msra.mxu0 %v3521
        %3612 = vmatmul.bf16.gmra.mxu0 %v3536
        %v3613 = vpop.f32.mrf.mxu0
        %v3614 = vadd.f32 %v3570, %v3613
        %v3615 = vpop.f32.mrf.mxu0
        %v3616 = vadd.f32 %v3572, %v3615
        %3617 = vmatmul.bf16.gmra.mxu0 %v3539
        %v3618 = vpop.f32.mrf.mxu0
        %v3619 = vadd.f32 %v3575, %v3618
        %v3620 = vpop.f32.mrf.mxu0
        %v3621 = vadd.f32 %v3577, %v3620
        %3622 = vmatmul.bf16.gmra.mxu0 %v3542
        %v3623 = vpop.f32.mrf.mxu0
        %v3624 = vadd.f32 %v3580, %v3623
        %v3625 = vpop.f32.mrf.mxu0
        %v3626 = vadd.f32 %v3582, %v3625
        %3627 = vmatmul.bf16.gmra.mxu0 %v3545
        %v3628 = vpop.f32.mrf.mxu0
        %v3629 = vadd.f32 %v3585, %v3628
        %v3630 = vpop.f32.mrf.mxu0
        %v3631 = vadd.f32 %v3587, %v3630
        %3632 = vmatmul.bf16.gmra.mxu0 %v3548
        %v3633 = vpop.f32.mrf.mxu0
        %v3634 = vadd.f32 %v3590, %v3633
        %v3635 = vpop.f32.mrf.mxu0
        %v3636 = vadd.f32 %v3592, %v3635
        %3637 = vmatmul.bf16.gmra.mxu0 %v3551
        %v3638 = vpop.f32.mrf.mxu0
        %v3639 = vadd.f32 %v3595, %v3638
        %v3640 = vpop.f32.mrf.mxu0
        %v3641 = vadd.f32 %v3597, %v3640
        %3642 = vmatmul.bf16.gmra.mxu0 %v3554
        %v3643 = vpop.f32.mrf.mxu0
        %v3644 = vadd.f32 %v3600, %v3643
        %v3645 = vpop.f32.mrf.mxu0
        %v3646 = vadd.f32 %v3602, %v3645
        %3647 = vdwg.mxu0
        %v3648 = vld [vmem:[%s6] sm:$0xf]
        %v3649 = vld [vmem:[%s6 + $0x4] sm:$0xf]
        %v3650 = vld [vmem:[%s6 + $0x8] sm:$0xf]
        %v3651 = vld [vmem:[%s6 + $0xc] sm:$0xf]
        %v3652 = vld [vmem:[%s6 + $0x10] sm:$0xf]
        %v3653 = vld [vmem:[%s6 + $0x14] sm:$0xf]
        %v3654 = vld [vmem:[%s6 + $0x18] sm:$0xf]
        %v3655 = vld [vmem:[%s6 + $0x1c] sm:$0xf]
        %v3656 = vld [vmem:[%s6 + $0x20] sm:$0xf]
        %v3657 = vld [vmem:[%s6 + $0x24] sm:$0xf]
        %v3658 = vld [vmem:[%s6 + $0x28] sm:$0xf]
        %v3659 = vld [vmem:[%s6 + $0x2c] sm:$0xf]
        %v3660 = vld [vmem:[%s6 + $0x30] sm:$0xf]
        %v3661 = vld [vmem:[%s6 + $0x34] sm:$0xf]
        %v3662 = vld [vmem:[%s6 + $0x38] sm:$0xf]
        %v3663 = vld [vmem:[%s6 + $0x3c] sm:$0xf]
        %v3664 = vld [vmem:[%s6 + $0x40] sm:$0xf]
        %v3665 = vld [vmem:[%s6 + $0x44] sm:$0xf]
        %v3666 = vld [vmem:[%s6 + $0x48] sm:$0xf]
        %v3667 = vld [vmem:[%s6 + $0x4c] sm:$0xf]
        %v3668 = vld [vmem:[%s6 + $0x50] sm:$0xf]
        %v3690 = vunpack.c.l.b16 %v3648
        %v3691 = vunpack.c.l.b16 %v3649
        %v3692 = vunpack.c.l.b16 %v3650
        %v3693 = vunpack.c.l.b16 %v3651
        %v3694 = vunpack.c.l.b16 %v3652
        %v3695 = vunpack.c.l.b16 %v3653
        %v3696 = vunpack.c.l.b16 %v3654
        %v3697 = vunpack.c.l.b16 %v3655
        %v3698 = vunpack.c.l.b16 %v3656
        %v3699 = vunpack.c.l.b16 %v3657
        %v3700 = vunpack.c.l.b16 %v3658
        %v3701 = vunpack.c.l.b16 %v3659
        %v3702 = vunpack.c.l.b16 %v3660
        %v3703 = vunpack.c.l.b16 %v3661
        %v3704 = vunpack.c.l.b16 %v3662
        %v3705 = vunpack.c.l.b16 %v3663
        %v3706 = vunpack.c.l.b16 %v3664
        %v3707 = vunpack.c.l.b16 %v3665
        %v3708 = vunpack.c.l.b16 %v3666
        %v3709 = vunpack.c.l.b16 %v3667
        %v3710 = vunpack.c.l.b16 %v3668
        %v3711 = vpack.c.b16 %v3691, %v3690
        %v3712 = vpack.c.b16 %v3693, %v3692
        %v3713 = vpack.c.b16 %v3695, %v3694
        %v3714 = vpack.c.b16 %v3697, %v3696
        %v3715 = vpack.c.b16 %v3699, %v3698
        %v3716 = vpack.c.b16 %v3701, %v3700
        %v3717 = vpack.c.b16 %v3703, %v3702
        %v3718 = vpack.c.b16 %v3705, %v3704
        %v3719 = vpack.c.b16 %v3707, %v3706
        %v3720 = vpack.c.b16 %v3709, %v3708
        %v3721 = vpack.c.b16 %v3710, %v3710
        %v3733 = vsel %vm3556, %v3721, 0
        %3735 = vmatpush.bf16.msra.mxu0 %v3718
        %3736 = vmatpush.bf16.msra.mxu0 %v3717
        %3737 = vmatpush.bf16.msra.mxu0 %v3716
        %3738 = vmatpush.bf16.msra.mxu0 %v3715
        %3739 = vmatpush.bf16.msra.mxu0 %v3714
        %3740 = vmatpush.bf16.msra.mxu0 %v3713
        %3741 = vmatpush.bf16.msra.mxu0 %v3712
        %3742 = vmatpush.bf16.msra.mxu0 %v3711
        %3743 = vmatmul.bf16.gmra.mxu0 %v3436
        %v3744 = vpop.f32.mrf.mxu0
        %v3745 = vadd.f32 0.0, %v3744
        %v3746 = vpop.f32.mrf.mxu0
        %v3747 = vadd.f32 0.0, %v3746
        %3748 = vmatmul.bf16.gmra.mxu0 %v3438
        %v3749 = vpop.f32.mrf.mxu0
        %v3750 = vadd.f32 0.0, %v3749
        %v3751 = vpop.f32.mrf.mxu0
        %v3752 = vadd.f32 0.0, %v3751
        %3753 = vmatmul.bf16.gmra.mxu0 %v3440
        %v3754 = vpop.f32.mrf.mxu0
        %v3755 = vadd.f32 0.0, %v3754
        %v3756 = vpop.f32.mrf.mxu0
        %v3757 = vadd.f32 0.0, %v3756
        %3758 = vmatmul.bf16.gmra.mxu0 %v3442
        %v3759 = vpop.f32.mrf.mxu0
        %v3760 = vadd.f32 0.0, %v3759
        %v3761 = vpop.f32.mrf.mxu0
        %v3762 = vadd.f32 0.0, %v3761
        %3763 = vmatmul.bf16.gmra.mxu0 %v3444
        %v3764 = vpop.f32.mrf.mxu0
        %v3765 = vadd.f32 0.0, %v3764
        %v3766 = vpop.f32.mrf.mxu0
        %v3767 = vadd.f32 0.0, %v3766
        %3768 = vmatmul.bf16.gmra.mxu0 %v3446
        %v3769 = vpop.f32.mrf.mxu0
        %v3770 = vadd.f32 0.0, %v3769
        %v3771 = vpop.f32.mrf.mxu0
        %v3772 = vadd.f32 0.0, %v3771
        %3773 = vmatmul.bf16.gmra.mxu0 %v3448
        %v3774 = vpop.f32.mrf.mxu0
        %v3775 = vadd.f32 0.0, %v3774
        %v3776 = vpop.f32.mrf.mxu0
        %v3777 = vadd.f32 0.0, %v3776
        %3778 = vdwg.mxu0
        %3779 = vmatpush.bf16.msra.mxu0 0
        %3780 = vmatpush.bf16.msra.mxu0 0
        %3781 = vmatpush.bf16.msra.mxu0 0
        %3782 = vmatpush.bf16.msra.mxu0 0
        %3783 = vmatpush.bf16.msra.mxu0 0
        %3784 = vmatpush.bf16.msra.mxu0 %v3733
        %3785 = vmatpush.bf16.msra.mxu0 %v3720
        %3786 = vmatpush.bf16.msra.mxu0 %v3719
        %3787 = vmatmul.bf16.gmra.mxu0 %v3536
        %v3788 = vpop.f32.mrf.mxu0
        %v3789 = vadd.f32 %v3745, %v3788
        %v3790 = vpop.f32.mrf.mxu0
        %v3791 = vadd.f32 %v3747, %v3790
        %3792 = vmatmul.bf16.gmra.mxu0 %v3539
        %v3793 = vpop.f32.mrf.mxu0
        %v3794 = vadd.f32 %v3750, %v3793
        %v3795 = vpop.f32.mrf.mxu0
        %v3796 = vadd.f32 %v3752, %v3795
        %3797 = vmatmul.bf16.gmra.mxu0 %v3542
        %v3798 = vpop.f32.mrf.mxu0
        %v3799 = vadd.f32 %v3755, %v3798
        %v3800 = vpop.f32.mrf.mxu0
        %v3801 = vadd.f32 %v3757, %v3800
        %3802 = vmatmul.bf16.gmra.mxu0 %v3545
        %v3803 = vpop.f32.mrf.mxu0
        %v3804 = vadd.f32 %v3760, %v3803
        %v3805 = vpop.f32.mrf.mxu0
        %v3806 = vadd.f32 %v3762, %v3805
        %3807 = vmatmul.bf16.gmra.mxu0 %v3548
        %v3808 = vpop.f32.mrf.mxu0
        %v3809 = vadd.f32 %v3765, %v3808
        %v3810 = vpop.f32.mrf.mxu0
        %v3811 = vadd.f32 %v3767, %v3810
        %3812 = vmatmul.bf16.gmra.mxu0 %v3551
        %v3813 = vpop.f32.mrf.mxu0
        %v3814 = vadd.f32 %v3770, %v3813
        %v3815 = vpop.f32.mrf.mxu0
        %v3816 = vadd.f32 %v3772, %v3815
        %3817 = vmatmul.bf16.gmra.mxu0 %v3554
        %v3818 = vpop.f32.mrf.mxu0
        %v3819 = vadd.f32 %v3775, %v3818
        %v3820 = vpop.f32.mrf.mxu0
        %v3821 = vadd.f32 %v3777, %v3820
        %3822 = vdwg.mxu0
        %v3823 = vmax.f32 %v3614, %v3789
        %v3824 = vmax.f32 %v3616, %v3791
        %v3825 = vmax.f32 %v3619, %v3794
        %v3826 = vmax.f32 %v3621, %v3796
        %v3827 = vmax.f32 %v3624, %v3799
        %v3828 = vmax.f32 %v3626, %v3801
        %v3829 = vmax.f32 %v3629, %v3804
        %v3830 = vmax.f32 %v3631, %v3806
        %v3831 = vmax.f32 %v3634, %v3809
        %v3832 = vmax.f32 %v3636, %v3811
        %v3833 = vmax.f32 %v3639, %v3814
        %v3834 = vmax.f32 %v3641, %v3816
        %v3835 = vmax.f32 %v3644, %v3819
        %v3836 = vmax.f32 %v3646, %v3821
        %v3837 = vld [vmem:[%s8] sm:$0x3]
        %v3839 = vperm.slane %v3837, 0
        %v3840 = vperm.slane %v3837, 1
        %v3843 = vpack.c.bf16 %v3824, %v3823
        %v3844 = vpack.c.bf16 %v3826, %v3825
        %v3845 = vpack.c.bf16 %v3828, %v3827
        %v3846 = vpack.c.bf16 %v3830, %v3829
        %v3847 = vpack.c.bf16 %v3832, %v3831
        %v3848 = vpack.c.bf16 %v3834, %v3833
        %v3849 = vpack.c.bf16 %v3836, %v3835
        %v3850 = vld [vmem:[%s7] sm:$0xff]
        %v3851 = vld [vmem:[%s7 + $0x8] sm:$0xff]
        %v3852 = vld [vmem:[%s7 + $0x10] sm:$0xff]
        %v3853 = vld [vmem:[%s7 + $0x18] sm:$0xff]
        %v3854 = vld [vmem:[%s7 + $0x20] sm:$0xff]
        %v3855 = vld [vmem:[%s7 + $0x28] sm:$0xff]
        %v3856 = vld [vmem:[%s7 + $0x30] sm:$0xff]
        %v3857 = vld [vmem:[%s7 + $0x38] sm:$0xff]
        %v3858 = vld [vmem:[%s7 + $0x40] sm:$0xff]
        %v3859 = vld [vmem:[%s7 + $0x48] sm:$0xff]
        %v3860 = vld [vmem:[%s7 + $0x50] sm:$0x33]
        %v3872 = vunpack.c.l.b16 %v3850
        %v3873 = vunpack.c.h.b16 %v3850
        %v3874 = vunpack.c.l.b16 %v3851
        %v3875 = vunpack.c.h.b16 %v3851
        %v3876 = vunpack.c.l.b16 %v3852
        %v3877 = vunpack.c.h.b16 %v3852
        %v3878 = vunpack.c.l.b16 %v3853
        %v3879 = vunpack.c.h.b16 %v3853
        %v3880 = vunpack.c.l.b16 %v3854
        %v3881 = vunpack.c.h.b16 %v3854
        %v3882 = vunpack.c.l.b16 %v3855
        %v3883 = vunpack.c.h.b16 %v3855
        %v3884 = vunpack.c.l.b16 %v3856
        %v3885 = vunpack.c.h.b16 %v3856
        %v3886 = vunpack.c.l.b16 %v3857
        %v3887 = vunpack.c.h.b16 %v3857
        %v3888 = vunpack.c.l.b16 %v3858
        %v3889 = vunpack.c.h.b16 %v3858
        %v3890 = vunpack.c.l.b16 %v3859
        %v3891 = vunpack.c.h.b16 %v3859
        %v3892 = vunpack.c.l.b16 %v3860
        %v3893 = vunpack.c.h.b16 %v3860
        %v3894 = vpack.c.b16 %v3874, %v3872
        %v3895 = vpack.c.b16 %v3875, %v3873
        %v3896 = vpack.c.b16 %v3878, %v3876
        %v3897 = vpack.c.b16 %v3879, %v3877
        %v3898 = vpack.c.b16 %v3882, %v3880
        %v3899 = vpack.c.b16 %v3883, %v3881
        %v3900 = vpack.c.b16 %v3886, %v3884
        %v3901 = vpack.c.b16 %v3887, %v3885
        %v3902 = vpack.c.b16 %v3890, %v3888
        %v3903 = vpack.c.b16 %v3891, %v3889
        %v3904 = vpack.c.b16 %v3892, %v3892
        %v3905 = vpack.c.b16 %v3893, %v3893
        %vm3916 = vcmask 687104
        %v3918 = vsel %vm3916, %v3843, 0
        %v3921 = vsel %vm3916, %v3844, 0
        %v3924 = vsel %vm3916, %v3845, 0
        %v3927 = vsel %vm3916, %v3846, 0
        %v3930 = vsel %vm3916, %v3847, 0
        %v3933 = vsel %vm3916, %v3848, 0
        %v3936 = vsel %vm3916, %v3849, 0
        %vm3938 = vcmask 1041408
        %v3940 = vsel %vm3938, %v3904, 0
        %v3943 = vsel %vm3938, %v3905, 0
        %3945 = vmatpush.bf16.msra.mxu0 0
        %3946 = vmatpush.bf16.msra.mxu0 0
        %3947 = vmatpush.bf16.msra.mxu0 %v3940
        %3948 = vmatpush.bf16.msra.mxu0 %v3902
        %3949 = vmatpush.bf16.msra.mxu0 %v3900
        %3950 = vmatpush.bf16.msra.mxu0 %v3898
        %3951 = vmatpush.bf16.msra.mxu0 %v3896
        %3952 = vmatpush.bf16.msra.mxu0 %v3894
        %3953 = vmatmul.bf16.gmra.mxu0 %v3918
        %v3954 = vpop.f32.mrf.mxu0
        %v3955 = vadd.f32 0.0, %v3954
        %v3956 = vpop.f32.mrf.mxu0
        %v3957 = vadd.f32 0.0, %v3956
        %3958 = vmatmul.bf16.gmra.mxu0 %v3921
        %v3959 = vpop.f32.mrf.mxu0
        %v3960 = vadd.f32 0.0, %v3959
        %v3961 = vpop.f32.mrf.mxu0
        %v3962 = vadd.f32 0.0, %v3961
        %3963 = vmatmul.bf16.gmra.mxu0 %v3924
        %v3964 = vpop.f32.mrf.mxu0
        %v3965 = vadd.f32 0.0, %v3964
        %v3966 = vpop.f32.mrf.mxu0
        %v3967 = vadd.f32 0.0, %v3966
        %3968 = vmatmul.bf16.gmra.mxu0 %v3927
        %v3969 = vpop.f32.mrf.mxu0
        %v3970 = vadd.f32 0.0, %v3969
        %v3971 = vpop.f32.mrf.mxu0
        %v3972 = vadd.f32 0.0, %v3971
        %3973 = vmatmul.bf16.gmra.mxu0 %v3930
        %v3974 = vpop.f32.mrf.mxu0
        %v3975 = vadd.f32 0.0, %v3974
        %v3976 = vpop.f32.mrf.mxu0
        %v3977 = vadd.f32 0.0, %v3976
        %3978 = vmatmul.bf16.gmra.mxu0 %v3933
        %v3979 = vpop.f32.mrf.mxu0
        %v3980 = vadd.f32 0.0, %v3979
        %v3981 = vpop.f32.mrf.mxu0
        %v3982 = vadd.f32 0.0, %v3981
        %3983 = vmatmul.bf16.gmra.mxu0 %v3936
        %v3984 = vpop.f32.mrf.mxu0
        %v3985 = vadd.f32 0.0, %v3984
        %v3986 = vpop.f32.mrf.mxu0
        %v3987 = vadd.f32 0.0, %v3986
        %3988 = vdwg.mxu0
        %3989 = vmatpush.bf16.msra.mxu0 0
        %3990 = vmatpush.bf16.msra.mxu0 0
        %3991 = vmatpush.bf16.msra.mxu0 %v3943
        %3992 = vmatpush.bf16.msra.mxu0 %v3903
        %3993 = vmatpush.bf16.msra.mxu0 %v3901
        %3994 = vmatpush.bf16.msra.mxu0 %v3899
        %3995 = vmatpush.bf16.msra.mxu0 %v3897
        %3996 = vmatpush.bf16.msra.mxu0 %v3895
        %3997 = vmatmul.bf16.gmra.mxu0 %v3918
        %v3998 = vpop.f32.mrf.mxu0
        %v3999 = vadd.f32 0.0, %v3998
        %v4000 = vpop.f32.mrf.mxu0
        %v4001 = vadd.f32 0.0, %v4000
        %4002 = vmatmul.bf16.gmra.mxu0 %v3921
        %v4003 = vpop.f32.mrf.mxu0
        %v4004 = vadd.f32 0.0, %v4003
        %v4005 = vpop.f32.mrf.mxu0
        %v4006 = vadd.f32 0.0, %v4005
        %4007 = vmatmul.bf16.gmra.mxu0 %v3924
        %v4008 = vpop.f32.mrf.mxu0
        %v4009 = vadd.f32 0.0, %v4008
        %v4010 = vpop.f32.mrf.mxu0
        %v4011 = vadd.f32 0.0, %v4010
        %4012 = vmatmul.bf16.gmra.mxu0 %v3927
        %v4013 = vpop.f32.mrf.mxu0
        %v4014 = vadd.f32 0.0, %v4013
        %v4015 = vpop.f32.mrf.mxu0
        %v4016 = vadd.f32 0.0, %v4015
        %4017 = vmatmul.bf16.gmra.mxu0 %v3930
        %v4018 = vpop.f32.mrf.mxu0
        %v4019 = vadd.f32 0.0, %v4018
        %v4020 = vpop.f32.mrf.mxu0
        %v4021 = vadd.f32 0.0, %v4020
        %4022 = vmatmul.bf16.gmra.mxu0 %v3933
        %v4023 = vpop.f32.mrf.mxu0
        %v4024 = vadd.f32 0.0, %v4023
        %v4025 = vpop.f32.mrf.mxu0
        %v4026 = vadd.f32 0.0, %v4025
        %4027 = vmatmul.bf16.gmra.mxu0 %v3936
        %v4028 = vpop.f32.mrf.mxu0
        %v4029 = vadd.f32 0.0, %v4028
        %v4030 = vpop.f32.mrf.mxu0
        %v4031 = vadd.f32 0.0, %v4030
        %4032 = vdwg.mxu0
        %v4033 = vadd.f32 %v3839, %v3955
        %v4034 = vadd.f32 %v3840, %v3999
        %v4035 = vadd.f32 %v3839, %v3957
        %v4036 = vadd.f32 %v3840, %v4001
        %v4037 = vadd.f32 %v3839, %v3960
        %v4038 = vadd.f32 %v3840, %v4004
        %v4039 = vadd.f32 %v3839, %v3962
        %v4040 = vadd.f32 %v3840, %v4006
        %v4041 = vadd.f32 %v3839, %v3965
        %v4042 = vadd.f32 %v3840, %v4009
        %v4043 = vadd.f32 %v3839, %v3967
        %v4044 = vadd.f32 %v3840, %v4011
        %v4045 = vadd.f32 %v3839, %v3970
        %v4046 = vadd.f32 %v3840, %v4014
        %v4047 = vadd.f32 %v3839, %v3972
        %v4048 = vadd.f32 %v3840, %v4016
        %v4049 = vadd.f32 %v3839, %v3975
        %v4050 = vadd.f32 %v3840, %v4019
        %v4051 = vadd.f32 %v3839, %v3977
        %v4052 = vadd.f32 %v3840, %v4021
        %v4053 = vadd.f32 %v3839, %v3980
        %v4054 = vadd.f32 %v3840, %v4024
        %v4055 = vadd.f32 %v3839, %v3982
        %v4056 = vadd.f32 %v3840, %v4026
        %v4057 = vadd.f32 %v3839, %v3985
        %v4058 = vadd.f32 %v3840, %v4029
        %v4059 = vadd.f32 %v3839, %v3987
        %v4060 = vadd.f32 %v3840, %v4031
        %s4061 = scalar_lea.vmem %s7, 88
        %v4062 = vld [vmem:[%s4061] sm:$0xff]
        %v4063 = vld [vmem:[%s4061 + $0x8] sm:$0xff]
        %v4064 = vld [vmem:[%s4061 + $0x10] sm:$0xff]
        %v4065 = vld [vmem:[%s4061 + $0x18] sm:$0xff]
        %v4066 = vld [vmem:[%s4061 + $0x20] sm:$0xff]
        %v4067 = vld [vmem:[%s4061 + $0x28] sm:$0xff]
        %v4068 = vld [vmem:[%s4061 + $0x30] sm:$0xff]
        %v4069 = vld [vmem:[%s4061 + $0x38] sm:$0xff]
        %v4070 = vld [vmem:[%s4061 + $0x40] sm:$0xff]
        %v4071 = vld [vmem:[%s4061 + $0x48] sm:$0xff]
        %v4072 = vld [vmem:[%s4061 + $0x50] sm:$0x33]
        %v4073 = vshrl.u32 %v3843, 16
        %v4075 = vshll.u32 %v3843, 16
        %v4077 = vrot.slane %v4075, 1
        %v4078 = vor.u32 %v4073, %v4077
        %v4079 = vshll.u32 %v3844, 16
        %v4081 = vrot.slane %v4079, 1
        %v4082 = vsel %vm1061, %v4078, %v4081
        %v4083 = vshrl.u32 %v3844, 16
        %v4085 = vor.u32 %v4083, %v4081
        %v4086 = vshll.u32 %v3845, 16
        %v4088 = vrot.slane %v4086, 1
        %v4089 = vsel %vm1061, %v4085, %v4088
        %v4090 = vshrl.u32 %v3845, 16
        %v4092 = vor.u32 %v4090, %v4088
        %v4093 = vshll.u32 %v3846, 16
        %v4095 = vrot.slane %v4093, 1
        %v4096 = vsel %vm1061, %v4092, %v4095
        %v4097 = vshrl.u32 %v3846, 16
        %v4099 = vor.u32 %v4097, %v4095
        %v4100 = vshll.u32 %v3847, 16
        %v4102 = vrot.slane %v4100, 1
        %v4103 = vsel %vm1061, %v4099, %v4102
        %v4104 = vshrl.u32 %v3847, 16
        %v4106 = vor.u32 %v4104, %v4102
        %v4107 = vshll.u32 %v3848, 16
        %v4109 = vrot.slane %v4107, 1
        %v4110 = vsel %vm1061, %v4106, %v4109
        %v4111 = vshrl.u32 %v3848, 16
        %v4113 = vor.u32 %v4111, %v4109
        %v4114 = vshll.u32 %v3849, 16
        %v4116 = vrot.slane %v4114, 1
        %v4117 = vsel %vm1061, %v4113, %v4116
        %v4118 = vshrl.u32 %v3849, 16
        %v4120 = vor.u32 %v4118, %v4116
        %v4132 = vunpack.c.l.b16 %v4062
        %v4133 = vunpack.c.h.b16 %v4062
        %v4134 = vunpack.c.l.b16 %v4063
        %v4135 = vunpack.c.h.b16 %v4063
        %v4136 = vunpack.c.l.b16 %v4064
        %v4137 = vunpack.c.h.b16 %v4064
        %v4138 = vunpack.c.l.b16 %v4065
        %v4139 = vunpack.c.h.b16 %v4065
        %v4140 = vunpack.c.l.b16 %v4066
        %v4141 = vunpack.c.h.b16 %v4066
        %v4142 = vunpack.c.l.b16 %v4067
        %v4143 = vunpack.c.h.b16 %v4067
        %v4144 = vunpack.c.l.b16 %v4068
        %v4145 = vunpack.c.h.b16 %v4068
        %v4146 = vunpack.c.l.b16 %v4069
        %v4147 = vunpack.c.h.b16 %v4069
        %v4148 = vunpack.c.l.b16 %v4070
        %v4149 = vunpack.c.h.b16 %v4070
        %v4150 = vunpack.c.l.b16 %v4071
        %v4151 = vunpack.c.h.b16 %v4071
        %v4152 = vunpack.c.l.b16 %v4072
        %v4153 = vunpack.c.h.b16 %v4072
        %v4154 = vpack.c.b16 %v4134, %v4132
        %v4155 = vpack.c.b16 %v4135, %v4133
        %v4156 = vpack.c.b16 %v4138, %v4136
        %v4157 = vpack.c.b16 %v4139, %v4137
        %v4158 = vpack.c.b16 %v4142, %v4140
        %v4159 = vpack.c.b16 %v4143, %v4141
        %v4160 = vpack.c.b16 %v4146, %v4144
        %v4161 = vpack.c.b16 %v4147, %v4145
        %v4162 = vpack.c.b16 %v4150, %v4148
        %v4163 = vpack.c.b16 %v4151, %v4149
        %v4164 = vpack.c.b16 %v4152, %v4152
        %v4165 = vpack.c.b16 %v4153, %v4153
        %v4177 = vsel %vm3916, %v4082, 0
        %v4180 = vsel %vm3916, %v4089, 0
        %v4183 = vsel %vm3916, %v4096, 0
        %v4186 = vsel %vm3916, %v4103, 0
        %v4189 = vsel %vm3916, %v4110, 0
        %v4192 = vsel %vm3916, %v4117, 0
        %v4195 = vsel %vm3916, %v4120, 0
        %v4198 = vsel %vm3938, %v4164, 0
        %v4201 = vsel %vm3938, %v4165, 0
        %4203 = vmatpush.bf16.msra.mxu0 0
        %4204 = vmatpush.bf16.msra.mxu0 0
        %4205 = vmatpush.bf16.msra.mxu0 %v4198
        %4206 = vmatpush.bf16.msra.mxu0 %v4162
        %4207 = vmatpush.bf16.msra.mxu0 %v4160
        %4208 = vmatpush.bf16.msra.mxu0 %v4158
        %4209 = vmatpush.bf16.msra.mxu0 %v4156
        %4210 = vmatpush.bf16.msra.mxu0 %v4154
        %4211 = vmatmul.bf16.gmra.mxu0 %v4177
        %v4212 = vpop.f32.mrf.mxu0
        %v4213 = vadd.f32 0.0, %v4212
        %v4214 = vpop.f32.mrf.mxu0
        %v4215 = vadd.f32 0.0, %v4214
        %4216 = vmatmul.bf16.gmra.mxu0 %v4180
        %v4217 = vpop.f32.mrf.mxu0
        %v4218 = vadd.f32 0.0, %v4217
        %v4219 = vpop.f32.mrf.mxu0
        %v4220 = vadd.f32 0.0, %v4219
        %4221 = vmatmul.bf16.gmra.mxu0 %v4183
        %v4222 = vpop.f32.mrf.mxu0
        %v4223 = vadd.f32 0.0, %v4222
        %v4224 = vpop.f32.mrf.mxu0
        %v4225 = vadd.f32 0.0, %v4224
        %4226 = vmatmul.bf16.gmra.mxu0 %v4186
        %v4227 = vpop.f32.mrf.mxu0
        %v4228 = vadd.f32 0.0, %v4227
        %v4229 = vpop.f32.mrf.mxu0
        %v4230 = vadd.f32 0.0, %v4229
        %4231 = vmatmul.bf16.gmra.mxu0 %v4189
        %v4232 = vpop.f32.mrf.mxu0
        %v4233 = vadd.f32 0.0, %v4232
        %v4234 = vpop.f32.mrf.mxu0
        %v4235 = vadd.f32 0.0, %v4234
        %4236 = vmatmul.bf16.gmra.mxu0 %v4192
        %v4237 = vpop.f32.mrf.mxu0
        %v4238 = vadd.f32 0.0, %v4237
        %v4239 = vpop.f32.mrf.mxu0
        %v4240 = vadd.f32 0.0, %v4239
        %4241 = vmatmul.bf16.gmra.mxu0 %v4195
        %v4242 = vpop.f32.mrf.mxu0
        %v4243 = vadd.f32 0.0, %v4242
        %v4244 = vpop.f32.mrf.mxu0
        %v4245 = vadd.f32 0.0, %v4244
        %4246 = vdwg.mxu0
        %4247 = vmatpush.bf16.msra.mxu0 0
        %4248 = vmatpush.bf16.msra.mxu0 0
        %4249 = vmatpush.bf16.msra.mxu0 %v4201
        %4250 = vmatpush.bf16.msra.mxu0 %v4163
        %4251 = vmatpush.bf16.msra.mxu0 %v4161
        %4252 = vmatpush.bf16.msra.mxu0 %v4159
        %4253 = vmatpush.bf16.msra.mxu0 %v4157
        %4254 = vmatpush.bf16.msra.mxu0 %v4155
        %4255 = vmatmul.bf16.gmra.mxu0 %v4177
        %v4256 = vpop.f32.mrf.mxu0
        %v4257 = vadd.f32 0.0, %v4256
        %v4258 = vpop.f32.mrf.mxu0
        %v4259 = vadd.f32 0.0, %v4258
        %4260 = vmatmul.bf16.gmra.mxu0 %v4180
        %v4261 = vpop.f32.mrf.mxu0
        %v4262 = vadd.f32 0.0, %v4261
        %v4263 = vpop.f32.mrf.mxu0
        %v4264 = vadd.f32 0.0, %v4263
        %4265 = vmatmul.bf16.gmra.mxu0 %v4183
        %v4266 = vpop.f32.mrf.mxu0
        %v4267 = vadd.f32 0.0, %v4266
        %v4268 = vpop.f32.mrf.mxu0
        %v4269 = vadd.f32 0.0, %v4268
        %4270 = vmatmul.bf16.gmra.mxu0 %v4186
        %v4271 = vpop.f32.mrf.mxu0
        %v4272 = vadd.f32 0.0, %v4271
        %v4273 = vpop.f32.mrf.mxu0
        %v4274 = vadd.f32 0.0, %v4273
        %4275 = vmatmul.bf16.gmra.mxu0 %v4189
        %v4276 = vpop.f32.mrf.mxu0
        %v4277 = vadd.f32 0.0, %v4276
        %v4278 = vpop.f32.mrf.mxu0
        %v4279 = vadd.f32 0.0, %v4278
        %4280 = vmatmul.bf16.gmra.mxu0 %v4192
        %v4281 = vpop.f32.mrf.mxu0
        %v4282 = vadd.f32 0.0, %v4281
        %v4283 = vpop.f32.mrf.mxu0
        %v4284 = vadd.f32 0.0, %v4283
        %4285 = vmatmul.bf16.gmra.mxu0 %v4195
        %v4286 = vpop.f32.mrf.mxu0
        %v4287 = vadd.f32 0.0, %v4286
        %v4288 = vpop.f32.mrf.mxu0
        %v4289 = vadd.f32 0.0, %v4288
        %4290 = vdwg.mxu0
        %v4291 = vadd.f32 %v4033, %v4213
        %v4292 = vadd.f32 %v4034, %v4257
        %v4293 = vadd.f32 %v4035, %v4215
        %v4294 = vadd.f32 %v4036, %v4259
        %v4295 = vadd.f32 %v4037, %v4218
        %v4296 = vadd.f32 %v4038, %v4262
        %v4297 = vadd.f32 %v4039, %v4220
        %v4298 = vadd.f32 %v4040, %v4264
        %v4299 = vadd.f32 %v4041, %v4223
        %v4300 = vadd.f32 %v4042, %v4267
        %v4301 = vadd.f32 %v4043, %v4225
        %v4302 = vadd.f32 %v4044, %v4269
        %v4303 = vadd.f32 %v4045, %v4228
        %v4304 = vadd.f32 %v4046, %v4272
        %v4305 = vadd.f32 %v4047, %v4230
        %v4306 = vadd.f32 %v4048, %v4274
        %v4307 = vadd.f32 %v4049, %v4233
        %v4308 = vadd.f32 %v4050, %v4277
        %v4309 = vadd.f32 %v4051, %v4235
        %v4310 = vadd.f32 %v4052, %v4279
        %v4311 = vadd.f32 %v4053, %v4238
        %v4312 = vadd.f32 %v4054, %v4282
        %v4313 = vadd.f32 %v4055, %v4240
        %v4314 = vadd.f32 %v4056, %v4284
        %v4315 = vadd.f32 %v4057, %v4243
        %v4316 = vadd.f32 %v4058, %v4287
        %v4317 = vadd.f32 %v4059, %v4245
        %v4318 = vadd.f32 %v4060, %v4289
        %s4319 = scalar_lea.vmem %s7, 176
        %v4320 = vld [vmem:[%s4319] sm:$0xff]
        %v4321 = vld [vmem:[%s4319 + $0x8] sm:$0xff]
        %v4322 = vld [vmem:[%s4319 + $0x10] sm:$0xff]
        %v4323 = vld [vmem:[%s4319 + $0x18] sm:$0xff]
        %v4324 = vld [vmem:[%s4319 + $0x20] sm:$0xff]
        %v4325 = vld [vmem:[%s4319 + $0x28] sm:$0xff]
        %v4326 = vld [vmem:[%s4319 + $0x30] sm:$0xff]
        %v4327 = vld [vmem:[%s4319 + $0x38] sm:$0xff]
        %v4328 = vld [vmem:[%s4319 + $0x40] sm:$0xff]
        %v4329 = vld [vmem:[%s4319 + $0x48] sm:$0xff]
        %v4330 = vld [vmem:[%s4319 + $0x50] sm:$0x33]
        %v4338 = vrot.slane %v3843, 1
        %v4339 = vrot.slane %v3844, 1
        %v4340 = vsel %vm1552, %v4338, %v4339
        %v4341 = vrot.slane %v3845, 1
        %v4342 = vsel %vm1552, %v4339, %v4341
        %v4343 = vrot.slane %v3846, 1
        %v4344 = vsel %vm1552, %v4341, %v4343
        %v4345 = vrot.slane %v3847, 1
        %v4346 = vsel %vm1552, %v4343, %v4345
        %v4347 = vrot.slane %v3848, 1
        %v4348 = vsel %vm1552, %v4345, %v4347
        %v4349 = vrot.slane %v3849, 1
        %v4350 = vsel %vm1552, %v4347, %v4349
        %v4362 = vunpack.c.l.b16 %v4320
        %v4363 = vunpack.c.h.b16 %v4320
        %v4364 = vunpack.c.l.b16 %v4321
        %v4365 = vunpack.c.h.b16 %v4321
        %v4366 = vunpack.c.l.b16 %v4322
        %v4367 = vunpack.c.h.b16 %v4322
        %v4368 = vunpack.c.l.b16 %v4323
        %v4369 = vunpack.c.h.b16 %v4323
        %v4370 = vunpack.c.l.b16 %v4324
        %v4371 = vunpack.c.h.b16 %v4324
        %v4372 = vunpack.c.l.b16 %v4325
        %v4373 = vunpack.c.h.b16 %v4325
        %v4374 = vunpack.c.l.b16 %v4326
        %v4375 = vunpack.c.h.b16 %v4326
        %v4376 = vunpack.c.l.b16 %v4327
        %v4377 = vunpack.c.h.b16 %v4327
        %v4378 = vunpack.c.l.b16 %v4328
        %v4379 = vunpack.c.h.b16 %v4328
        %v4380 = vunpack.c.l.b16 %v4329
        %v4381 = vunpack.c.h.b16 %v4329
        %v4382 = vunpack.c.l.b16 %v4330
        %v4383 = vunpack.c.h.b16 %v4330
        %v4384 = vpack.c.b16 %v4364, %v4362
        %v4385 = vpack.c.b16 %v4365, %v4363
        %v4386 = vpack.c.b16 %v4368, %v4366
        %v4387 = vpack.c.b16 %v4369, %v4367
        %v4388 = vpack.c.b16 %v4372, %v4370
        %v4389 = vpack.c.b16 %v4373, %v4371
        %v4390 = vpack.c.b16 %v4376, %v4374
        %v4391 = vpack.c.b16 %v4377, %v4375
        %v4392 = vpack.c.b16 %v4380, %v4378
        %v4393 = vpack.c.b16 %v4381, %v4379
        %v4394 = vpack.c.b16 %v4382, %v4382
        %v4395 = vpack.c.b16 %v4383, %v4383
        %v4407 = vsel %vm3916, %v4340, 0
        %v4410 = vsel %vm3916, %v4342, 0
        %v4413 = vsel %vm3916, %v4344, 0
        %v4416 = vsel %vm3916, %v4346, 0
        %v4419 = vsel %vm3916, %v4348, 0
        %v4422 = vsel %vm3916, %v4350, 0
        %v4425 = vsel %vm3916, %v4349, 0
        %v4428 = vsel %vm3938, %v4394, 0
        %v4431 = vsel %vm3938, %v4395, 0
        %4433 = vmatpush.bf16.msra.mxu0 0
        %4434 = vmatpush.bf16.msra.mxu0 0
        %4435 = vmatpush.bf16.msra.mxu0 %v4428
        %4436 = vmatpush.bf16.msra.mxu0 %v4392
        %4437 = vmatpush.bf16.msra.mxu0 %v4390
        %4438 = vmatpush.bf16.msra.mxu0 %v4388
        %4439 = vmatpush.bf16.msra.mxu0 %v4386
        %4440 = vmatpush.bf16.msra.mxu0 %v4384
        %4441 = vmatmul.bf16.gmra.mxu0 %v4407
        %v4442 = vpop.f32.mrf.mxu0
        %v4443 = vadd.f32 0.0, %v4442
        %v4444 = vpop.f32.mrf.mxu0
        %v4445 = vadd.f32 0.0, %v4444
        %4446 = vmatmul.bf16.gmra.mxu0 %v4410
        %v4447 = vpop.f32.mrf.mxu0
        %v4448 = vadd.f32 0.0, %v4447
        %v4449 = vpop.f32.mrf.mxu0
        %v4450 = vadd.f32 0.0, %v4449
        %4451 = vmatmul.bf16.gmra.mxu0 %v4413
        %v4452 = vpop.f32.mrf.mxu0
        %v4453 = vadd.f32 0.0, %v4452
        %v4454 = vpop.f32.mrf.mxu0
        %v4455 = vadd.f32 0.0, %v4454
        %4456 = vmatmul.bf16.gmra.mxu0 %v4416
        %v4457 = vpop.f32.mrf.mxu0
        %v4458 = vadd.f32 0.0, %v4457
        %v4459 = vpop.f32.mrf.mxu0
        %v4460 = vadd.f32 0.0, %v4459
        %4461 = vmatmul.bf16.gmra.mxu0 %v4419
        %v4462 = vpop.f32.mrf.mxu0
        %v4463 = vadd.f32 0.0, %v4462
        %v4464 = vpop.f32.mrf.mxu0
        %v4465 = vadd.f32 0.0, %v4464
        %4466 = vmatmul.bf16.gmra.mxu0 %v4422
        %v4467 = vpop.f32.mrf.mxu0
        %v4468 = vadd.f32 0.0, %v4467
        %v4469 = vpop.f32.mrf.mxu0
        %v4470 = vadd.f32 0.0, %v4469
        %4471 = vmatmul.bf16.gmra.mxu0 %v4425
        %v4472 = vpop.f32.mrf.mxu0
        %v4473 = vadd.f32 0.0, %v4472
        %v4474 = vpop.f32.mrf.mxu0
        %v4475 = vadd.f32 0.0, %v4474
        %4476 = vdwg.mxu0
        %4477 = vmatpush.bf16.msra.mxu0 0
        %4478 = vmatpush.bf16.msra.mxu0 0
        %4479 = vmatpush.bf16.msra.mxu0 %v4431
        %4480 = vmatpush.bf16.msra.mxu0 %v4393
        %4481 = vmatpush.bf16.msra.mxu0 %v4391
        %4482 = vmatpush.bf16.msra.mxu0 %v4389
        %4483 = vmatpush.bf16.msra.mxu0 %v4387
        %4484 = vmatpush.bf16.msra.mxu0 %v4385
        %4485 = vmatmul.bf16.gmra.mxu0 %v4407
        %v4486 = vpop.f32.mrf.mxu0
        %v4487 = vadd.f32 0.0, %v4486
        %v4488 = vpop.f32.mrf.mxu0
        %v4489 = vadd.f32 0.0, %v4488
        %4490 = vmatmul.bf16.gmra.mxu0 %v4410
        %v4491 = vpop.f32.mrf.mxu0
        %v4492 = vadd.f32 0.0, %v4491
        %v4493 = vpop.f32.mrf.mxu0
        %v4494 = vadd.f32 0.0, %v4493
        %4495 = vmatmul.bf16.gmra.mxu0 %v4413
        %v4496 = vpop.f32.mrf.mxu0
        %v4497 = vadd.f32 0.0, %v4496
        %v4498 = vpop.f32.mrf.mxu0
        %v4499 = vadd.f32 0.0, %v4498
        %4500 = vmatmul.bf16.gmra.mxu0 %v4416
        %v4501 = vpop.f32.mrf.mxu0
        %v4502 = vadd.f32 0.0, %v4501
        %v4503 = vpop.f32.mrf.mxu0
        %v4504 = vadd.f32 0.0, %v4503
        %4505 = vmatmul.bf16.gmra.mxu0 %v4419
        %v4506 = vpop.f32.mrf.mxu0
        %v4507 = vadd.f32 0.0, %v4506
        %v4508 = vpop.f32.mrf.mxu0
        %v4509 = vadd.f32 0.0, %v4508
        %4510 = vmatmul.bf16.gmra.mxu0 %v4422
        %v4511 = vpop.f32.mrf.mxu0
        %v4512 = vadd.f32 0.0, %v4511
        %v4513 = vpop.f32.mrf.mxu0
        %v4514 = vadd.f32 0.0, %v4513
        %4515 = vmatmul.bf16.gmra.mxu0 %v4425
        %v4516 = vpop.f32.mrf.mxu0
        %v4517 = vadd.f32 0.0, %v4516
        %v4518 = vpop.f32.mrf.mxu0
        %v4519 = vadd.f32 0.0, %v4518
        %4520 = vdwg.mxu0
        %v4521 = vadd.f32 %v4291, %v4443
        %v4522 = vadd.f32 %v4292, %v4487
        %v4523 = vadd.f32 %v4293, %v4445
        %v4524 = vadd.f32 %v4294, %v4489
        %v4525 = vadd.f32 %v4295, %v4448
        %v4526 = vadd.f32 %v4296, %v4492
        %v4527 = vadd.f32 %v4297, %v4450
        %v4528 = vadd.f32 %v4298, %v4494
        %v4529 = vadd.f32 %v4299, %v4453
        %v4530 = vadd.f32 %v4300, %v4497
        %v4531 = vadd.f32 %v4301, %v4455
        %v4532 = vadd.f32 %v4302, %v4499
        %v4533 = vadd.f32 %v4303, %v4458
        %v4534 = vadd.f32 %v4304, %v4502
        %v4535 = vadd.f32 %v4305, %v4460
        %v4536 = vadd.f32 %v4306, %v4504
        %v4537 = vadd.f32 %v4307, %v4463
        %v4538 = vadd.f32 %v4308, %v4507
        %v4539 = vadd.f32 %v4309, %v4465
        %v4540 = vadd.f32 %v4310, %v4509
        %v4541 = vadd.f32 %v4311, %v4468
        %v4542 = vadd.f32 %v4312, %v4512
        %v4543 = vadd.f32 %v4313, %v4470
        %v4544 = vadd.f32 %v4314, %v4514
        %v4545 = vadd.f32 %v4315, %v4473
        %v4546 = vadd.f32 %v4316, %v4517
        %v4547 = vadd.f32 %v4317, %v4475
        %v4548 = vadd.f32 %v4318, %v4519
        %s4549 = scalar_lea.vmem %s7, 264
        %v4550 = vld [vmem:[%s4549] sm:$0xff]
        %v4551 = vld [vmem:[%s4549 + $0x8] sm:$0xff]
        %v4552 = vld [vmem:[%s4549 + $0x10] sm:$0xff]
        %v4553 = vld [vmem:[%s4549 + $0x18] sm:$0xff]
        %v4554 = vld [vmem:[%s4549 + $0x20] sm:$0xff]
        %v4555 = vld [vmem:[%s4549 + $0x28] sm:$0xff]
        %v4556 = vld [vmem:[%s4549 + $0x30] sm:$0xff]
        %v4557 = vld [vmem:[%s4549 + $0x38] sm:$0xff]
        %v4558 = vld [vmem:[%s4549 + $0x40] sm:$0xff]
        %v4559 = vld [vmem:[%s4549 + $0x48] sm:$0xff]
        %v4560 = vld [vmem:[%s4549 + $0x50] sm:$0x33]
        %v4561 = vrot.slane %v4073, 1
        %v4562 = vrot.slane %v4075, 2
        %v4563 = vor.u32 %v4561, %v4562
        %v4564 = vrot.slane %v4083, 1
        %v4565 = vrot.slane %v4079, 2
        %v4566 = vor.u32 %v4564, %v4565
        %v4567 = vsel %vm1947, %v4563, %v4566
        %v4568 = vrot.slane %v4090, 1
        %v4569 = vrot.slane %v4086, 2
        %v4570 = vor.u32 %v4568, %v4569
        %v4571 = vsel %vm1947, %v4566, %v4570
        %v4572 = vrot.slane %v4097, 1
        %v4573 = vrot.slane %v4093, 2
        %v4574 = vor.u32 %v4572, %v4573
        %v4575 = vsel %vm1947, %v4570, %v4574
        %v4576 = vrot.slane %v4104, 1
        %v4577 = vrot.slane %v4100, 2
        %v4578 = vor.u32 %v4576, %v4577
        %v4579 = vsel %vm1947, %v4574, %v4578
        %v4580 = vrot.slane %v4111, 1
        %v4581 = vrot.slane %v4107, 2
        %v4582 = vor.u32 %v4580, %v4581
        %v4583 = vsel %vm1947, %v4578, %v4582
        %v4584 = vrot.slane %v4118, 1
        %v4585 = vrot.slane %v4114, 2
        %v4586 = vor.u32 %v4584, %v4585
        %v4587 = vsel %vm1947, %v4582, %v4586
        %v4599 = vunpack.c.l.b16 %v4550
        %v4600 = vunpack.c.h.b16 %v4550
        %v4601 = vunpack.c.l.b16 %v4551
        %v4602 = vunpack.c.h.b16 %v4551
        %v4603 = vunpack.c.l.b16 %v4552
        %v4604 = vunpack.c.h.b16 %v4552
        %v4605 = vunpack.c.l.b16 %v4553
        %v4606 = vunpack.c.h.b16 %v4553
        %v4607 = vunpack.c.l.b16 %v4554
        %v4608 = vunpack.c.h.b16 %v4554
        %v4609 = vunpack.c.l.b16 %v4555
        %v4610 = vunpack.c.h.b16 %v4555
        %v4611 = vunpack.c.l.b16 %v4556
        %v4612 = vunpack.c.h.b16 %v4556
        %v4613 = vunpack.c.l.b16 %v4557
        %v4614 = vunpack.c.h.b16 %v4557
        %v4615 = vunpack.c.l.b16 %v4558
        %v4616 = vunpack.c.h.b16 %v4558
        %v4617 = vunpack.c.l.b16 %v4559
        %v4618 = vunpack.c.h.b16 %v4559
        %v4619 = vunpack.c.l.b16 %v4560
        %v4620 = vunpack.c.h.b16 %v4560
        %v4621 = vpack.c.b16 %v4601, %v4599
        %v4622 = vpack.c.b16 %v4602, %v4600
        %v4623 = vpack.c.b16 %v4605, %v4603
        %v4624 = vpack.c.b16 %v4606, %v4604
        %v4625 = vpack.c.b16 %v4609, %v4607
        %v4626 = vpack.c.b16 %v4610, %v4608
        %v4627 = vpack.c.b16 %v4613, %v4611
        %v4628 = vpack.c.b16 %v4614, %v4612
        %v4629 = vpack.c.b16 %v4617, %v4615
        %v4630 = vpack.c.b16 %v4618, %v4616
        %v4631 = vpack.c.b16 %v4619, %v4619
        %v4632 = vpack.c.b16 %v4620, %v4620
        %v4644 = vsel %vm3916, %v4567, 0
        %v4647 = vsel %vm3916, %v4571, 0
        %v4650 = vsel %vm3916, %v4575, 0
        %v4653 = vsel %vm3916, %v4579, 0
        %v4656 = vsel %vm3916, %v4583, 0
        %v4659 = vsel %vm3916, %v4587, 0
        %v4662 = vsel %vm3916, %v4586, 0
        %v4665 = vsel %vm3938, %v4631, 0
        %v4668 = vsel %vm3938, %v4632, 0
        %4670 = vmatpush.bf16.msra.mxu0 0
        %4671 = vmatpush.bf16.msra.mxu0 0
        %4672 = vmatpush.bf16.msra.mxu0 %v4665
        %4673 = vmatpush.bf16.msra.mxu0 %v4629
        %4674 = vmatpush.bf16.msra.mxu0 %v4627
        %4675 = vmatpush.bf16.msra.mxu0 %v4625
        %4676 = vmatpush.bf16.msra.mxu0 %v4623
        %4677 = vmatpush.bf16.msra.mxu0 %v4621
        %4678 = vmatmul.bf16.gmra.mxu0 %v4644
        %v4679 = vpop.f32.mrf.mxu0
        %v4680 = vadd.f32 0.0, %v4679
        %v4681 = vpop.f32.mrf.mxu0
        %v4682 = vadd.f32 0.0, %v4681
        %4683 = vmatmul.bf16.gmra.mxu0 %v4647
        %v4684 = vpop.f32.mrf.mxu0
        %v4685 = vadd.f32 0.0, %v4684
        %v4686 = vpop.f32.mrf.mxu0
        %v4687 = vadd.f32 0.0, %v4686
        %4688 = vmatmul.bf16.gmra.mxu0 %v4650
        %v4689 = vpop.f32.mrf.mxu0
        %v4690 = vadd.f32 0.0, %v4689
        %v4691 = vpop.f32.mrf.mxu0
        %v4692 = vadd.f32 0.0, %v4691
        %4693 = vmatmul.bf16.gmra.mxu0 %v4653
        %v4694 = vpop.f32.mrf.mxu0
        %v4695 = vadd.f32 0.0, %v4694
        %v4696 = vpop.f32.mrf.mxu0
        %v4697 = vadd.f32 0.0, %v4696
        %4698 = vmatmul.bf16.gmra.mxu0 %v4656
        %v4699 = vpop.f32.mrf.mxu0
        %v4700 = vadd.f32 0.0, %v4699
        %v4701 = vpop.f32.mrf.mxu0
        %v4702 = vadd.f32 0.0, %v4701
        %4703 = vmatmul.bf16.gmra.mxu0 %v4659
        %v4704 = vpop.f32.mrf.mxu0
        %v4705 = vadd.f32 0.0, %v4704
        %v4706 = vpop.f32.mrf.mxu0
        %v4707 = vadd.f32 0.0, %v4706
        %4708 = vmatmul.bf16.gmra.mxu0 %v4662
        %v4709 = vpop.f32.mrf.mxu0
        %v4710 = vadd.f32 0.0, %v4709
        %v4711 = vpop.f32.mrf.mxu0
        %v4712 = vadd.f32 0.0, %v4711
        %4713 = vdwg.mxu0
        %4714 = vmatpush.bf16.msra.mxu0 0
        %4715 = vmatpush.bf16.msra.mxu0 0
        %4716 = vmatpush.bf16.msra.mxu0 %v4668
        %4717 = vmatpush.bf16.msra.mxu0 %v4630
        %4718 = vmatpush.bf16.msra.mxu0 %v4628
        %4719 = vmatpush.bf16.msra.mxu0 %v4626
        %4720 = vmatpush.bf16.msra.mxu0 %v4624
        %4721 = vmatpush.bf16.msra.mxu0 %v4622
        %4722 = vmatmul.bf16.gmra.mxu0 %v4644
        %v4723 = vpop.f32.mrf.mxu0
        %v4724 = vadd.f32 0.0, %v4723
        %v4725 = vpop.f32.mrf.mxu0
        %v4726 = vadd.f32 0.0, %v4725
        %4727 = vmatmul.bf16.gmra.mxu0 %v4647
        %v4728 = vpop.f32.mrf.mxu0
        %v4729 = vadd.f32 0.0, %v4728
        %v4730 = vpop.f32.mrf.mxu0
        %v4731 = vadd.f32 0.0, %v4730
        %4732 = vmatmul.bf16.gmra.mxu0 %v4650
        %v4733 = vpop.f32.mrf.mxu0
        %v4734 = vadd.f32 0.0, %v4733
        %v4735 = vpop.f32.mrf.mxu0
        %v4736 = vadd.f32 0.0, %v4735
        %4737 = vmatmul.bf16.gmra.mxu0 %v4653
        %v4738 = vpop.f32.mrf.mxu0
        %v4739 = vadd.f32 0.0, %v4738
        %v4740 = vpop.f32.mrf.mxu0
        %v4741 = vadd.f32 0.0, %v4740
        %4742 = vmatmul.bf16.gmra.mxu0 %v4656
        %v4743 = vpop.f32.mrf.mxu0
        %v4744 = vadd.f32 0.0, %v4743
        %v4745 = vpop.f32.mrf.mxu0
        %v4746 = vadd.f32 0.0, %v4745
        %4747 = vmatmul.bf16.gmra.mxu0 %v4659
        %v4748 = vpop.f32.mrf.mxu0
        %v4749 = vadd.f32 0.0, %v4748
        %v4750 = vpop.f32.mrf.mxu0
        %v4751 = vadd.f32 0.0, %v4750
        %4752 = vmatmul.bf16.gmra.mxu0 %v4662
        %v4753 = vpop.f32.mrf.mxu0
        %v4754 = vadd.f32 0.0, %v4753
        %v4755 = vpop.f32.mrf.mxu0
        %v4756 = vadd.f32 0.0, %v4755
        %4757 = vdwg.mxu0
        %v4758 = vadd.f32 %v4521, %v4680
        %v4759 = vadd.f32 %v4522, %v4724
        %v4760 = vadd.f32 %v4523, %v4682
        %v4761 = vadd.f32 %v4524, %v4726
        %v4762 = vadd.f32 %v4525, %v4685
        %v4763 = vadd.f32 %v4526, %v4729
        %v4764 = vadd.f32 %v4527, %v4687
        %v4765 = vadd.f32 %v4528, %v4731
        %v4766 = vadd.f32 %v4529, %v4690
        %v4767 = vadd.f32 %v4530, %v4734
        %v4768 = vadd.f32 %v4531, %v4692
        %v4769 = vadd.f32 %v4532, %v4736
        %v4770 = vadd.f32 %v4533, %v4695
        %v4771 = vadd.f32 %v4534, %v4739
        %v4772 = vadd.f32 %v4535, %v4697
        %v4773 = vadd.f32 %v4536, %v4741
        %v4774 = vadd.f32 %v4537, %v4700
        %v4775 = vadd.f32 %v4538, %v4744
        %v4776 = vadd.f32 %v4539, %v4702
        %v4777 = vadd.f32 %v4540, %v4746
        %v4778 = vadd.f32 %v4541, %v4705
        %v4779 = vadd.f32 %v4542, %v4749
        %v4780 = vadd.f32 %v4543, %v4707
        %v4781 = vadd.f32 %v4544, %v4751
        %v4782 = vadd.f32 %v4545, %v4710
        %v4783 = vadd.f32 %v4546, %v4754
        %v4784 = vadd.f32 %v4547, %v4712
        %v4785 = vadd.f32 %v4548, %v4756
        %s4786 = scalar_lea.vmem %s7, 352
        %v4787 = vld [vmem:[%s4786] sm:$0xff]
        %v4788 = vld [vmem:[%s4786 + $0x8] sm:$0xff]
        %v4789 = vld [vmem:[%s4786 + $0x10] sm:$0xff]
        %v4790 = vld [vmem:[%s4786 + $0x18] sm:$0xff]
        %v4791 = vld [vmem:[%s4786 + $0x20] sm:$0xff]
        %v4792 = vld [vmem:[%s4786 + $0x28] sm:$0xff]
        %v4793 = vld [vmem:[%s4786 + $0x30] sm:$0xff]
        %v4794 = vld [vmem:[%s4786 + $0x38] sm:$0xff]
        %v4795 = vld [vmem:[%s4786 + $0x40] sm:$0xff]
        %v4796 = vld [vmem:[%s4786 + $0x48] sm:$0xff]
        %v4797 = vld [vmem:[%s4786 + $0x50] sm:$0x33]
        %v4798 = vrot.slane %v3843, 2
        %v4799 = vrot.slane %v3844, 2
        %v4800 = vsel %vm2374, %v4798, %v4799
        %v4801 = vrot.slane %v3845, 2
        %v4802 = vsel %vm2374, %v4799, %v4801
        %v4803 = vrot.slane %v3846, 2
        %v4804 = vsel %vm2374, %v4801, %v4803
        %v4805 = vrot.slane %v3847, 2
        %v4806 = vsel %vm2374, %v4803, %v4805
        %v4807 = vrot.slane %v3848, 2
        %v4808 = vsel %vm2374, %v4805, %v4807
        %v4809 = vrot.slane %v3849, 2
        %v4810 = vsel %vm2374, %v4807, %v4809
        %v4822 = vunpack.c.l.b16 %v4787
        %v4823 = vunpack.c.h.b16 %v4787
        %v4824 = vunpack.c.l.b16 %v4788
        %v4825 = vunpack.c.h.b16 %v4788
        %v4826 = vunpack.c.l.b16 %v4789
        %v4827 = vunpack.c.h.b16 %v4789
        %v4828 = vunpack.c.l.b16 %v4790
        %v4829 = vunpack.c.h.b16 %v4790
        %v4830 = vunpack.c.l.b16 %v4791
        %v4831 = vunpack.c.h.b16 %v4791
        %v4832 = vunpack.c.l.b16 %v4792
        %v4833 = vunpack.c.h.b16 %v4792
        %v4834 = vunpack.c.l.b16 %v4793
        %v4835 = vunpack.c.h.b16 %v4793
        %v4836 = vunpack.c.l.b16 %v4794
        %v4837 = vunpack.c.h.b16 %v4794
        %v4838 = vunpack.c.l.b16 %v4795
        %v4839 = vunpack.c.h.b16 %v4795
        %v4840 = vunpack.c.l.b16 %v4796
        %v4841 = vunpack.c.h.b16 %v4796
        %v4842 = vunpack.c.l.b16 %v4797
        %v4843 = vunpack.c.h.b16 %v4797
        %v4844 = vpack.c.b16 %v4824, %v4822
        %v4845 = vpack.c.b16 %v4825, %v4823
        %v4846 = vpack.c.b16 %v4828, %v4826
        %v4847 = vpack.c.b16 %v4829, %v4827
        %v4848 = vpack.c.b16 %v4832, %v4830
        %v4849 = vpack.c.b16 %v4833, %v4831
        %v4850 = vpack.c.b16 %v4836, %v4834
        %v4851 = vpack.c.b16 %v4837, %v4835
        %v4852 = vpack.c.b16 %v4840, %v4838
        %v4853 = vpack.c.b16 %v4841, %v4839
        %v4854 = vpack.c.b16 %v4842, %v4842
        %v4855 = vpack.c.b16 %v4843, %v4843
        %v4867 = vsel %vm3916, %v4800, 0
        %v4870 = vsel %vm3916, %v4802, 0
        %v4873 = vsel %vm3916, %v4804, 0
        %v4876 = vsel %vm3916, %v4806, 0
        %v4879 = vsel %vm3916, %v4808, 0
        %v4882 = vsel %vm3916, %v4810, 0
        %v4885 = vsel %vm3916, %v4809, 0
        %v4888 = vsel %vm3938, %v4854, 0
        %v4891 = vsel %vm3938, %v4855, 0
        %4893 = vmatpush.bf16.msra.mxu0 0
        %4894 = vmatpush.bf16.msra.mxu0 0
        %4895 = vmatpush.bf16.msra.mxu0 %v4888
        %4896 = vmatpush.bf16.msra.mxu0 %v4852
        %4897 = vmatpush.bf16.msra.mxu0 %v4850
        %4898 = vmatpush.bf16.msra.mxu0 %v4848
        %4899 = vmatpush.bf16.msra.mxu0 %v4846
        %4900 = vmatpush.bf16.msra.mxu0 %v4844
        %4901 = vmatmul.bf16.gmra.mxu0 %v4867
        %v4902 = vpop.f32.mrf.mxu0
        %v4903 = vadd.f32 0.0, %v4902
        %v4904 = vpop.f32.mrf.mxu0
        %v4905 = vadd.f32 0.0, %v4904
        %4906 = vmatmul.bf16.gmra.mxu0 %v4870
        %v4907 = vpop.f32.mrf.mxu0
        %v4908 = vadd.f32 0.0, %v4907
        %v4909 = vpop.f32.mrf.mxu0
        %v4910 = vadd.f32 0.0, %v4909
        %4911 = vmatmul.bf16.gmra.mxu0 %v4873
        %v4912 = vpop.f32.mrf.mxu0
        %v4913 = vadd.f32 0.0, %v4912
        %v4914 = vpop.f32.mrf.mxu0
        %v4915 = vadd.f32 0.0, %v4914
        %4916 = vmatmul.bf16.gmra.mxu0 %v4876
        %v4917 = vpop.f32.mrf.mxu0
        %v4918 = vadd.f32 0.0, %v4917
        %v4919 = vpop.f32.mrf.mxu0
        %v4920 = vadd.f32 0.0, %v4919
        %4921 = vmatmul.bf16.gmra.mxu0 %v4879
        %v4922 = vpop.f32.mrf.mxu0
        %v4923 = vadd.f32 0.0, %v4922
        %v4924 = vpop.f32.mrf.mxu0
        %v4925 = vadd.f32 0.0, %v4924
        %4926 = vmatmul.bf16.gmra.mxu0 %v4882
        %v4927 = vpop.f32.mrf.mxu0
        %v4928 = vadd.f32 0.0, %v4927
        %v4929 = vpop.f32.mrf.mxu0
        %v4930 = vadd.f32 0.0, %v4929
        %4931 = vmatmul.bf16.gmra.mxu0 %v4885
        %v4932 = vpop.f32.mrf.mxu0
        %v4933 = vadd.f32 0.0, %v4932
        %v4934 = vpop.f32.mrf.mxu0
        %v4935 = vadd.f32 0.0, %v4934
        %4936 = vdwg.mxu0
        %4937 = vmatpush.bf16.msra.mxu0 0
        %4938 = vmatpush.bf16.msra.mxu0 0
        %4939 = vmatpush.bf16.msra.mxu0 %v4891
        %4940 = vmatpush.bf16.msra.mxu0 %v4853
        %4941 = vmatpush.bf16.msra.mxu0 %v4851
        %4942 = vmatpush.bf16.msra.mxu0 %v4849
        %4943 = vmatpush.bf16.msra.mxu0 %v4847
        %4944 = vmatpush.bf16.msra.mxu0 %v4845
        %4945 = vmatmul.bf16.gmra.mxu0 %v4867
        %v4946 = vpop.f32.mrf.mxu0
        %v4947 = vadd.f32 0.0, %v4946
        %v4948 = vpop.f32.mrf.mxu0
        %v4949 = vadd.f32 0.0, %v4948
        %4950 = vmatmul.bf16.gmra.mxu0 %v4870
        %v4951 = vpop.f32.mrf.mxu0
        %v4952 = vadd.f32 0.0, %v4951
        %v4953 = vpop.f32.mrf.mxu0
        %v4954 = vadd.f32 0.0, %v4953
        %4955 = vmatmul.bf16.gmra.mxu0 %v4873
        %v4956 = vpop.f32.mrf.mxu0
        %v4957 = vadd.f32 0.0, %v4956
        %v4958 = vpop.f32.mrf.mxu0
        %v4959 = vadd.f32 0.0, %v4958
        %4960 = vmatmul.bf16.gmra.mxu0 %v4876
        %v4961 = vpop.f32.mrf.mxu0
        %v4962 = vadd.f32 0.0, %v4961
        %v4963 = vpop.f32.mrf.mxu0
        %v4964 = vadd.f32 0.0, %v4963
        %4965 = vmatmul.bf16.gmra.mxu0 %v4879
        %v4966 = vpop.f32.mrf.mxu0
        %v4967 = vadd.f32 0.0, %v4966
        %v4968 = vpop.f32.mrf.mxu0
        %v4969 = vadd.f32 0.0, %v4968
        %4970 = vmatmul.bf16.gmra.mxu0 %v4882
        %v4971 = vpop.f32.mrf.mxu0
        %v4972 = vadd.f32 0.0, %v4971
        %v4973 = vpop.f32.mrf.mxu0
        %v4974 = vadd.f32 0.0, %v4973
        %4975 = vmatmul.bf16.gmra.mxu0 %v4885
        %v4976 = vpop.f32.mrf.mxu0
        %v4977 = vadd.f32 0.0, %v4976
        %v4978 = vpop.f32.mrf.mxu0
        %v4979 = vadd.f32 0.0, %v4978
        %4980 = vdwg.mxu0
        %v4981 = vadd.f32 %v4758, %v4903
        %v4982 = vadd.f32 %v4759, %v4947
        %v4983 = vadd.f32 %v4760, %v4905
        %v4984 = vadd.f32 %v4761, %v4949
        %v4985 = vadd.f32 %v4762, %v4908
        %v4986 = vadd.f32 %v4763, %v4952
        %v4987 = vadd.f32 %v4764, %v4910
        %v4988 = vadd.f32 %v4765, %v4954
        %v4989 = vadd.f32 %v4766, %v4913
        %v4990 = vadd.f32 %v4767, %v4957
        %v4991 = vadd.f32 %v4768, %v4915
        %v4992 = vadd.f32 %v4769, %v4959
        %v4993 = vadd.f32 %v4770, %v4918
        %v4994 = vadd.f32 %v4771, %v4962
        %v4995 = vadd.f32 %v4772, %v4920
        %v4996 = vadd.f32 %v4773, %v4964
        %v4997 = vadd.f32 %v4774, %v4923
        %v4998 = vadd.f32 %v4775, %v4967
        %v4999 = vadd.f32 %v4776, %v4925
        %v5000 = vadd.f32 %v4777, %v4969
        %v5001 = vadd.f32 %v4778, %v4928
        %v5002 = vadd.f32 %v4779, %v4972
        %v5003 = vadd.f32 %v4780, %v4930
        %v5004 = vadd.f32 %v4781, %v4974
        %v5005 = vadd.f32 %v4782, %v4933
        %v5006 = vadd.f32 %v4783, %v4977
        %v5007 = vadd.f32 %v4784, %v4935
        %v5008 = vadd.f32 %v4785, %v4979
        %v5009 = vmax.f32 %v4981, 0.0
        %v5010 = vmax.f32 %v4982, 0.0
        %v5011 = vmax.f32 %v4983, 0.0
        %v5012 = vmax.f32 %v4984, 0.0
        %v5013 = vmax.f32 %v4985, 0.0
        %v5014 = vmax.f32 %v4986, 0.0
        %v5015 = vmax.f32 %v4987, 0.0
        %v5016 = vmax.f32 %v4988, 0.0
        %v5017 = vmax.f32 %v4989, 0.0
        %v5018 = vmax.f32 %v4990, 0.0
        %v5019 = vmax.f32 %v4991, 0.0
        %v5020 = vmax.f32 %v4992, 0.0
        %v5021 = vmax.f32 %v4993, 0.0
        %v5022 = vmax.f32 %v4994, 0.0
        %v5023 = vmax.f32 %v4995, 0.0
        %v5024 = vmax.f32 %v4996, 0.0
        %v5025 = vmax.f32 %v4997, 0.0
        %v5026 = vmax.f32 %v4998, 0.0
        %v5027 = vmax.f32 %v4999, 0.0
        %v5028 = vmax.f32 %v5000, 0.0
        %v5029 = vmax.f32 %v5001, 0.0
        %v5030 = vmax.f32 %v5002, 0.0
        %v5031 = vmax.f32 %v5003, 0.0
        %v5032 = vmax.f32 %v5004, 0.0
        %v5033 = vmax.f32 %v5005, 0.0
        %v5034 = vmax.f32 %v5006, 0.0
        %v5035 = vmax.f32 %v5007, 0.0
        %v5036 = vmax.f32 %v5008, 0.0
        %v5037 = vpack.c.bf16 %v5011, %v5009
        %v5038 = vpack.c.bf16 %v5012, %v5010
        %v5039 = vpack.c.bf16 %v5015, %v5013
        %v5040 = vpack.c.bf16 %v5016, %v5014
        %v5041 = vpack.c.bf16 %v5019, %v5017
        %v5042 = vpack.c.bf16 %v5020, %v5018
        %v5043 = vpack.c.bf16 %v5023, %v5021
        %v5044 = vpack.c.bf16 %v5024, %v5022
        %v5045 = vpack.c.bf16 %v5027, %v5025
        %v5046 = vpack.c.bf16 %v5028, %v5026
        %v5047 = vpack.c.bf16 %v5031, %v5029
        %v5048 = vpack.c.bf16 %v5032, %v5030
        %v5049 = vpack.c.bf16 %v5035, %v5033
        %v5050 = vpack.c.bf16 %v5036, %v5034
        %v5051 = vld [vmem:[%s9] sm:$0xf]
        %v5052 = vld [vmem:[%s9 + $0x4] sm:$0xf]
        %v5053 = vld [vmem:[%s9 + $0x8] sm:$0xf]
        %v5054 = vld [vmem:[%s9 + $0xc] sm:$0xf]
        %v5055 = vld [vmem:[%s9 + $0x10] sm:$0xf]
        %v5061 = vunpack.c.l.b16 %v5051
        %v5062 = vunpack.c.l.b16 %v5052
        %v5063 = vunpack.c.l.b16 %v5053
        %v5064 = vunpack.c.l.b16 %v5054
        %v5065 = vunpack.c.l.b16 %v5055
        %v5066 = vpack.c.b16 %v5062, %v5061
        %v5067 = vpack.c.b16 %v5064, %v5063
        %v5068 = vpack.c.b16 %v5065, %v5065
        %vm5069 = vcmask 883712
        %v5071 = vsel %vm5069, %v5066, 0
        %v5074 = vsel %vm5069, %v5067, 0
        %v5077 = vsel %vm5069, %v5068, 0
        %v5080 = vsel %vm2951, %v5049, 0
        %v5083 = vsel %vm2951, %v5050, 0
        %5085 = vmatpush.bf16.msra.mxu0 0
        %5086 = vmatpush.bf16.msra.mxu0 %v5080
        %5087 = vmatpush.bf16.msra.mxu0 %v5047
        %5088 = vmatpush.bf16.msra.mxu0 %v5045
        %5089 = vmatpush.bf16.msra.mxu0 %v5043
        %5090 = vmatpush.bf16.msra.mxu0 %v5041
        %5091 = vmatpush.bf16.msra.mxu0 %v5039
        %5092 = vmatpush.bf16.msra.mxu0 %v5037
        %5093 = vmatmul.bf16.gmra.mxu0 %v5071
        %v5094 = vpop.f32.mrf.mxu0
        %v5095 = vadd.f32 0.0, %v5094
        %v5096 = vpop.f32.mrf.mxu0
        %v5097 = vadd.f32 0.0, %v5096
        %5098 = vmatmul.bf16.gmra.mxu0 %v5074
        %v5099 = vpop.f32.mrf.mxu0
        %v5100 = vadd.f32 0.0, %v5099
        %v5101 = vpop.f32.mrf.mxu0
        %v5102 = vadd.f32 0.0, %v5101
        %5103 = vmatmul.bf16.gmra.mxu0 %v5077
        %v5104 = vpop.f32.mrf.mxu0
        %v5105 = vadd.f32 0.0, %v5104
        %v5106 = vpop.f32.mrf.mxu0
        %5107 = vdwg.mxu0
        %5108 = vmatpush.bf16.msra.mxu0 0
        %5109 = vmatpush.bf16.msra.mxu0 %v5083
        %5110 = vmatpush.bf16.msra.mxu0 %v5048
        %5111 = vmatpush.bf16.msra.mxu0 %v5046
        %5112 = vmatpush.bf16.msra.mxu0 %v5044
        %5113 = vmatpush.bf16.msra.mxu0 %v5042
        %5114 = vmatpush.bf16.msra.mxu0 %v5040
        %5115 = vmatpush.bf16.msra.mxu0 %v5038
        %5116 = vmatmul.bf16.gmra.mxu0 %v5071
        %v5117 = vpop.f32.mrf.mxu0
        %v5118 = vadd.f32 0.0, %v5117
        %v5119 = vpop.f32.mrf.mxu0
        %v5120 = vadd.f32 0.0, %v5119
        %5121 = vmatmul.bf16.gmra.mxu0 %v5074
        %v5122 = vpop.f32.mrf.mxu0
        %v5123 = vadd.f32 0.0, %v5122
        %v5124 = vpop.f32.mrf.mxu0
        %v5125 = vadd.f32 0.0, %v5124
        %5126 = vmatmul.bf16.gmra.mxu0 %v5077
        %v5127 = vpop.f32.mrf.mxu0
        %v5128 = vadd.f32 0.0, %v5127
        %v5129 = vpop.f32.mrf.mxu0
        %5130 = vdwg.mxu0
        %v5131 = vld [vmem:[%s10] sm:$0xf]
        %v5132 = vld [vmem:[%s10 + $0x4] sm:$0xf]
        %v5133 = vld [vmem:[%s10 + $0x8] sm:$0xf]
        %v5134 = vld [vmem:[%s10 + $0xc] sm:$0xf]
        %v5135 = vld [vmem:[%s10 + $0x10] sm:$0xf]
        %v5141 = vunpack.c.l.b16 %v5131
        %v5142 = vunpack.c.l.b16 %v5132
        %v5143 = vunpack.c.l.b16 %v5133
        %v5144 = vunpack.c.l.b16 %v5134
        %v5145 = vunpack.c.l.b16 %v5135
        %v5146 = vpack.c.b16 %v5142, %v5141
        %v5147 = vpack.c.b16 %v5144, %v5143
        %v5148 = vpack.c.b16 %v5145, %v5145
        %v5150 = vsel %vm5069, %v5146, 0
        %v5153 = vsel %vm5069, %v5147, 0
        %v5156 = vsel %vm5069, %v5148, 0
        %5158 = vmatpush.bf16.msra.mxu0 0
        %5159 = vmatpush.bf16.msra.mxu0 %v5080
        %5160 = vmatpush.bf16.msra.mxu0 %v5047
        %5161 = vmatpush.bf16.msra.mxu0 %v5045
        %5162 = vmatpush.bf16.msra.mxu0 %v5043
        %5163 = vmatpush.bf16.msra.mxu0 %v5041
        %5164 = vmatpush.bf16.msra.mxu0 %v5039
        %5165 = vmatpush.bf16.msra.mxu0 %v5037
        %5166 = vmatmul.bf16.gmra.mxu0 %v5150
        %v5167 = vpop.f32.mrf.mxu0
        %v5168 = vadd.f32 0.0, %v5167
        %v5169 = vpop.f32.mrf.mxu0
        %v5170 = vadd.f32 0.0, %v5169
        %5171 = vmatmul.bf16.gmra.mxu0 %v5153
        %v5172 = vpop.f32.mrf.mxu0
        %v5173 = vadd.f32 0.0, %v5172
        %v5174 = vpop.f32.mrf.mxu0
        %v5175 = vadd.f32 0.0, %v5174
        %5176 = vmatmul.bf16.gmra.mxu0 %v5156
        %v5177 = vpop.f32.mrf.mxu0
        %v5178 = vadd.f32 0.0, %v5177
        %v5179 = vpop.f32.mrf.mxu0
        %5180 = vdwg.mxu0
        %5181 = vmatpush.bf16.msra.mxu0 0
        %5182 = vmatpush.bf16.msra.mxu0 %v5083
        %5183 = vmatpush.bf16.msra.mxu0 %v5048
        %5184 = vmatpush.bf16.msra.mxu0 %v5046
        %5185 = vmatpush.bf16.msra.mxu0 %v5044
        %5186 = vmatpush.bf16.msra.mxu0 %v5042
        %5187 = vmatpush.bf16.msra.mxu0 %v5040
        %5188 = vmatpush.bf16.msra.mxu0 %v5038
        %5189 = vmatmul.bf16.gmra.mxu0 %v5150
        %v5190 = vpop.f32.mrf.mxu0
        %v5191 = vadd.f32 0.0, %v5190
        %v5192 = vpop.f32.mrf.mxu0
        %v5193 = vadd.f32 0.0, %v5192
        %5194 = vmatmul.bf16.gmra.mxu0 %v5153
        %v5195 = vpop.f32.mrf.mxu0
        %v5196 = vadd.f32 0.0, %v5195
        %v5197 = vpop.f32.mrf.mxu0
        %v5198 = vadd.f32 0.0, %v5197
        %5199 = vmatmul.bf16.gmra.mxu0 %v5156
        %v5200 = vpop.f32.mrf.mxu0
        %v5201 = vadd.f32 0.0, %v5200
        %v5202 = vpop.f32.mrf.mxu0
        %5203 = vdwg.mxu0
        %v5204 = vmax.f32 %v5095, %v5168
        %v5205 = vmax.f32 %v5118, %v5191
        %v5206 = vmax.f32 %v5097, %v5170
        %v5207 = vmax.f32 %v5120, %v5193
        %v5208 = vmax.f32 %v5100, %v5173
        %v5209 = vmax.f32 %v5123, %v5196
        %v5210 = vmax.f32 %v5102, %v5175
        %v5211 = vmax.f32 %v5125, %v5198
        %v5212 = vmax.f32 %v5105, %v5178
        %v5213 = vmax.f32 %v5128, %v5201
        %v5214 = vpack.c.bf16 %v5206, %v5204
        %v5215 = vpack.c.bf16 %v5207, %v5205
        %v5216 = vpack.c.bf16 %v5210, %v5208
        %v5217 = vpack.c.bf16 %v5211, %v5209
        %v5218 = vpack.c.bf16 %v5212, %v5212
        %v5219 = vpack.c.bf16 %v5213, %v5213
        %v5220 = vld [vmem:[%s11] sm:$0xf]
        %v5221 = vld [vmem:[%s11 + $0x4] sm:$0xf]
        %v5222 = vld [vmem:[%s11 + $0x8] sm:$0xf]
        %v5223 = vld [vmem:[%s11 + $0xc] sm:$0xf]
        %v5224 = vld [vmem:[%s11 + $0x10] sm:$0xf]
        %v5225 = vld [vmem:[%s11 + $0x14] sm:$0xf]
        %v5226 = vld [vmem:[%s11 + $0x18] sm:$0xf]
        %v5227 = vld [vmem:[%s11 + $0x1c] sm:$0xf]
        %v5228 = vld [vmem:[%s11 + $0x20] sm:$0xf]
        %v5229 = vld [vmem:[%s11 + $0x24] sm:$0xf]
        %v5230 = vld [vmem:[%s11 + $0x28] sm:$0xf]
        %v5231 = vld [vmem:[%s11 + $0x2c] sm:$0xf]
        %v5232 = vld [vmem:[%s11 + $0x30] sm:$0xf]
        %v5233 = vld [vmem:[%s11 + $0x34] sm:$0xf]
        %v5234 = vld [vmem:[%s11 + $0x38] sm:$0xf]
        %v5235 = vld [vmem:[%s11 + $0x3c] sm:$0xf]
        %v5236 = vld [vmem:[%s11 + $0x40] sm:$0xf]
        %v5237 = vld [vmem:[%s11 + $0x44] sm:$0xf]
        %v5238 = vld [vmem:[%s11 + $0x48] sm:$0xf]
        %v5239 = vld [vmem:[%s11 + $0x4c] sm:$0xf]
        %v5260 = vunpack.c.l.b16 %v5220
        %v5261 = vunpack.c.l.b16 %v5221
        %v5262 = vunpack.c.l.b16 %v5222
        %v5263 = vunpack.c.l.b16 %v5223
        %v5264 = vunpack.c.l.b16 %v5224
        %v5265 = vunpack.c.l.b16 %v5225
        %v5266 = vunpack.c.l.b16 %v5226
        %v5267 = vunpack.c.l.b16 %v5227
        %v5268 = vunpack.c.l.b16 %v5228
        %v5269 = vunpack.c.l.b16 %v5229
        %v5270 = vunpack.c.l.b16 %v5230
        %v5271 = vunpack.c.l.b16 %v5231
        %v5272 = vunpack.c.l.b16 %v5232
        %v5273 = vunpack.c.l.b16 %v5233
        %v5274 = vunpack.c.l.b16 %v5234
        %v5275 = vunpack.c.l.b16 %v5235
        %v5276 = vunpack.c.l.b16 %v5236
        %v5277 = vunpack.c.l.b16 %v5237
        %v5278 = vunpack.c.l.b16 %v5238
        %v5279 = vunpack.c.l.b16 %v5239
        %v5280 = vpack.c.b16 %v5261, %v5260
        %v5281 = vpack.c.b16 %v5263, %v5262
        %v5282 = vpack.c.b16 %v5265, %v5264
        %v5283 = vpack.c.b16 %v5267, %v5266
        %v5284 = vpack.c.b16 %v5269, %v5268
        %v5285 = vpack.c.b16 %v5271, %v5270
        %v5286 = vpack.c.b16 %v5273, %v5272
        %v5287 = vpack.c.b16 %v5275, %v5274
        %v5288 = vpack.c.b16 %v5277, %v5276
        %v5289 = vpack.c.b16 %v5279, %v5278
        %vm5300 = vcmask 261120
        %v5302 = vsel %vm5300, %v5215, 0
        %v5305 = vsel %vm5300, %v5217, 0
        %v5308 = vsel %vm5300, %v5219, 0
        %5310 = vmatpush.bf16.msra.mxu0 %v5287
        %5311 = vmatpush.bf16.msra.mxu0 %v5286
        %5312 = vmatpush.bf16.msra.mxu0 %v5285
        %5313 = vmatpush.bf16.msra.mxu0 %v5284
        %5314 = vmatpush.bf16.msra.mxu0 %v5283
        %5315 = vmatpush.bf16.msra.mxu0 %v5282
        %5316 = vmatpush.bf16.msra.mxu0 %v5281
        %5317 = vmatpush.bf16.msra.mxu0 %v5280
        %5318 = vmatmul.bf16.gmra.mxu0 %v5214
        %v5319 = vpop.f32.mrf.mxu0
        %v5320 = vadd.f32 0.0, %v5319
        %v5321 = vpop.f32.mrf.mxu0
        %v5322 = vadd.f32 0.0, %v5321
        %5323 = vmatmul.bf16.gmra.mxu0 %v5216
        %v5324 = vpop.f32.mrf.mxu0
        %v5325 = vadd.f32 0.0, %v5324
        %v5326 = vpop.f32.mrf.mxu0
        %v5327 = vadd.f32 0.0, %v5326
        %5328 = vmatmul.bf16.gmra.mxu0 %v5218
        %v5329 = vpop.f32.mrf.mxu0
        %v5330 = vadd.f32 0.0, %v5329
        %v5331 = vpop.f32.mrf.mxu0
        %5332 = vdwg.mxu0
        %5333 = vmatpush.bf16.msra.mxu0 0
        %5334 = vmatpush.bf16.msra.mxu0 0
        %5335 = vmatpush.bf16.msra.mxu0 0
        %5336 = vmatpush.bf16.msra.mxu0 0
        %5337 = vmatpush.bf16.msra.mxu0 0
        %5338 = vmatpush.bf16.msra.mxu0 0
        %5339 = vmatpush.bf16.msra.mxu0 %v5289
        %5340 = vmatpush.bf16.msra.mxu0 %v5288
        %5341 = vmatmul.bf16.gmra.mxu0 %v5302
        %v5342 = vpop.f32.mrf.mxu0
        %v5343 = vadd.f32 %v5320, %v5342
        %v5344 = vpop.f32.mrf.mxu0
        %v5345 = vadd.f32 %v5322, %v5344
        %5346 = vmatmul.bf16.gmra.mxu0 %v5305
        %v5347 = vpop.f32.mrf.mxu0
        %v5348 = vadd.f32 %v5325, %v5347
        %v5349 = vpop.f32.mrf.mxu0
        %v5350 = vadd.f32 %v5327, %v5349
        %5351 = vmatmul.bf16.gmra.mxu0 %v5308
        %v5352 = vpop.f32.mrf.mxu0
        %v5353 = vadd.f32 %v5330, %v5352
        %v5354 = vpop.f32.mrf.mxu0
        %5355 = vdwg.mxu0
        %v5356 = vld [vmem:[%s12] sm:$0xf]
        %v5357 = vld [vmem:[%s12 + $0x4] sm:$0xf]
        %v5358 = vld [vmem:[%s12 + $0x8] sm:$0xf]
        %v5359 = vld [vmem:[%s12 + $0xc] sm:$0xf]
        %v5360 = vld [vmem:[%s12 + $0x10] sm:$0xf]
        %v5361 = vld [vmem:[%s12 + $0x14] sm:$0xf]
        %v5362 = vld [vmem:[%s12 + $0x18] sm:$0xf]
        %v5363 = vld [vmem:[%s12 + $0x1c] sm:$0xf]
        %v5364 = vld [vmem:[%s12 + $0x20] sm:$0xf]
        %v5365 = vld [vmem:[%s12 + $0x24] sm:$0xf]
        %v5366 = vld [vmem:[%s12 + $0x28] sm:$0xf]
        %v5367 = vld [vmem:[%s12 + $0x2c] sm:$0xf]
        %v5368 = vld [vmem:[%s12 + $0x30] sm:$0xf]
        %v5369 = vld [vmem:[%s12 + $0x34] sm:$0xf]
        %v5370 = vld [vmem:[%s12 + $0x38] sm:$0xf]
        %v5371 = vld [vmem:[%s12 + $0x3c] sm:$0xf]
        %v5372 = vld [vmem:[%s12 + $0x40] sm:$0xf]
        %v5373 = vld [vmem:[%s12 + $0x44] sm:$0xf]
        %v5374 = vld [vmem:[%s12 + $0x48] sm:$0xf]
        %v5375 = vld [vmem:[%s12 + $0x4c] sm:$0xf]
        %v5396 = vunpack.c.l.b16 %v5356
        %v5397 = vunpack.c.l.b16 %v5357
        %v5398 = vunpack.c.l.b16 %v5358
        %v5399 = vunpack.c.l.b16 %v5359
        %v5400 = vunpack.c.l.b16 %v5360
        %v5401 = vunpack.c.l.b16 %v5361
        %v5402 = vunpack.c.l.b16 %v5362
        %v5403 = vunpack.c.l.b16 %v5363
        %v5404 = vunpack.c.l.b16 %v5364
        %v5405 = vunpack.c.l.b16 %v5365
        %v5406 = vunpack.c.l.b16 %v5366
        %v5407 = vunpack.c.l.b16 %v5367
        %v5408 = vunpack.c.l.b16 %v5368
        %v5409 = vunpack.c.l.b16 %v5369
        %v5410 = vunpack.c.l.b16 %v5370
        %v5411 = vunpack.c.l.b16 %v5371
        %v5412 = vunpack.c.l.b16 %v5372
        %v5413 = vunpack.c.l.b16 %v5373
        %v5414 = vunpack.c.l.b16 %v5374
        %v5415 = vunpack.c.l.b16 %v5375
        %v5416 = vpack.c.b16 %v5397, %v5396
        %v5417 = vpack.c.b16 %v5399, %v5398
        %v5418 = vpack.c.b16 %v5401, %v5400
        %v5419 = vpack.c.b16 %v5403, %v5402
        %v5420 = vpack.c.b16 %v5405, %v5404
        %v5421 = vpack.c.b16 %v5407, %v5406
        %v5422 = vpack.c.b16 %v5409, %v5408
        %v5423 = vpack.c.b16 %v5411, %v5410
        %v5424 = vpack.c.b16 %v5413, %v5412
        %v5425 = vpack.c.b16 %v5415, %v5414
        %5436 = vmatpush.bf16.msra.mxu0 %v5423
        %5437 = vmatpush.bf16.msra.mxu0 %v5422
        %5438 = vmatpush.bf16.msra.mxu0 %v5421
        %5439 = vmatpush.bf16.msra.mxu0 %v5420
        %5440 = vmatpush.bf16.msra.mxu0 %v5419
        %5441 = vmatpush.bf16.msra.mxu0 %v5418
        %5442 = vmatpush.bf16.msra.mxu0 %v5417
        %5443 = vmatpush.bf16.msra.mxu0 %v5416
        %5444 = vmatmul.bf16.gmra.mxu0 %v5214
        %v5445 = vpop.f32.mrf.mxu0
        %v5446 = vadd.f32 0.0, %v5445
        %v5447 = vpop.f32.mrf.mxu0
        %v5448 = vadd.f32 0.0, %v5447
        %5449 = vmatmul.bf16.gmra.mxu0 %v5216
        %v5450 = vpop.f32.mrf.mxu0
        %v5451 = vadd.f32 0.0, %v5450
        %v5452 = vpop.f32.mrf.mxu0
        %v5453 = vadd.f32 0.0, %v5452
        %5454 = vmatmul.bf16.gmra.mxu0 %v5218
        %v5455 = vpop.f32.mrf.mxu0
        %v5456 = vadd.f32 0.0, %v5455
        %v5457 = vpop.f32.mrf.mxu0
        %5458 = vdwg.mxu0
        %5459 = vmatpush.bf16.msra.mxu0 0
        %5460 = vmatpush.bf16.msra.mxu0 0
        %5461 = vmatpush.bf16.msra.mxu0 0
        %5462 = vmatpush.bf16.msra.mxu0 0
        %5463 = vmatpush.bf16.msra.mxu0 0
        %5464 = vmatpush.bf16.msra.mxu0 0
        %5465 = vmatpush.bf16.msra.mxu0 %v5425
        %5466 = vmatpush.bf16.msra.mxu0 %v5424
        %5467 = vmatmul.bf16.gmra.mxu0 %v5302
        %v5468 = vpop.f32.mrf.mxu0
        %v5469 = vadd.f32 %v5446, %v5468
        %v5470 = vpop.f32.mrf.mxu0
        %v5471 = vadd.f32 %v5448, %v5470
        %5472 = vmatmul.bf16.gmra.mxu0 %v5305
        %v5473 = vpop.f32.mrf.mxu0
        %v5474 = vadd.f32 %v5451, %v5473
        %v5475 = vpop.f32.mrf.mxu0
        %v5476 = vadd.f32 %v5453, %v5475
        %5477 = vmatmul.bf16.gmra.mxu0 %v5308
        %v5478 = vpop.f32.mrf.mxu0
        %v5479 = vadd.f32 %v5456, %v5478
        %v5480 = vpop.f32.mrf.mxu0
        %5481 = vdwg.mxu0
        %v5482 = vmax.f32 %v5343, %v5469
        %v5483 = vmax.f32 %v5345, %v5471
        %v5484 = vmax.f32 %v5348, %v5474
        %v5485 = vmax.f32 %v5350, %v5476
        %v5486 = vmax.f32 %v5353, %v5479
        %v5487 = vld [vmem:[%s13] sm:$0xf]
        %v5488 = vld [vmem:[%s13 + $0x4] sm:$0xf]
        %v5489 = vld [vmem:[%s13 + $0x8] sm:$0xf]
        %v5490 = vld [vmem:[%s13 + $0xc] sm:$0xf]
        %v5491 = vld [vmem:[%s13 + $0x10] sm:$0xf]
        %v5492 = vpack.c.bf16 %v5483, %v5482
        %v5493 = vpack.c.bf16 %v5485, %v5484
        %v5494 = vpack.c.bf16 %v5486, %v5486
        %v5500 = vunpack.c.l.b16 %v5487
        %v5501 = vunpack.c.l.b16 %v5488
        %v5502 = vunpack.c.l.b16 %v5489
        %v5503 = vunpack.c.l.b16 %v5490
        %v5504 = vunpack.c.l.b16 %v5491
        %v5505 = vpack.c.b16 %v5501, %v5500
        %v5506 = vpack.c.b16 %v5503, %v5502
        %v5507 = vpack.c.b16 %v5504, %v5504
        %v5509 = vsel %vm3534, %v5505, 0
        %v5512 = vsel %vm3534, %v5506, 0
        %v5515 = vsel %vm3534, %v5507, 0
        %v5518 = vsel %vm3556, %v5494, 0
        %5520 = vmatpush.bf16.msra.mxu0 0
        %5521 = vmatpush.bf16.msra.mxu0 0
        %5522 = vmatpush.bf16.msra.mxu0 0
        %5523 = vmatpush.bf16.msra.mxu0 0
        %5524 = vmatpush.bf16.msra.mxu0 0
        %5525 = vmatpush.bf16.msra.mxu0 %v5518
        %5526 = vmatpush.bf16.msra.mxu0 %v5493
        %5527 = vmatpush.bf16.msra.mxu0 %v5492
        %5528 = vmatmul.bf16.gmra.mxu0 %v5509
        %v5529 = vpop.f32.mrf.mxu0
        %v5530 = vadd.f32 0.0, %v5529
        %v5531 = vpop.f32.mrf.mxu0
        %v5532 = vadd.f32 0.0, %v5531
        %5533 = vmatmul.bf16.gmra.mxu0 %v5512
        %v5534 = vpop.f32.mrf.mxu0
        %v5535 = vadd.f32 0.0, %v5534
        %v5536 = vpop.f32.mrf.mxu0
        %v5537 = vadd.f32 0.0, %v5536
        %5538 = vmatmul.bf16.gmra.mxu0 %v5515
        %v5539 = vpop.f32.mrf.mxu0
        %v5540 = vadd.f32 0.0, %v5539
        %v5541 = vpop.f32.mrf.mxu0
        %5542 = vdwg.mxu0
        %v5543 = vld [vmem:[%s15] sm:$0x1]
        %v5545 = vperm.slane %v5543, 0
        %v5547 = vpack.c.bf16 %v5530, %v5530
        %v5548 = vld [vmem:[%s14] sm:$0xf]
        %v5549 = vld [vmem:[%s14 + $0x4] sm:$0xf]
        %v5550 = vld [vmem:[%s14 + $0x8] sm:$0xf]
        %v5551 = vld [vmem:[%s14 + $0xc] sm:$0xf]
        %v5552 = vld [vmem:[%s14 + $0x10] sm:$0xf]
        %v5553 = vld [vmem:[%s14 + $0x14] sm:$0xf]
        %v5554 = vld [vmem:[%s14 + $0x18] sm:$0xf]
        %v5555 = vld [vmem:[%s14 + $0x1c] sm:$0xf]
        %v5556 = vld [vmem:[%s14 + $0x20] sm:$0xf]
        %v5557 = vld [vmem:[%s14 + $0x24] sm:$0xf]
        %v5568 = vunpack.c.l.b16 %v5548
        %v5569 = vunpack.c.l.b16 %v5549
        %v5570 = vunpack.c.l.b16 %v5550
        %v5571 = vunpack.c.l.b16 %v5551
        %v5572 = vunpack.c.l.b16 %v5552
        %v5573 = vunpack.c.l.b16 %v5553
        %v5574 = vunpack.c.l.b16 %v5554
        %v5575 = vunpack.c.l.b16 %v5555
        %v5576 = vunpack.c.l.b16 %v5556
        %v5577 = vunpack.c.l.b16 %v5557
        %v5578 = vpack.c.b16 %v5569, %v5568
        %v5579 = vpack.c.b16 %v5571, %v5570
        %v5580 = vpack.c.b16 %v5573, %v5572
        %v5581 = vpack.c.b16 %v5575, %v5574
        %v5582 = vpack.c.b16 %v5577, %v5576
        %vm5588 = vcmask 654336
        %v5590 = vsel %vm5588, %v5547, 0
        %5592 = vmatpush.bf16.msra.mxu0 0
        %5593 = vmatpush.bf16.msra.mxu0 0
        %5594 = vmatpush.bf16.msra.mxu0 0
        %5595 = vmatpush.bf16.msra.mxu0 %v5582
        %5596 = vmatpush.bf16.msra.mxu0 %v5581
        %5597 = vmatpush.bf16.msra.mxu0 %v5580
        %5598 = vmatpush.bf16.msra.mxu0 %v5579
        %5599 = vmatpush.bf16.msra.mxu0 %v5578
        %5600 = vmatmul.bf16.gmra.mxu0 %v5590
        %v5601 = vpop.f32.mrf.mxu0
        %v5602 = vadd.f32 0.0, %v5601
        %v5603 = vpop.f32.mrf.mxu0
        %5604 = vdwg.mxu0
        %v5605 = vadd.f32 %v5545, %v5602
        %v5606 = vpack.c.bf16 %v5532, %v5532
        %s5607 = scalar_lea.vmem %s14, 40
        %v5608 = vld [vmem:[%s5607] sm:$0xf]
        %v5609 = vld [vmem:[%s5607 + $0x4] sm:$0xf]
        %v5610 = vld [vmem:[%s5607 + $0x8] sm:$0xf]
        %v5611 = vld [vmem:[%s5607 + $0xc] sm:$0xf]
        %v5612 = vld [vmem:[%s5607 + $0x10] sm:$0xf]
        %v5613 = vld [vmem:[%s5607 + $0x14] sm:$0xf]
        %v5614 = vld [vmem:[%s5607 + $0x18] sm:$0xf]
        %v5615 = vld [vmem:[%s5607 + $0x1c] sm:$0xf]
        %v5616 = vld [vmem:[%s5607 + $0x20] sm:$0xf]
        %v5617 = vld [vmem:[%s5607 + $0x24] sm:$0xf]
        %v5628 = vunpack.c.l.b16 %v5608
        %v5629 = vunpack.c.l.b16 %v5609
        %v5630 = vunpack.c.l.b16 %v5610
        %v5631 = vunpack.c.l.b16 %v5611
        %v5632 = vunpack.c.l.b16 %v5612
        %v5633 = vunpack.c.l.b16 %v5613
        %v5634 = vunpack.c.l.b16 %v5614
        %v5635 = vunpack.c.l.b16 %v5615
        %v5636 = vunpack.c.l.b16 %v5616
        %v5637 = vunpack.c.l.b16 %v5617
        %v5638 = vpack.c.b16 %v5629, %v5628
        %v5639 = vpack.c.b16 %v5631, %v5630
        %v5640 = vpack.c.b16 %v5633, %v5632
        %v5641 = vpack.c.b16 %v5635, %v5634
        %v5642 = vpack.c.b16 %v5637, %v5636
        %v5649 = vsel %vm5588, %v5606, 0
        %5651 = vmatpush.bf16.msra.mxu0 0
        %5652 = vmatpush.bf16.msra.mxu0 0
        %5653 = vmatpush.bf16.msra.mxu0 0
        %5654 = vmatpush.bf16.msra.mxu0 %v5642
        %5655 = vmatpush.bf16.msra.mxu0 %v5641
        %5656 = vmatpush.bf16.msra.mxu0 %v5640
        %5657 = vmatpush.bf16.msra.mxu0 %v5639
        %5658 = vmatpush.bf16.msra.mxu0 %v5638
        %5659 = vmatmul.bf16.gmra.mxu0 %v5649
        %v5660 = vpop.f32.mrf.mxu0
        %v5661 = vadd.f32 0.0, %v5660
        %v5662 = vpop.f32.mrf.mxu0
        %5663 = vdwg.mxu0
        %v5664 = vadd.f32 %v5605, %v5661
        %v5665 = vpack.c.bf16 %v5535, %v5535
        %s5666 = scalar_lea.vmem %s14, 80
        %v5667 = vld [vmem:[%s5666] sm:$0xf]
        %v5668 = vld [vmem:[%s5666 + $0x4] sm:$0xf]
        %v5669 = vld [vmem:[%s5666 + $0x8] sm:$0xf]
        %v5670 = vld [vmem:[%s5666 + $0xc] sm:$0xf]
        %v5671 = vld [vmem:[%s5666 + $0x10] sm:$0xf]
        %v5672 = vld [vmem:[%s5666 + $0x14] sm:$0xf]
        %v5673 = vld [vmem:[%s5666 + $0x18] sm:$0xf]
        %v5674 = vld [vmem:[%s5666 + $0x1c] sm:$0xf]
        %v5675 = vld [vmem:[%s5666 + $0x20] sm:$0xf]
        %v5676 = vld [vmem:[%s5666 + $0x24] sm:$0xf]
        %v5687 = vunpack.c.l.b16 %v5667
        %v5688 = vunpack.c.l.b16 %v5668
        %v5689 = vunpack.c.l.b16 %v5669
        %v5690 = vunpack.c.l.b16 %v5670
        %v5691 = vunpack.c.l.b16 %v5671
        %v5692 = vunpack.c.l.b16 %v5672
        %v5693 = vunpack.c.l.b16 %v5673
        %v5694 = vunpack.c.l.b16 %v5674
        %v5695 = vunpack.c.l.b16 %v5675
        %v5696 = vunpack.c.l.b16 %v5676
        %v5697 = vpack.c.b16 %v5688, %v5687
        %v5698 = vpack.c.b16 %v5690, %v5689
        %v5699 = vpack.c.b16 %v5692, %v5691
        %v5700 = vpack.c.b16 %v5694, %v5693
        %v5701 = vpack.c.b16 %v5696, %v5695
        %v5708 = vsel %vm5588, %v5665, 0
        %5710 = vmatpush.bf16.msra.mxu0 0
        %5711 = vmatpush.bf16.msra.mxu0 0
        %5712 = vmatpush.bf16.msra.mxu0 0
        %5713 = vmatpush.bf16.msra.mxu0 %v5701
        %5714 = vmatpush.bf16.msra.mxu0 %v5700
        %5715 = vmatpush.bf16.msra.mxu0 %v5699
        %5716 = vmatpush.bf16.msra.mxu0 %v5698
        %5717 = vmatpush.bf16.msra.mxu0 %v5697
        %5718 = vmatmul.bf16.gmra.mxu0 %v5708
        %v5719 = vpop.f32.mrf.mxu0
        %v5720 = vadd.f32 0.0, %v5719
        %v5721 = vpop.f32.mrf.mxu0
        %5722 = vdwg.mxu0
        %v5723 = vadd.f32 %v5664, %v5720
        %v5724 = vpack.c.bf16 %v5537, %v5537
        %s5725 = scalar_lea.vmem %s14, 120
        %v5726 = vld [vmem:[%s5725] sm:$0xf]
        %v5727 = vld [vmem:[%s5725 + $0x4] sm:$0xf]
        %v5728 = vld [vmem:[%s5725 + $0x8] sm:$0xf]
        %v5729 = vld [vmem:[%s5725 + $0xc] sm:$0xf]
        %v5730 = vld [vmem:[%s5725 + $0x10] sm:$0xf]
        %v5731 = vld [vmem:[%s5725 + $0x14] sm:$0xf]
        %v5732 = vld [vmem:[%s5725 + $0x18] sm:$0xf]
        %v5733 = vld [vmem:[%s5725 + $0x1c] sm:$0xf]
        %v5734 = vld [vmem:[%s5725 + $0x20] sm:$0xf]
        %v5735 = vld [vmem:[%s5725 + $0x24] sm:$0xf]
        %v5746 = vunpack.c.l.b16 %v5726
        %v5747 = vunpack.c.l.b16 %v5727
        %v5748 = vunpack.c.l.b16 %v5728
        %v5749 = vunpack.c.l.b16 %v5729
        %v5750 = vunpack.c.l.b16 %v5730
        %v5751 = vunpack.c.l.b16 %v5731
        %v5752 = vunpack.c.l.b16 %v5732
        %v5753 = vunpack.c.l.b16 %v5733
        %v5754 = vunpack.c.l.b16 %v5734
        %v5755 = vunpack.c.l.b16 %v5735
        %v5756 = vpack.c.b16 %v5747, %v5746
        %v5757 = vpack.c.b16 %v5749, %v5748
        %v5758 = vpack.c.b16 %v5751, %v5750
        %v5759 = vpack.c.b16 %v5753, %v5752
        %v5760 = vpack.c.b16 %v5755, %v5754
        %v5767 = vsel %vm5588, %v5724, 0
        %5769 = vmatpush.bf16.msra.mxu0 0
        %5770 = vmatpush.bf16.msra.mxu0 0
        %5771 = vmatpush.bf16.msra.mxu0 0
        %5772 = vmatpush.bf16.msra.mxu0 %v5760
        %5773 = vmatpush.bf16.msra.mxu0 %v5759
        %5774 = vmatpush.bf16.msra.mxu0 %v5758
        %5775 = vmatpush.bf16.msra.mxu0 %v5757
        %5776 = vmatpush.bf16.msra.mxu0 %v5756
        %5777 = vmatmul.bf16.gmra.mxu0 %v5767
        %v5778 = vpop.f32.mrf.mxu0
        %v5779 = vadd.f32 0.0, %v5778
        %v5780 = vpop.f32.mrf.mxu0
        %5781 = vdwg.mxu0
        %v5782 = vadd.f32 %v5723, %v5779
        %v5783 = vpack.c.bf16 %v5540, %v5540
        %s5784 = scalar_lea.vmem %s14, 160
        %v5785 = vld [vmem:[%s5784] sm:$0xf]
        %v5786 = vld [vmem:[%s5784 + $0x4] sm:$0xf]
        %v5787 = vld [vmem:[%s5784 + $0x8] sm:$0xf]
        %v5788 = vld [vmem:[%s5784 + $0xc] sm:$0xf]
        %v5789 = vld [vmem:[%s5784 + $0x10] sm:$0xf]
        %v5790 = vld [vmem:[%s5784 + $0x14] sm:$0xf]
        %v5791 = vld [vmem:[%s5784 + $0x18] sm:$0xf]
        %v5792 = vld [vmem:[%s5784 + $0x1c] sm:$0xf]
        %v5793 = vld [vmem:[%s5784 + $0x20] sm:$0xf]
        %v5794 = vld [vmem:[%s5784 + $0x24] sm:$0xf]
        %v5805 = vunpack.c.l.b16 %v5785
        %v5806 = vunpack.c.l.b16 %v5786
        %v5807 = vunpack.c.l.b16 %v5787
        %v5808 = vunpack.c.l.b16 %v5788
        %v5809 = vunpack.c.l.b16 %v5789
        %v5810 = vunpack.c.l.b16 %v5790
        %v5811 = vunpack.c.l.b16 %v5791
        %v5812 = vunpack.c.l.b16 %v5792
        %v5813 = vunpack.c.l.b16 %v5793
        %v5814 = vunpack.c.l.b16 %v5794
        %v5815 = vpack.c.b16 %v5806, %v5805
        %v5816 = vpack.c.b16 %v5808, %v5807
        %v5817 = vpack.c.b16 %v5810, %v5809
        %v5818 = vpack.c.b16 %v5812, %v5811
        %v5819 = vpack.c.b16 %v5814, %v5813
        %v5826 = vsel %vm5588, %v5783, 0
        %5828 = vmatpush.bf16.msra.mxu0 0
        %5829 = vmatpush.bf16.msra.mxu0 0
        %5830 = vmatpush.bf16.msra.mxu0 0
        %5831 = vmatpush.bf16.msra.mxu0 %v5819
        %5832 = vmatpush.bf16.msra.mxu0 %v5818
        %5833 = vmatpush.bf16.msra.mxu0 %v5817
        %5834 = vmatpush.bf16.msra.mxu0 %v5816
        %5835 = vmatpush.bf16.msra.mxu0 %v5815
        %5836 = vmatmul.bf16.gmra.mxu0 %v5826
        %v5837 = vpop.f32.mrf.mxu0
        %v5838 = vadd.f32 0.0, %v5837
        %v5839 = vpop.f32.mrf.mxu0
        %5840 = vdwg.mxu0
        %v5841 = vadd.f32 %v5782, %v5838
        %v5842 = vmax.f32 %v5841, 0.0
        %v5843 = vpack.c.bf16 %v5842, %v5842
        %v5844 = vld [vmem:[%s16] sm:$0xf]
        %v5845 = vld [vmem:[%s16 + $0x4] sm:$0xf]
        %v5846 = vld [vmem:[%s16 + $0x8] sm:$0xf]
        %v5847 = vld [vmem:[%s16 + $0xc] sm:$0xf]
        %v5848 = vld [vmem:[%s16 + $0x10] sm:$0xf]
        %v5849 = vld [vmem:[%s16 + $0x14] sm:$0xf]
        %v5850 = vld [vmem:[%s16 + $0x18] sm:$0xf]
        %v5851 = vld [vmem:[%s16 + $0x1c] sm:$0xf]
        %v5852 = vld [vmem:[%s16 + $0x20] sm:$0xf]
        %v5853 = vld [vmem:[%s16 + $0x24] sm:$0xf]
        %v5854 = vld [vmem:[%s16 + $0x28] sm:$0xf]
        %v5855 = vld [vmem:[%s16 + $0x2c] sm:$0xf]
        %v5856 = vld [vmem:[%s16 + $0x30] sm:$0xf]
        %v5857 = vld [vmem:[%s16 + $0x34] sm:$0xf]
        %v5858 = vld [vmem:[%s16 + $0x38] sm:$0xf]
        %v5859 = vld [vmem:[%s17] sm:$0x1]
        %v5861 = vperm.slane %v5859, 0
        %v5878 = vunpack.c.l.b16 %v5844
        %v5879 = vunpack.c.l.b16 %v5845
        %v5880 = vunpack.c.l.b16 %v5846
        %v5881 = vunpack.c.l.b16 %v5847
        %v5882 = vunpack.c.l.b16 %v5848
        %v5883 = vunpack.c.l.b16 %v5849
        %v5884 = vunpack.c.l.b16 %v5850
        %v5885 = vunpack.c.l.b16 %v5851
        %v5886 = vunpack.c.l.b16 %v5852
        %v5887 = vunpack.c.l.b16 %v5853
        %v5888 = vunpack.c.l.b16 %v5854
        %v5889 = vunpack.c.l.b16 %v5855
        %v5890 = vunpack.c.l.b16 %v5856
        %v5891 = vunpack.c.l.b16 %v5857
        %v5892 = vunpack.c.l.b16 %v5858
        %v5893 = vpack.c.b16 %v5879, %v5878
        %v5894 = vpack.c.b16 %v5881, %v5880
        %v5895 = vpack.c.b16 %v5883, %v5882
        %v5896 = vpack.c.b16 %v5885, %v5884
        %v5897 = vpack.c.b16 %v5887, %v5886
        %v5898 = vpack.c.b16 %v5889, %v5888
        %v5899 = vpack.c.b16 %v5891, %v5890
        %v5900 = vpack.c.b16 %v5892, %v5892
        %vm5908 = vcmask 982016
        %v5910 = vsel %vm5908, %v5843, 0
        %v5913 = vsel %vm3556, %v5900, 0
        %5915 = vmatpush.bf16.msra.mxu0 %v5913
        %5916 = vmatpush.bf16.msra.mxu0 %v5899
        %5917 = vmatpush.bf16.msra.mxu0 %v5898
        %5918 = vmatpush.bf16.msra.mxu0 %v5897
        %5919 = vmatpush.bf16.msra.mxu0 %v5896
        %5920 = vmatpush.bf16.msra.mxu0 %v5895
        %5921 = vmatpush.bf16.msra.mxu0 %v5894
        %5922 = vmatpush.bf16.msra.mxu0 %v5893
        %5923 = vmatmul.bf16.gmra.mxu0 %v5910
        %v5924 = vpop.f32.mrf.mxu0
        %v5925 = vadd.f32 %v5861, %v5924
        %v5926 = vpop.f32.mrf.mxu0
        %5927 = vdwg.mxu0
        %v5928 = vmax.f32 %v5925, 0.0
        %v5929 = vpack.c.bf16 %v5928, %v5928
        %v5930 = vld [vmem:[%s18] sm:$0xf]
        %v5931 = vld [vmem:[%s18 + $0x4] sm:$0xf]
        %v5932 = vld [vmem:[%s18 + $0x8] sm:$0xf]
        %v5933 = vld [vmem:[%s18 + $0xc] sm:$0xf]
        %v5934 = vld [vmem:[%s18 + $0x10] sm:$0xf]
        %v5935 = vld [vmem:[%s18 + $0x14] sm:$0xf]
        %v5936 = vld [vmem:[%s18 + $0x18] sm:$0xf]
        %v5937 = vld [vmem:[%s18 + $0x1c] sm:$0xf]
        %v5938 = vld [vmem:[%s18 + $0x20] sm:$0xf]
        %v5939 = vld [vmem:[%s18 + $0x24] sm:$0xf]
        %v5940 = vld [vmem:[%s18 + $0x28] sm:$0x3]
        %v5941 = vld [vmem:[%s19] sm:$0x1]
        %v5943 = vperm.slane %v5941, 0
        %v5956 = vunpack.c.l.b16 %v5930
        %v5957 = vunpack.c.l.b16 %v5931
        %v5958 = vunpack.c.l.b16 %v5932
        %v5959 = vunpack.c.l.b16 %v5933
        %v5960 = vunpack.c.l.b16 %v5934
        %v5961 = vunpack.c.l.b16 %v5935
        %v5962 = vunpack.c.l.b16 %v5936
        %v5963 = vunpack.c.l.b16 %v5937
        %v5964 = vunpack.c.l.b16 %v5938
        %v5965 = vunpack.c.l.b16 %v5939
        %v5966 = vunpack.c.l.b16 %v5940
        %v5967 = vpack.c.b16 %v5957, %v5956
        %v5968 = vpack.c.b16 %v5959, %v5958
        %v5969 = vpack.c.b16 %v5961, %v5960
        %v5970 = vpack.c.b16 %v5963, %v5962
        %v5971 = vpack.c.b16 %v5965, %v5964
        %v5972 = vpack.c.b16 %v5966, %v5966
        %v5979 = vsel %vm3916, %v5929, 0
        %v5982 = vsel %vm3938, %v5972, 0
        %5984 = vmatpush.bf16.msra.mxu0 0
        %5985 = vmatpush.bf16.msra.mxu0 0
        %5986 = vmatpush.bf16.msra.mxu0 %v5982
        %5987 = vmatpush.bf16.msra.mxu0 %v5971
        %5988 = vmatpush.bf16.msra.mxu0 %v5970
        %5989 = vmatpush.bf16.msra.mxu0 %v5969
        %5990 = vmatpush.bf16.msra.mxu0 %v5968
        %5991 = vmatpush.bf16.msra.mxu0 %v5967
        %5992 = vmatmul.bf16.gmra.mxu0 %v5979
        %v5993 = vpop.f32.mrf.mxu0
        %v5994 = vadd.f32 %v5943, %v5993
        %v5995 = vpop.f32.mrf.mxu0
        %5996 = vdwg.mxu0
        %5997 = vst [vmem:[%s623] sm:$0xff] %v5994
        %s5998 = sand.u32 %s467, 1
        %s5999 = scalar_lea.sflag [#allocation3], %s5998
        %s6000 = sand.u32 %s467, 1
        %s6001 = smul.addr %s6000, 8
        %s6002 = scalar_lea.vmem [#allocation2], %s6001
        // Predicated region
        $region101: #{lenet5_forward.1} parent=99 // pred_check
          %p6003 = pneg %p477
        $region102: #{lenet5_forward.1} parent=99 // pred_check_branch
          %6005 = sbr.rel (%p6003) target = $region104
        $region103: #{lenet5_forward.1} parent=99 // pred_region
          %6007 = vsyncadd %s5999, 0
          %s6008 = smul.addr %s34, 8
          %s6009 = scalar_lea.hbm %s20, %s6008
          %s6011 = sshll.u32 %s6002, 4
          %s6012 = int_to_ptr.vmem [resolvable:$true] %s6011
          %s6013 = sshll.u32 %s6009, 4
          %s6014 = int_to_ptr.hbm [resolvable:$true] %s6013
          %6016 = dma.vmem_to_hbm [thread:$0]  %s6012, 128, %s6014, %s5999
        $region104: #{lenet5_forward.1} parent=99 // pred_fallthru
          _
      $region100: #{lenet5_forward.1} parent=5 // pred_fallthru
        _
      %p6017 = scmp.le.s32.totalorder 2, %s29
      // Predicated region
      $region105: #{lenet5_forward.1} parent=5 // pred_check
        %p6018 = pneg %p6017
      $region106: #{lenet5_forward.1} parent=5 // pred_check_branch
        %6020 = sbr.rel (%p6018) target = $region108
      $region107: #{lenet5_forward.1} parent=5 // pred_region
        %s6021 = ssub.s32 %s29, 2
        // Predicated region
        $region109: #{lenet5_forward.1} parent=107 // pred_check
          %p6022 = pneg %p483
        $region110: #{lenet5_forward.1} parent=107 // pred_check_branch
          %6024 = sbr.rel (%p6022) target = $region112
        $region111: #{lenet5_forward.1} parent=107 // pred_region
          %s6025 = sand.u32 %s468, 1
          %s6026 = scalar_lea.sflag [#allocation3], %s6025
          %s6027 = sand.u32 %s468, 1
          %s6028 = smul.addr %s6027, 8
          %s6029 = scalar_lea.vmem [#allocation2], %s6028
          %6031 = dma.done %s6026, 128
        $region112: #{lenet5_forward.1} parent=107 // pred_fallthru
          _
      $region108: #{lenet5_forward.1} parent=5 // pred_fallthru
        _
    $region6: #{lenet5_forward.1} parent=1 // loop_footer
      %s33 = sadd.s32 1, %s29
    $region7: #{lenet5_forward.1} parent=1 // loop_footer_branch
      %28 = sbr.rel target = $region3
    $region8: #{lenet5_forward.1} parent=1 // loop_exit
      _
    %6032 = vsyncpa [#allocation3], 1
    %s6033 = scalar_lea.sflag [#allocation3], 1
    %6034 = vsyncpa %s6033, 1

</llo_original>
